<compile_context>
chip_gen: v7x
topology: tpu7x:2x2x1
jax: 0.10.0
libtpu: 0.0.40
codegen_flags: <defaults>
</compile_context>

<pallas_src>
import numpy as np
import jax
import jax.numpy as jnp
from jax import lax
from jax.experimental import pallas as pl
from jax.experimental.pallas import tpu as pltpu

LANE = 128  # lane width; edges and the flattened adjacency are padded to multiples


# ----------------------------- fused kernel -----------------------------

def make_fused_vae_kernel(n_edges):
    """Single fused forward kernel. n_edges = number of REAL (un-padded) edges,
    used for the edge-batch BatchNorm statistics."""
    inv_e = 1.0 / float(n_edges)
    neg_inf = float("-inf")

    def kernel(x_ref, eoh_ref, dstt_ref, pool_ref,                       # graph structure
               wds1_ref, w21_ref, vec1_ref,                              # conv layer 1
               wds2_ref, w22_ref, vec2_ref,                              # conv layer 2
               fcw_ref, hvec_ref, mulvw_ref, mulvb_ref, eps_ref,         # pooled head
               dw1_ref, dw2_ref, dw3_ref, dvec_ref, db3_ref,
               gum_ref, pair_ref,                                        # decoder
               adj_ref):                                                 # output (B, adj_w)
        edge_oh = eoh_ref[...]                      # (E_pad, 2N) bf16: [dst one-hot | src one-hot]
        dst_t = dstt_ref[...]                       # (N, E_pad)  bf16: dst one-hot, edges on lanes
        n_nodes = dstt_ref.shape[0]
        n_pairs = pair_ref.shape[0]
        lat = eps_ref.shape[1]
        inv_b = 1.0 / float(eps_ref.shape[0])

        # per-edge validity (padded edge rows are all-zero) and per-node in-degree mask
        evalid = (jnp.sum(edge_oh.astype(jnp.float32), axis=1, keepdims=True)
                  > 0.5).astype(jnp.float32)                              # (E_pad, 1)
        nmask = jnp.max(dst_t.astype(jnp.float32), axis=1, keepdims=True)  # (N, 1)

        def edgeconv(h, wds_ref, w2_ref, vec_ref):
            hdim = w2_ref.shape[1]
            b1, gam = vec_ref[0:1, :], vec_ref[1:2, :]
            bet, b2 = vec_ref[2:3, :], vec_ref[3:4, :]
            # fused node transform: h @ [Wd | Ws] -> (N, 2H); then stack to (2N, H)
            hds = jnp.dot(h, wds_ref[...], preferred_element_type=jnp.float32)
            hstack = jnp.concatenate([hds[:, :hdim], hds[:, hdim:]], axis=0)   # (2N, H)
            # per-edge gather + combine as ONE (E,2N)x(2N,H) bf16 matmul (f32 accumulate)
            a = jnp.dot(edge_oh, hstack.astype(jnp.bfloat16),
                        preferred_element_type=jnp.float32) + b1               # (E_pad, H)
            a = jnp.maximum(a, 0.2 * a)                                        # LeakyReLU(0.2)
            # BatchNorm over the REAL edge batch (training-mode stats, two-pass)
            mean = jnp.sum(a * evalid, axis=0, keepdims=True) * inv_e
            cent = a - mean
            var = jnp.sum((cent * evalid) * (cent * evalid), axis=0, keepdims=True) * inv_e
            a = cent * lax.rsqrt(var + 1e-5) * gam + bet
            a = jnp.dot(a, w2_ref[...], preferred_element_type=jnp.float32) + b2
            a = jnp.maximum(a, 0.2 * a)                                        # (E_pad, H)
            # lane-dense segment max: edges on the 128-lane axis; one 2D masked max
            # + cross-lane reduce per destination node, statically unrolled.
            a_t = jnp.transpose(a)                                             # (H, E_pad)
            cols = []
            for node in range(n_nodes):
                m = jnp.where(dst_t[node:node + 1, :] > 0, a_t, neg_inf)       # (H, E_pad)
                cols.append(jnp.max(m, axis=1, keepdims=True))                 # (H, 1)
            agg = jnp.transpose(jnp.concatenate(cols, axis=1))                 # (N, H)
            # nodes with no incoming edge -> 0 (PyG scatter-max zero fill)
            return jnp.where(nmask > 0, agg, 0.0)

        # ---- encoder: two EdgeConv layers (everything stays in vregs/VMEM) ----
        h = x_ref[...]
        h = edgeconv(h, wds1_ref, w21_ref, vec1_ref)
        h = edgeconv(h, wds2_ref, w22_ref, vec2_ref)
        # F.dropout(p=0.0) is a no-op

        # ---- global_add_pool -> BatchNorm1d -> fc -> [mu | logvar] -> reparameterize ----
        g = jnp.dot(pool_ref[...].astype(jnp.float32), h,
                    preferred_element_type=jnp.float32)                         # (B, H)
        bn_g, bn_b, fc_b = hvec_ref[0:1, :], hvec_ref[1:2, :], hvec_ref[2:3, :]
        mean = jnp.sum(g, axis=0, keepdims=True) * inv_b
        cent = g - mean
        var = jnp.sum(cent * cent, axis=0, keepdims=True) * inv_b
        g = cent * lax.rsqrt(var + 1e-5) * bn_g + bn_b
        g = jnp.dot(g, fcw_ref[...], preferred_element_type=jnp.float32) + fc_b
        mulv = jnp.dot(g, mulvw_ref[...], preferred_element_type=jnp.float32) + mulvb_ref[...]
        mu = mulv[:, :lat]
        logvar = mulv[:, lat:]
        z = eps_ref[...] * jnp.exp(0.5 * logvar) + mu                           # (B, L)

        # ---- decoder MLP + hard Gumbel-softmax ----
        d = jnp.maximum(jnp.dot(z, dw1_ref[...], preferred_element_type=jnp.float32)
                        + dvec_ref[0:1, :], 0.0)
        d = jnp.maximum(jnp.dot(d, dw2_ref[...], preferred_element_type=jnp.float32)
                        + dvec_ref[1:2, :], 0.0)
        logits = jnp.dot(d, dw3_ref[...], preferred_element_type=jnp.float32) + db3_ref[...]
        y = logits + gum_ref[...]                                               # (B, 2P)
        # dec_w3 columns were permuted offline to [channel-0 block | channel-1 block],
        # so the 2-way Gumbel argmax is a plain lane-aligned compare (ties -> channel 0).
        x_hard = (y[:, :n_pairs] >= y[:, n_pairs:]).astype(jnp.bfloat16)        # (B, P)
        # pair -> symmetric flattened adjacency; output padded to a 128-lane multiple
        adj_ref[...] = jnp.dot(x_hard, pair_ref[...],
                               preferred_element_type=jnp.float32)              # (B, adj_w)

    return kernel


# ----------------------------- wrapper -----------------------------

def vae_forward(params, x, edge_index, batch, n_graphs, key, cfg):
    n_nodes = x.shape[0]
    n_edges = edge_index.shape[1]
    n = cfg["n_max_nodes"]
    n_pairs = n * (n - 1) // 2
    lat = cfg["latent_dim"]
    adj_w = ((n * n + LANE - 1) // LANE) * LANE

    # pad the edge list to a lane multiple (padded edges map to node -1 -> all-zero one-hots)
    e_pad = max(LANE, ((n_edges + LANE - 1) // LANE) * LANE)
    pad = e_pad - n_edges
    src_idx, dst_idx = edge_index[0], edge_index[1]
    if pad:
        fill = jnp.full((pad,), -1, jnp.int32)
        src_idx = jnp.concatenate([src_idx, fill])
        dst_idx = jnp.concatenate([dst_idx, fill])
    node_ids = jnp.arange(n_nodes, dtype=jnp.int32)
    dst_oh = dst_idx[:, None] == node_ids[None, :]
    src_oh = src_idx[:, None] == node_ids[None, :]
    # structural 0/1 operands in bf16 (exact values, half the DMA bytes)
    edge_oh = jnp.concatenate([dst_oh, src_oh], axis=1).astype(jnp.bfloat16)    # (E_pad, 2N)
    dst_t = (node_ids[:, None] == dst_idx[None, :]).astype(jnp.bfloat16)        # (N, E_pad)
    pool_mat = (batch[None, :] == jnp.arange(n_graphs, dtype=jnp.int32)[:, None]
                ).astype(jnp.bfloat16)                                          # (B, N)

    # noise drawn wrapper-side (pltpu PRNG has no CPU/interpret lowering)
    k_eps, k_gum = jax.random.split(key)
    eps = jax.random.normal(k_eps, (n_graphs, lat), jnp.float32)
    gum = jax.random.gumbel(k_gum, (n_graphs, 2 * n_pairs), jnp.float32)

    (wds1, w21, vec1), (wds2, w22, vec2) = params["convs"]
    args = (x, edge_oh, dst_t, pool_mat,
            wds1, w21, vec1, wds2, w22, vec2,
            params["fc_w"], params["head_vec"], params["mulv_w"], params["mulv_b"], eps,
            params["dec_w1"], params["dec_w2"], params["dec_w3"],
            params["dec_vec"], params["dec_b3"], gum, params["pair2adj"])

    kernel = make_fused_vae_kernel(n_edges)
    adj_pad = pl.pallas_call(
        kernel,
        out_shape=jax.ShapeDtypeStruct((n_graphs, adj_w), jnp.float32),
        in_specs=[pl.BlockSpec(memory_space=pltpu.MemorySpace.VMEM) for _ in args],
        out_specs=pl.BlockSpec(memory_space=pltpu.MemorySpace.VMEM),
        compiler_params=pltpu.CompilerParams(vmem_limit_bytes=32 * 1024 * 1024),
    )(*args)

    return adj_pad[:, :n * n].reshape(n_graphs, n, n)


# ----------------------------- parameter / data setup -----------------------------

def init_linear(key, fan_in, fan_out):
    kw, kb = jax.random.split(key)
    bound = 1.0 / np.sqrt(fan_in)
    w = jax.random.uniform(kw, (fan_in, fan_out), jnp.float32, -bound, bound)
    b = jax.random.uniform(kb, (1, fan_out), jnp.float32, -bound, bound)
    return w, b


def split_edge_linear(w1):
    """W1 acts on [x_i, x_j - x_i]; return (Wd, Ws) so a = x_dst@Wd + x_src@Ws."""
    f = w1.shape[0] // 2
    return w1[:f] - w1[f:], w1[f:]


def build_params(key, cfg):
    d_in, h_enc = cfg["input_dim"], cfg["hidden_dim_enc"]
    h_dec, lat, n = cfg["hidden_dim_dec"], cfg["latent_dim"], cfg["n_max_nodes"]
    n_pairs = n * (n - 1) // 2
    adj_w = ((n * n + LANE - 1) // LANE) * LANE
    keys = jax.random.split(key, 12)
    params = {}

    # GIN: EdgeConv MLPs (n_layers_enc = 2); first linear pre-split + fused offline,
    # bias / BN gamma / BN beta / second bias packed into one (4, H) slab per layer.
    convs = []
    for li, fan_in in enumerate((d_in, h_enc)):
        w1, b1 = init_linear(keys[2 * li], 2 * fan_in, h_enc)
        w2, b2 = init_linear(keys[2 * li + 1], h_enc, h_enc)
        wd, ws = split_edge_linear(w1)
        wds = jnp.concatenate([wd, ws], axis=1)                       # (F, 2H)
        vec = jnp.concatenate([b1, jnp.ones((1, h_enc)), jnp.zeros((1, h_enc)), b2], axis=0)
        convs.append((wds, w2, vec))
    params["convs"] = convs

    fc_w, fc_b = init_linear(keys[4], h_enc, h_enc)                    # GIN.fc
    params["fc_w"] = fc_w
    params["head_vec"] = jnp.concatenate(
        [jnp.ones((1, h_enc)), jnp.zeros((1, h_enc)), fc_b], axis=0)   # [bn_g, bn_b, fc_b]
    mu_w, mu_b = init_linear(keys[5], h_enc, lat)
    lv_w, lv_b = init_linear(keys[6], h_enc, lat)
    params["mulv_w"] = jnp.concatenate([mu_w, lv_w], axis=1)           # (H, 2L)
    params["mulv_b"] = jnp.concatenate([mu_b, lv_b], axis=1)           # (1, 2L)

    # Decoder MLP (n_layers_dec = 3); last-layer columns permuted offline so the output
    # layout is [pair0..pairP-1 channel-0 | pair0..pairP-1 channel-1]
    dw1, db1 = init_linear(keys[7], lat, h_dec)
    dw2, db2 = init_linear(keys[8], h_dec, h_dec)
    w3, b3 = init_linear(keys[9], h_dec, 2 * n_pairs)
    perm = np.concatenate([np.arange(0, 2 * n_pairs, 2), np.arange(1, 2 * n_pairs, 2)])
    params["dec_w1"], params["dec_w2"] = dw1, dw2
    params["dec_vec"] = jnp.concatenate([db1, db2], axis=0)            # (2, Hd)
    params["dec_w3"] = w3[:, perm]
    params["dec_b3"] = b3[:, perm]

    # pair -> symmetric flattened adjacency, padded to a 128-lane multiple (0/1 -> bf16 exact)
    pairs = [(i, j) for i in range(n) for j in range(i + 1, n)]        # triu_indices(n, n, 1)
    pair2adj = np.zeros((n_pairs, adj_w), np.float32)
    for p, (i, j) in enumerate(pairs):
        pair2adj[p, i * n + j] = 1.0
        pair2adj[p, j * n + i] = 1.0
    params["pair2adj"] = jnp.asarray(pair2adj).astype(jnp.bfloat16)
    return params


def build_graph_batch(key, cfg, n_graphs):
    """Two fully-connected graphs of n_max_nodes nodes each."""
    n = cfg["n_max_nodes"]
    edges, batch = [], []
    for g in range(n_graphs):
        off = g * n
        for i in range(n):
            batch.append(g)
            for j in range(n):
                if i != j:
                    edges.append((off + i, off + j))   # (src, dst)
    edge_index = jnp.asarray(np.array(edges, np.int32).T)             # (2, E)
    batch = jnp.asarray(np.array(batch, np.int32))                    # (N,)
    n_total = n_graphs * n
    x = jax.random.normal(key, (n_total, cfg["input_dim"]), jnp.float32)
    return x, edge_index, batch


# ----------------------------- main -----------------------------

if __name__ == "__main__":
    cfg = dict(input_dim=4, hidden_dim_enc=32, hidden_dim_dec=32, latent_dim=16,
               n_layers_enc=2, n_layers_dec=3, n_max_nodes=8)
    n_graphs = 2

    root = jax.random.PRNGKey(0)
    k_params, k_data, k_noise = jax.random.split(root, 3)

    params = build_params(k_params, cfg)
    x, edge_index, batch = build_graph_batch(k_data, cfg, n_graphs)

    adj = vae_forward(params, x, edge_index, batch, n_graphs, k_noise, cfg)
    adj = jax.block_until_ready(adj)

    assert adj.shape == (n_graphs, cfg["n_max_nodes"], cfg["n_max_nodes"])
    assert bool(jnp.all((adj == 0.0) | (adj == 1.0)))            # hard gumbel => binary
    assert bool(jnp.all(adj == jnp.swapaxes(adj, 1, 2)))         # symmetric
    print("KERNEL_OK")
</pallas_src>

<mosaic_0001>
module attributes {stable_mosaic.version = 11 : i64} {
  func.func @kernel(%arg0: memref<16x4xf32, #tpu.memory_space<vmem>>, %arg1: memref<128x32xbf16, #tpu.memory_space<vmem>>, %arg2: memref<16x128xbf16, #tpu.memory_space<vmem>>, %arg3: memref<2x16xbf16, #tpu.memory_space<vmem>>, %arg4: memref<4x64xf32, #tpu.memory_space<vmem>>, %arg5: memref<32x32xf32, #tpu.memory_space<vmem>>, %arg6: memref<4x32xf32, #tpu.memory_space<vmem>>, %arg7: memref<32x64xf32, #tpu.memory_space<vmem>>, %arg8: memref<32x32xf32, #tpu.memory_space<vmem>>, %arg9: memref<4x32xf32, #tpu.memory_space<vmem>>, %arg10: memref<32x32xf32, #tpu.memory_space<vmem>>, %arg11: memref<3x32xf32, #tpu.memory_space<vmem>>, %arg12: memref<32x32xf32, #tpu.memory_space<vmem>>, %arg13: memref<1x32xf32, #tpu.memory_space<vmem>>, %arg14: memref<2x16xf32, #tpu.memory_space<vmem>>, %arg15: memref<16x32xf32, #tpu.memory_space<vmem>>, %arg16: memref<32x32xf32, #tpu.memory_space<vmem>>, %arg17: memref<32x56xf32, #tpu.memory_space<vmem>>, %arg18: memref<2x32xf32, #tpu.memory_space<vmem>>, %arg19: memref<1x56xf32, #tpu.memory_space<vmem>>, %arg20: memref<2x56xf32, #tpu.memory_space<vmem>>, %arg21: memref<28x128xbf16, #tpu.memory_space<vmem>>, %arg22: memref<2x128xf32, #tpu.memory_space<vmem>>) attributes {dimension_semantics = [], scalar_prefetch = 0 : i64, scratch_operands = 0 : i64, tpu.core_type = #tpu.core_type<tc>} {
    %c0 = arith.constant 0 : index
    %c0_0 = arith.constant 0 : index
    %0 = vector.load %arg1[%c0, %c0_0] : memref<128x32xbf16, #tpu.memory_space<vmem>>, vector<128x32xbf16>
    %c0_1 = arith.constant 0 : index
    %c0_2 = arith.constant 0 : index
    %1 = vector.load %arg2[%c0_1, %c0_2] : memref<16x128xbf16, #tpu.memory_space<vmem>>, vector<16x128xbf16>
    %2 = arith.extf %0 : vector<128x32xbf16> to vector<128x32xf32>
    %cst = arith.constant dense<0.000000e+00> : vector<128xf32>
    %3 = vector.multi_reduction <add>, %2, %cst [1] : vector<128x32xf32> to vector<128xf32>
    %4 = vector.shape_cast %3 : vector<128xf32> to vector<128x1xf32>
    %cst_3 = arith.constant 5.000000e-01 : f32
    %5 = vector.broadcast %cst_3 : f32 to vector<128x1xf32>
    %6 = arith.cmpf ogt, %4, %5 : vector<128x1xf32>
    %7 = arith.extui %6 : vector<128x1xi1> to vector<128x1xi32>
    %8 = arith.sitofp %7 : vector<128x1xi32> to vector<128x1xf32>
    %9 = arith.extf %1 : vector<16x128xbf16> to vector<16x128xf32>
    %cst_4 = arith.constant dense<0xFF800000> : vector<16xf32>
    %10 = vector.multi_reduction <maximumf>, %9, %cst_4 [1] : vector<16x128xf32> to vector<16xf32>
    %11 = vector.shape_cast %10 : vector<16xf32> to vector<16x1xf32>
    %c0_5 = arith.constant 0 : index
    %c0_6 = arith.constant 0 : index
    %12 = vector.load %arg0[%c0_5, %c0_6] : memref<16x4xf32, #tpu.memory_space<vmem>>, vector<16x4xf32>
    %c0_7 = arith.constant 0 : index
    %c0_8 = arith.constant 0 : index
    %13 = vector.load %arg6[%c0_7, %c0_8] : memref<4x32xf32, #tpu.memory_space<vmem>>, vector<1x32xf32>
    %c1 = arith.constant 1 : index
    %c0_9 = arith.constant 0 : index
    %14 = vector.load %arg6[%c1, %c0_9] : memref<4x32xf32, #tpu.memory_space<vmem>>, vector<1x32xf32>
    %c2 = arith.constant 2 : index
    %c0_10 = arith.constant 0 : index
    %15 = vector.load %arg6[%c2, %c0_10] : memref<4x32xf32, #tpu.memory_space<vmem>>, vector<1x32xf32>
    %c3 = arith.constant 3 : index
    %c0_11 = arith.constant 0 : index
    %16 = vector.load %arg6[%c3, %c0_11] : memref<4x32xf32, #tpu.memory_space<vmem>>, vector<1x32xf32>
    %c0_12 = arith.constant 0 : index
    %c0_13 = arith.constant 0 : index
    %17 = vector.load %arg4[%c0_12, %c0_13] : memref<4x64xf32, #tpu.memory_space<vmem>>, vector<4x64xf32>
    %cst_14 = arith.constant dense<0.000000e+00> : vector<16x64xf32>
    %18 = tpu.matmul %12, %17, %cst_14 {dimension_numbers = #tpu.dot_dimension_numbers<[1], [0], [0], [1], [0, 0, 1, 1], [], []>} : vector<16x4xf32>, vector<4x64xf32>, vector<16x64xf32> -> vector<16x64xf32>
    %19 = vector.extract_strided_slice %18 {offsets = [0, 0], sizes = [16, 32], strides = [1, 1]} : vector<16x64xf32> to vector<16x32xf32>
    %20 = vector.extract_strided_slice %18 {offsets = [0, 32], sizes = [16, 32], strides = [1, 1]} : vector<16x64xf32> to vector<16x32xf32>
    %21 = tpu.concatenate %19, %20 in 0 : vector<16x32xf32>, vector<16x32xf32> -> vector<32x32xf32>
    %22 = arith.truncf %21 : vector<32x32xf32> to vector<32x32xbf16>
    %cst_15 = arith.constant dense<0.000000e+00> : vector<128x32xf32>
    %23 = tpu.matmul %0, %22, %cst_15 {dimension_numbers = #tpu.dot_dimension_numbers<[1], [0], [0], [1], [0, 0, 1, 1], [], []>} : vector<128x32xbf16>, vector<32x32xbf16>, vector<128x32xf32> -> vector<128x32xf32>
    %24 = vector.broadcast %13 : vector<1x32xf32> to vector<128x32xf32>
    %25 = arith.addf %23, %24 : vector<128x32xf32>
    %cst_16 = arith.constant 2.000000e-01 : f32
    %26 = vector.broadcast %cst_16 : f32 to vector<128x32xf32>
    %27 = arith.mulf %26, %25 : vector<128x32xf32>
    %28 = arith.maximumf %25, %27 : vector<128x32xf32>
    %29 = vector.broadcast %8 : vector<128x1xf32> to vector<128x32xf32>
    %30 = arith.mulf %28, %29 : vector<128x32xf32>
    %cst_17 = arith.constant dense<0.000000e+00> : vector<32xf32>
    %31 = vector.multi_reduction <add>, %30, %cst_17 [0] : vector<128x32xf32> to vector<32xf32>
    %32 = vector.shape_cast %31 : vector<32xf32> to vector<1x32xf32>
    %cst_18 = arith.constant 0.00892857183 : f32
    %33 = vector.broadcast %cst_18 : f32 to vector<1x32xf32>
    %34 = arith.mulf %32, %33 : vector<1x32xf32>
    %35 = vector.broadcast %34 : vector<1x32xf32> to vector<128x32xf32>
    %36 = arith.subf %28, %35 : vector<128x32xf32>
    %37 = vector.broadcast %8 : vector<128x1xf32> to vector<128x32xf32>
    %38 = arith.mulf %36, %37 : vector<128x32xf32>
    %39 = vector.broadcast %8 : vector<128x1xf32> to vector<128x32xf32>
    %40 = arith.mulf %36, %39 : vector<128x32xf32>
    %41 = arith.mulf %38, %40 : vector<128x32xf32>
    %cst_19 = arith.constant dense<0.000000e+00> : vector<32xf32>
    %42 = vector.multi_reduction <add>, %41, %cst_19 [0] : vector<128x32xf32> to vector<32xf32>
    %43 = vector.shape_cast %42 : vector<32xf32> to vector<1x32xf32>
    %cst_20 = arith.constant 0.00892857183 : f32
    %44 = vector.broadcast %cst_20 : f32 to vector<1x32xf32>
    %45 = arith.mulf %43, %44 : vector<1x32xf32>
    %cst_21 = arith.constant 9.99999974E-6 : f32
    %46 = vector.broadcast %cst_21 : f32 to vector<1x32xf32>
    %47 = arith.addf %45, %46 : vector<1x32xf32>
    %48 = math.rsqrt %47 : vector<1x32xf32>
    %49 = vector.broadcast %48 : vector<1x32xf32> to vector<128x32xf32>
    %50 = arith.mulf %36, %49 : vector<128x32xf32>
    %51 = vector.broadcast %14 : vector<1x32xf32> to vector<128x32xf32>
    %52 = arith.mulf %50, %51 : vector<128x32xf32>
    %53 = vector.broadcast %15 : vector<1x32xf32> to vector<128x32xf32>
    %54 = arith.addf %52, %53 : vector<128x32xf32>
    %c0_22 = arith.constant 0 : index
    %c0_23 = arith.constant 0 : index
    %55 = vector.load %arg5[%c0_22, %c0_23] : memref<32x32xf32, #tpu.memory_space<vmem>>, vector<32x32xf32>
    %cst_24 = arith.constant dense<0.000000e+00> : vector<128x32xf32>
    %56 = tpu.matmul %54, %55, %cst_24 {dimension_numbers = #tpu.dot_dimension_numbers<[1], [0], [0], [1], [0, 0, 1, 1], [], []>} : vector<128x32xf32>, vector<32x32xf32>, vector<128x32xf32> -> vector<128x32xf32>
    %57 = vector.broadcast %16 : vector<1x32xf32> to vector<128x32xf32>
    %58 = arith.addf %56, %57 : vector<128x32xf32>
    %cst_25 = arith.constant 2.000000e-01 : f32
    %59 = vector.broadcast %cst_25 : f32 to vector<128x32xf32>
    %60 = arith.mulf %59, %58 : vector<128x32xf32>
    %61 = arith.maximumf %58, %60 : vector<128x32xf32>
    %62 = tpu.transpose %61, [1, 0] : vector<128x32xf32> -> vector<32x128xf32>
    %63 = vector.extract_strided_slice %1 {offsets = [0, 0], sizes = [1, 128], strides = [1, 1]} : vector<16x128xbf16> to vector<1x128xbf16>
    %cst_26 = arith.constant 0.000000e+00 : bf16
    %64 = vector.broadcast %cst_26 : bf16 to vector<1x128xbf16>
    %65 = arith.cmpf ogt, %63, %64 : vector<1x128xbf16>
    %cst_27 = arith.constant 0xFF800000 : f32
    %66 = vector.shape_cast %65 : vector<1x128xi1> to vector<1x128xi1>
    %67 = vector.broadcast %66 : vector<1x128xi1> to vector<32x128xi1>
    %68 = vector.broadcast %cst_27 : f32 to vector<32x128xf32>
    %69 = arith.select %67, %62, %68 : vector<32x128xi1>, vector<32x128xf32>
    %cst_28 = arith.constant dense<0xFF800000> : vector<32xf32>
    %70 = vector.multi_reduction <maximumf>, %69, %cst_28 [1] : vector<32x128xf32> to vector<32xf32>
    %71 = vector.shape_cast %70 : vector<32xf32> to vector<32x1xf32>
    %72 = vector.extract_strided_slice %1 {offsets = [1, 0], sizes = [1, 128], strides = [1, 1]} : vector<16x128xbf16> to vector<1x128xbf16>
    %cst_29 = arith.constant 0.000000e+00 : bf16
    %73 = vector.broadcast %cst_29 : bf16 to vector<1x128xbf16>
    %74 = arith.cmpf ogt, %72, %73 : vector<1x128xbf16>
    %cst_30 = arith.constant 0xFF800000 : f32
    %75 = vector.shape_cast %74 : vector<1x128xi1> to vector<1x128xi1>
    %76 = vector.broadcast %75 : vector<1x128xi1> to vector<32x128xi1>
    %77 = vector.broadcast %cst_30 : f32 to vector<32x128xf32>
    %78 = arith.select %76, %62, %77 : vector<32x128xi1>, vector<32x128xf32>
    %cst_31 = arith.constant dense<0xFF800000> : vector<32xf32>
    %79 = vector.multi_reduction <maximumf>, %78, %cst_31 [1] : vector<32x128xf32> to vector<32xf32>
    %80 = vector.shape_cast %79 : vector<32xf32> to vector<32x1xf32>
    %81 = vector.extract_strided_slice %1 {offsets = [2, 0], sizes = [1, 128], strides = [1, 1]} : vector<16x128xbf16> to vector<1x128xbf16>
    %cst_32 = arith.constant 0.000000e+00 : bf16
    %82 = vector.broadcast %cst_32 : bf16 to vector<1x128xbf16>
    %83 = arith.cmpf ogt, %81, %82 : vector<1x128xbf16>
    %cst_33 = arith.constant 0xFF800000 : f32
    %84 = vector.shape_cast %83 : vector<1x128xi1> to vector<1x128xi1>
    %85 = vector.broadcast %84 : vector<1x128xi1> to vector<32x128xi1>
    %86 = vector.broadcast %cst_33 : f32 to vector<32x128xf32>
    %87 = arith.select %85, %62, %86 : vector<32x128xi1>, vector<32x128xf32>
    %cst_34 = arith.constant dense<0xFF800000> : vector<32xf32>
    %88 = vector.multi_reduction <maximumf>, %87, %cst_34 [1] : vector<32x128xf32> to vector<32xf32>
    %89 = vector.shape_cast %88 : vector<32xf32> to vector<32x1xf32>
    %90 = vector.extract_strided_slice %1 {offsets = [3, 0], sizes = [1, 128], strides = [1, 1]} : vector<16x128xbf16> to vector<1x128xbf16>
    %cst_35 = arith.constant 0.000000e+00 : bf16
    %91 = vector.broadcast %cst_35 : bf16 to vector<1x128xbf16>
    %92 = arith.cmpf ogt, %90, %91 : vector<1x128xbf16>
    %cst_36 = arith.constant 0xFF800000 : f32
    %93 = vector.shape_cast %92 : vector<1x128xi1> to vector<1x128xi1>
    %94 = vector.broadcast %93 : vector<1x128xi1> to vector<32x128xi1>
    %95 = vector.broadcast %cst_36 : f32 to vector<32x128xf32>
    %96 = arith.select %94, %62, %95 : vector<32x128xi1>, vector<32x128xf32>
    %cst_37 = arith.constant dense<0xFF800000> : vector<32xf32>
    %97 = vector.multi_reduction <maximumf>, %96, %cst_37 [1] : vector<32x128xf32> to vector<32xf32>
    %98 = vector.shape_cast %97 : vector<32xf32> to vector<32x1xf32>
    %99 = vector.extract_strided_slice %1 {offsets = [4, 0], sizes = [1, 128], strides = [1, 1]} : vector<16x128xbf16> to vector<1x128xbf16>
    %cst_38 = arith.constant 0.000000e+00 : bf16
    %100 = vector.broadcast %cst_38 : bf16 to vector<1x128xbf16>
    %101 = arith.cmpf ogt, %99, %100 : vector<1x128xbf16>
    %cst_39 = arith.constant 0xFF800000 : f32
    %102 = vector.shape_cast %101 : vector<1x128xi1> to vector<1x128xi1>
    %103 = vector.broadcast %102 : vector<1x128xi1> to vector<32x128xi1>
    %104 = vector.broadcast %cst_39 : f32 to vector<32x128xf32>
    %105 = arith.select %103, %62, %104 : vector<32x128xi1>, vector<32x128xf32>
    %cst_40 = arith.constant dense<0xFF800000> : vector<32xf32>
    %106 = vector.multi_reduction <maximumf>, %105, %cst_40 [1] : vector<32x128xf32> to vector<32xf32>
    %107 = vector.shape_cast %106 : vector<32xf32> to vector<32x1xf32>
    %108 = vector.extract_strided_slice %1 {offsets = [5, 0], sizes = [1, 128], strides = [1, 1]} : vector<16x128xbf16> to vector<1x128xbf16>
    %cst_41 = arith.constant 0.000000e+00 : bf16
    %109 = vector.broadcast %cst_41 : bf16 to vector<1x128xbf16>
    %110 = arith.cmpf ogt, %108, %109 : vector<1x128xbf16>
    %cst_42 = arith.constant 0xFF800000 : f32
    %111 = vector.shape_cast %110 : vector<1x128xi1> to vector<1x128xi1>
    %112 = vector.broadcast %111 : vector<1x128xi1> to vector<32x128xi1>
    %113 = vector.broadcast %cst_42 : f32 to vector<32x128xf32>
    %114 = arith.select %112, %62, %113 : vector<32x128xi1>, vector<32x128xf32>
    %cst_43 = arith.constant dense<0xFF800000> : vector<32xf32>
    %115 = vector.multi_reduction <maximumf>, %114, %cst_43 [1] : vector<32x128xf32> to vector<32xf32>
    %116 = vector.shape_cast %115 : vector<32xf32> to vector<32x1xf32>
    %117 = vector.extract_strided_slice %1 {offsets = [6, 0], sizes = [1, 128], strides = [1, 1]} : vector<16x128xbf16> to vector<1x128xbf16>
    %cst_44 = arith.constant 0.000000e+00 : bf16
    %118 = vector.broadcast %cst_44 : bf16 to vector<1x128xbf16>
    %119 = arith.cmpf ogt, %117, %118 : vector<1x128xbf16>
    %cst_45 = arith.constant 0xFF800000 : f32
    %120 = vector.shape_cast %119 : vector<1x128xi1> to vector<1x128xi1>
    %121 = vector.broadcast %120 : vector<1x128xi1> to vector<32x128xi1>
    %122 = vector.broadcast %cst_45 : f32 to vector<32x128xf32>
    %123 = arith.select %121, %62, %122 : vector<32x128xi1>, vector<32x128xf32>
    %cst_46 = arith.constant dense<0xFF800000> : vector<32xf32>
    %124 = vector.multi_reduction <maximumf>, %123, %cst_46 [1] : vector<32x128xf32> to vector<32xf32>
    %125 = vector.shape_cast %124 : vector<32xf32> to vector<32x1xf32>
    %126 = vector.extract_strided_slice %1 {offsets = [7, 0], sizes = [1, 128], strides = [1, 1]} : vector<16x128xbf16> to vector<1x128xbf16>
    %cst_47 = arith.constant 0.000000e+00 : bf16
    %127 = vector.broadcast %cst_47 : bf16 to vector<1x128xbf16>
    %128 = arith.cmpf ogt, %126, %127 : vector<1x128xbf16>
    %cst_48 = arith.constant 0xFF800000 : f32
    %129 = vector.shape_cast %128 : vector<1x128xi1> to vector<1x128xi1>
    %130 = vector.broadcast %129 : vector<1x128xi1> to vector<32x128xi1>
    %131 = vector.broadcast %cst_48 : f32 to vector<32x128xf32>
    %132 = arith.select %130, %62, %131 : vector<32x128xi1>, vector<32x128xf32>
    %cst_49 = arith.constant dense<0xFF800000> : vector<32xf32>
    %133 = vector.multi_reduction <maximumf>, %132, %cst_49 [1] : vector<32x128xf32> to vector<32xf32>
    %134 = vector.shape_cast %133 : vector<32xf32> to vector<32x1xf32>
    %135 = vector.extract_strided_slice %1 {offsets = [8, 0], sizes = [1, 128], strides = [1, 1]} : vector<16x128xbf16> to vector<1x128xbf16>
    %cst_50 = arith.constant 0.000000e+00 : bf16
    %136 = vector.broadcast %cst_50 : bf16 to vector<1x128xbf16>
    %137 = arith.cmpf ogt, %135, %136 : vector<1x128xbf16>
    %cst_51 = arith.constant 0xFF800000 : f32
    %138 = vector.shape_cast %137 : vector<1x128xi1> to vector<1x128xi1>
    %139 = vector.broadcast %138 : vector<1x128xi1> to vector<32x128xi1>
    %140 = vector.broadcast %cst_51 : f32 to vector<32x128xf32>
    %141 = arith.select %139, %62, %140 : vector<32x128xi1>, vector<32x128xf32>
    %cst_52 = arith.constant dense<0xFF800000> : vector<32xf32>
    %142 = vector.multi_reduction <maximumf>, %141, %cst_52 [1] : vector<32x128xf32> to vector<32xf32>
    %143 = vector.shape_cast %142 : vector<32xf32> to vector<32x1xf32>
    %144 = vector.extract_strided_slice %1 {offsets = [9, 0], sizes = [1, 128], strides = [1, 1]} : vector<16x128xbf16> to vector<1x128xbf16>
    %cst_53 = arith.constant 0.000000e+00 : bf16
    %145 = vector.broadcast %cst_53 : bf16 to vector<1x128xbf16>
    %146 = arith.cmpf ogt, %144, %145 : vector<1x128xbf16>
    %cst_54 = arith.constant 0xFF800000 : f32
    %147 = vector.shape_cast %146 : vector<1x128xi1> to vector<1x128xi1>
    %148 = vector.broadcast %147 : vector<1x128xi1> to vector<32x128xi1>
    %149 = vector.broadcast %cst_54 : f32 to vector<32x128xf32>
    %150 = arith.select %148, %62, %149 : vector<32x128xi1>, vector<32x128xf32>
    %cst_55 = arith.constant dense<0xFF800000> : vector<32xf32>
    %151 = vector.multi_reduction <maximumf>, %150, %cst_55 [1] : vector<32x128xf32> to vector<32xf32>
    %152 = vector.shape_cast %151 : vector<32xf32> to vector<32x1xf32>
    %153 = vector.extract_strided_slice %1 {offsets = [10, 0], sizes = [1, 128], strides = [1, 1]} : vector<16x128xbf16> to vector<1x128xbf16>
    %cst_56 = arith.constant 0.000000e+00 : bf16
    %154 = vector.broadcast %cst_56 : bf16 to vector<1x128xbf16>
    %155 = arith.cmpf ogt, %153, %154 : vector<1x128xbf16>
    %cst_57 = arith.constant 0xFF800000 : f32
    %156 = vector.shape_cast %155 : vector<1x128xi1> to vector<1x128xi1>
    %157 = vector.broadcast %156 : vector<1x128xi1> to vector<32x128xi1>
    %158 = vector.broadcast %cst_57 : f32 to vector<32x128xf32>
    %159 = arith.select %157, %62, %158 : vector<32x128xi1>, vector<32x128xf32>
    %cst_58 = arith.constant dense<0xFF800000> : vector<32xf32>
    %160 = vector.multi_reduction <maximumf>, %159, %cst_58 [1] : vector<32x128xf32> to vector<32xf32>
    %161 = vector.shape_cast %160 : vector<32xf32> to vector<32x1xf32>
    %162 = vector.extract_strided_slice %1 {offsets = [11, 0], sizes = [1, 128], strides = [1, 1]} : vector<16x128xbf16> to vector<1x128xbf16>
    %cst_59 = arith.constant 0.000000e+00 : bf16
    %163 = vector.broadcast %cst_59 : bf16 to vector<1x128xbf16>
    %164 = arith.cmpf ogt, %162, %163 : vector<1x128xbf16>
    %cst_60 = arith.constant 0xFF800000 : f32
    %165 = vector.shape_cast %164 : vector<1x128xi1> to vector<1x128xi1>
    %166 = vector.broadcast %165 : vector<1x128xi1> to vector<32x128xi1>
    %167 = vector.broadcast %cst_60 : f32 to vector<32x128xf32>
    %168 = arith.select %166, %62, %167 : vector<32x128xi1>, vector<32x128xf32>
    %cst_61 = arith.constant dense<0xFF800000> : vector<32xf32>
    %169 = vector.multi_reduction <maximumf>, %168, %cst_61 [1] : vector<32x128xf32> to vector<32xf32>
    %170 = vector.shape_cast %169 : vector<32xf32> to vector<32x1xf32>
    %171 = vector.extract_strided_slice %1 {offsets = [12, 0], sizes = [1, 128], strides = [1, 1]} : vector<16x128xbf16> to vector<1x128xbf16>
    %cst_62 = arith.constant 0.000000e+00 : bf16
    %172 = vector.broadcast %cst_62 : bf16 to vector<1x128xbf16>
    %173 = arith.cmpf ogt, %171, %172 : vector<1x128xbf16>
    %cst_63 = arith.constant 0xFF800000 : f32
    %174 = vector.shape_cast %173 : vector<1x128xi1> to vector<1x128xi1>
    %175 = vector.broadcast %174 : vector<1x128xi1> to vector<32x128xi1>
    %176 = vector.broadcast %cst_63 : f32 to vector<32x128xf32>
    %177 = arith.select %175, %62, %176 : vector<32x128xi1>, vector<32x128xf32>
    %cst_64 = arith.constant dense<0xFF800000> : vector<32xf32>
    %178 = vector.multi_reduction <maximumf>, %177, %cst_64 [1] : vector<32x128xf32> to vector<32xf32>
    %179 = vector.shape_cast %178 : vector<32xf32> to vector<32x1xf32>
    %180 = vector.extract_strided_slice %1 {offsets = [13, 0], sizes = [1, 128], strides = [1, 1]} : vector<16x128xbf16> to vector<1x128xbf16>
    %cst_65 = arith.constant 0.000000e+00 : bf16
    %181 = vector.broadcast %cst_65 : bf16 to vector<1x128xbf16>
    %182 = arith.cmpf ogt, %180, %181 : vector<1x128xbf16>
    %cst_66 = arith.constant 0xFF800000 : f32
    %183 = vector.shape_cast %182 : vector<1x128xi1> to vector<1x128xi1>
    %184 = vector.broadcast %183 : vector<1x128xi1> to vector<32x128xi1>
    %185 = vector.broadcast %cst_66 : f32 to vector<32x128xf32>
    %186 = arith.select %184, %62, %185 : vector<32x128xi1>, vector<32x128xf32>
    %cst_67 = arith.constant dense<0xFF800000> : vector<32xf32>
    %187 = vector.multi_reduction <maximumf>, %186, %cst_67 [1] : vector<32x128xf32> to vector<32xf32>
    %188 = vector.shape_cast %187 : vector<32xf32> to vector<32x1xf32>
    %189 = vector.extract_strided_slice %1 {offsets = [14, 0], sizes = [1, 128], strides = [1, 1]} : vector<16x128xbf16> to vector<1x128xbf16>
    %cst_68 = arith.constant 0.000000e+00 : bf16
    %190 = vector.broadcast %cst_68 : bf16 to vector<1x128xbf16>
    %191 = arith.cmpf ogt, %189, %190 : vector<1x128xbf16>
    %cst_69 = arith.constant 0xFF800000 : f32
    %192 = vector.shape_cast %191 : vector<1x128xi1> to vector<1x128xi1>
    %193 = vector.broadcast %192 : vector<1x128xi1> to vector<32x128xi1>
    %194 = vector.broadcast %cst_69 : f32 to vector<32x128xf32>
    %195 = arith.select %193, %62, %194 : vector<32x128xi1>, vector<32x128xf32>
    %cst_70 = arith.constant dense<0xFF800000> : vector<32xf32>
    %196 = vector.multi_reduction <maximumf>, %195, %cst_70 [1] : vector<32x128xf32> to vector<32xf32>
    %197 = vector.shape_cast %196 : vector<32xf32> to vector<32x1xf32>
    %198 = vector.extract_strided_slice %1 {offsets = [15, 0], sizes = [1, 128], strides = [1, 1]} : vector<16x128xbf16> to vector<1x128xbf16>
    %cst_71 = arith.constant 0.000000e+00 : bf16
    %199 = vector.broadcast %cst_71 : bf16 to vector<1x128xbf16>
    %200 = arith.cmpf ogt, %198, %199 : vector<1x128xbf16>
    %cst_72 = arith.constant 0xFF800000 : f32
    %201 = vector.shape_cast %200 : vector<1x128xi1> to vector<1x128xi1>
    %202 = vector.broadcast %201 : vector<1x128xi1> to vector<32x128xi1>
    %203 = vector.broadcast %cst_72 : f32 to vector<32x128xf32>
    %204 = arith.select %202, %62, %203 : vector<32x128xi1>, vector<32x128xf32>
    %cst_73 = arith.constant dense<0xFF800000> : vector<32xf32>
    %205 = vector.multi_reduction <maximumf>, %204, %cst_73 [1] : vector<32x128xf32> to vector<32xf32>
    %206 = vector.shape_cast %205 : vector<32xf32> to vector<32x1xf32>
    %207 = tpu.concatenate %71, %80, %89, %98, %107, %116, %125, %134, %143, %152, %161, %170, %179, %188, %197, %206 in 1 : vector<32x1xf32>, vector<32x1xf32>, vector<32x1xf32>, vector<32x1xf32>, vector<32x1xf32>, vector<32x1xf32>, vector<32x1xf32>, vector<32x1xf32>, vector<32x1xf32>, vector<32x1xf32>, vector<32x1xf32>, vector<32x1xf32>, vector<32x1xf32>, vector<32x1xf32>, vector<32x1xf32>, vector<32x1xf32> -> vector<32x16xf32>
    %208 = tpu.transpose %207, [1, 0] : vector<32x16xf32> -> vector<16x32xf32>
    %cst_74 = arith.constant 0.000000e+00 : f32
    %209 = vector.broadcast %cst_74 : f32 to vector<16x1xf32>
    %210 = arith.cmpf ogt, %11, %209 : vector<16x1xf32>
    %cst_75 = arith.constant 0.000000e+00 : f32
    %211 = vector.shape_cast %210 : vector<16x1xi1> to vector<16x1xi1>
    %212 = vector.broadcast %211 : vector<16x1xi1> to vector<16x32xi1>
    %213 = vector.broadcast %cst_75 : f32 to vector<16x32xf32>
    %214 = arith.select %212, %208, %213 : vector<16x32xi1>, vector<16x32xf32>
    %c0_76 = arith.constant 0 : index
    %c0_77 = arith.constant 0 : index
    %215 = vector.load %arg9[%c0_76, %c0_77] : memref<4x32xf32, #tpu.memory_space<vmem>>, vector<1x32xf32>
    %c1_78 = arith.constant 1 : index
    %c0_79 = arith.constant 0 : index
    %216 = vector.load %arg9[%c1_78, %c0_79] : memref<4x32xf32, #tpu.memory_space<vmem>>, vector<1x32xf32>
    %c2_80 = arith.constant 2 : index
    %c0_81 = arith.constant 0 : index
    %217 = vector.load %arg9[%c2_80, %c0_81] : memref<4x32xf32, #tpu.memory_space<vmem>>, vector<1x32xf32>
    %c3_82 = arith.constant 3 : index
    %c0_83 = arith.constant 0 : index
    %218 = vector.load %arg9[%c3_82, %c0_83] : memref<4x32xf32, #tpu.memory_space<vmem>>, vector<1x32xf32>
    %c0_84 = arith.constant 0 : index
    %c0_85 = arith.constant 0 : index
    %219 = vector.load %arg7[%c0_84, %c0_85] : memref<32x64xf32, #tpu.memory_space<vmem>>, vector<32x64xf32>
    %cst_86 = arith.constant dense<0.000000e+00> : vector<16x64xf32>
    %220 = tpu.matmul %214, %219, %cst_86 {dimension_numbers = #tpu.dot_dimension_numbers<[1], [0], [0], [1], [0, 0, 1, 1], [], []>} : vector<16x32xf32>, vector<32x64xf32>, vector<16x64xf32> -> vector<16x64xf32>
    %221 = vector.extract_strided_slice %220 {offsets = [0, 0], sizes = [16, 32], strides = [1, 1]} : vector<16x64xf32> to vector<16x32xf32>
    %222 = vector.extract_strided_slice %220 {offsets = [0, 32], sizes = [16, 32], strides = [1, 1]} : vector<16x64xf32> to vector<16x32xf32>
    %223 = tpu.concatenate %221, %222 in 0 : vector<16x32xf32>, vector<16x32xf32> -> vector<32x32xf32>
    %224 = arith.truncf %223 : vector<32x32xf32> to vector<32x32xbf16>
    %cst_87 = arith.constant dense<0.000000e+00> : vector<128x32xf32>
    %225 = tpu.matmul %0, %224, %cst_87 {dimension_numbers = #tpu.dot_dimension_numbers<[1], [0], [0], [1], [0, 0, 1, 1], [], []>} : vector<128x32xbf16>, vector<32x32xbf16>, vector<128x32xf32> -> vector<128x32xf32>
    %226 = vector.broadcast %215 : vector<1x32xf32> to vector<128x32xf32>
    %227 = arith.addf %225, %226 : vector<128x32xf32>
    %cst_88 = arith.constant 2.000000e-01 : f32
    %228 = vector.broadcast %cst_88 : f32 to vector<128x32xf32>
    %229 = arith.mulf %228, %227 : vector<128x32xf32>
    %230 = arith.maximumf %227, %229 : vector<128x32xf32>
    %231 = vector.broadcast %8 : vector<128x1xf32> to vector<128x32xf32>
    %232 = arith.mulf %230, %231 : vector<128x32xf32>
    %cst_89 = arith.constant dense<0.000000e+00> : vector<32xf32>
    %233 = vector.multi_reduction <add>, %232, %cst_89 [0] : vector<128x32xf32> to vector<32xf32>
    %234 = vector.shape_cast %233 : vector<32xf32> to vector<1x32xf32>
    %cst_90 = arith.constant 0.00892857183 : f32
    %235 = vector.broadcast %cst_90 : f32 to vector<1x32xf32>
    %236 = arith.mulf %234, %235 : vector<1x32xf32>
    %237 = vector.broadcast %236 : vector<1x32xf32> to vector<128x32xf32>
    %238 = arith.subf %230, %237 : vector<128x32xf32>
    %239 = vector.broadcast %8 : vector<128x1xf32> to vector<128x32xf32>
    %240 = arith.mulf %238, %239 : vector<128x32xf32>
    %241 = vector.broadcast %8 : vector<128x1xf32> to vector<128x32xf32>
    %242 = arith.mulf %238, %241 : vector<128x32xf32>
    %243 = arith.mulf %240, %242 : vector<128x32xf32>
    %cst_91 = arith.constant dense<0.000000e+00> : vector<32xf32>
    %244 = vector.multi_reduction <add>, %243, %cst_91 [0] : vector<128x32xf32> to vector<32xf32>
    %245 = vector.shape_cast %244 : vector<32xf32> to vector<1x32xf32>
    %cst_92 = arith.constant 0.00892857183 : f32
    %246 = vector.broadcast %cst_92 : f32 to vector<1x32xf32>
    %247 = arith.mulf %245, %246 : vector<1x32xf32>
    %cst_93 = arith.constant 9.99999974E-6 : f32
    %248 = vector.broadcast %cst_93 : f32 to vector<1x32xf32>
    %249 = arith.addf %247, %248 : vector<1x32xf32>
    %250 = math.rsqrt %249 : vector<1x32xf32>
    %251 = vector.broadcast %250 : vector<1x32xf32> to vector<128x32xf32>
    %252 = arith.mulf %238, %251 : vector<128x32xf32>
    %253 = vector.broadcast %216 : vector<1x32xf32> to vector<128x32xf32>
    %254 = arith.mulf %252, %253 : vector<128x32xf32>
    %255 = vector.broadcast %217 : vector<1x32xf32> to vector<128x32xf32>
    %256 = arith.addf %254, %255 : vector<128x32xf32>
    %c0_94 = arith.constant 0 : index
    %c0_95 = arith.constant 0 : index
    %257 = vector.load %arg8[%c0_94, %c0_95] : memref<32x32xf32, #tpu.memory_space<vmem>>, vector<32x32xf32>
    %cst_96 = arith.constant dense<0.000000e+00> : vector<128x32xf32>
    %258 = tpu.matmul %256, %257, %cst_96 {dimension_numbers = #tpu.dot_dimension_numbers<[1], [0], [0], [1], [0, 0, 1, 1], [], []>} : vector<128x32xf32>, vector<32x32xf32>, vector<128x32xf32> -> vector<128x32xf32>
    %259 = vector.broadcast %218 : vector<1x32xf32> to vector<128x32xf32>
    %260 = arith.addf %258, %259 : vector<128x32xf32>
    %cst_97 = arith.constant 2.000000e-01 : f32
    %261 = vector.broadcast %cst_97 : f32 to vector<128x32xf32>
    %262 = arith.mulf %261, %260 : vector<128x32xf32>
    %263 = arith.maximumf %260, %262 : vector<128x32xf32>
    %264 = tpu.transpose %263, [1, 0] : vector<128x32xf32> -> vector<32x128xf32>
    %265 = vector.extract_strided_slice %1 {offsets = [0, 0], sizes = [1, 128], strides = [1, 1]} : vector<16x128xbf16> to vector<1x128xbf16>
    %cst_98 = arith.constant 0.000000e+00 : bf16
    %266 = vector.broadcast %cst_98 : bf16 to vector<1x128xbf16>
    %267 = arith.cmpf ogt, %265, %266 : vector<1x128xbf16>
    %cst_99 = arith.constant 0xFF800000 : f32
    %268 = vector.shape_cast %267 : vector<1x128xi1> to vector<1x128xi1>
    %269 = vector.broadcast %268 : vector<1x128xi1> to vector<32x128xi1>
    %270 = vector.broadcast %cst_99 : f32 to vector<32x128xf32>
    %271 = arith.select %269, %264, %270 : vector<32x128xi1>, vector<32x128xf32>
    %cst_100 = arith.constant dense<0xFF800000> : vector<32xf32>
    %272 = vector.multi_reduction <maximumf>, %271, %cst_100 [1] : vector<32x128xf32> to vector<32xf32>
    %273 = vector.shape_cast %272 : vector<32xf32> to vector<32x1xf32>
    %274 = vector.extract_strided_slice %1 {offsets = [1, 0], sizes = [1, 128], strides = [1, 1]} : vector<16x128xbf16> to vector<1x128xbf16>
    %cst_101 = arith.constant 0.000000e+00 : bf16
    %275 = vector.broadcast %cst_101 : bf16 to vector<1x128xbf16>
    %276 = arith.cmpf ogt, %274, %275 : vector<1x128xbf16>
    %cst_102 = arith.constant 0xFF800000 : f32
    %277 = vector.shape_cast %276 : vector<1x128xi1> to vector<1x128xi1>
    %278 = vector.broadcast %277 : vector<1x128xi1> to vector<32x128xi1>
    %279 = vector.broadcast %cst_102 : f32 to vector<32x128xf32>
    %280 = arith.select %278, %264, %279 : vector<32x128xi1>, vector<32x128xf32>
    %cst_103 = arith.constant dense<0xFF800000> : vector<32xf32>
    %281 = vector.multi_reduction <maximumf>, %280, %cst_103 [1] : vector<32x128xf32> to vector<32xf32>
    %282 = vector.shape_cast %281 : vector<32xf32> to vector<32x1xf32>
    %283 = vector.extract_strided_slice %1 {offsets = [2, 0], sizes = [1, 128], strides = [1, 1]} : vector<16x128xbf16> to vector<1x128xbf16>
    %cst_104 = arith.constant 0.000000e+00 : bf16
    %284 = vector.broadcast %cst_104 : bf16 to vector<1x128xbf16>
    %285 = arith.cmpf ogt, %283, %284 : vector<1x128xbf16>
    %cst_105 = arith.constant 0xFF800000 : f32
    %286 = vector.shape_cast %285 : vector<1x128xi1> to vector<1x128xi1>
    %287 = vector.broadcast %286 : vector<1x128xi1> to vector<32x128xi1>
    %288 = vector.broadcast %cst_105 : f32 to vector<32x128xf32>
    %289 = arith.select %287, %264, %288 : vector<32x128xi1>, vector<32x128xf32>
    %cst_106 = arith.constant dense<0xFF800000> : vector<32xf32>
    %290 = vector.multi_reduction <maximumf>, %289, %cst_106 [1] : vector<32x128xf32> to vector<32xf32>
    %291 = vector.shape_cast %290 : vector<32xf32> to vector<32x1xf32>
    %292 = vector.extract_strided_slice %1 {offsets = [3, 0], sizes = [1, 128], strides = [1, 1]} : vector<16x128xbf16> to vector<1x128xbf16>
    %cst_107 = arith.constant 0.000000e+00 : bf16
    %293 = vector.broadcast %cst_107 : bf16 to vector<1x128xbf16>
    %294 = arith.cmpf ogt, %292, %293 : vector<1x128xbf16>
    %cst_108 = arith.constant 0xFF800000 : f32
    %295 = vector.shape_cast %294 : vector<1x128xi1> to vector<1x128xi1>
    %296 = vector.broadcast %295 : vector<1x128xi1> to vector<32x128xi1>
    %297 = vector.broadcast %cst_108 : f32 to vector<32x128xf32>
    %298 = arith.select %296, %264, %297 : vector<32x128xi1>, vector<32x128xf32>
    %cst_109 = arith.constant dense<0xFF800000> : vector<32xf32>
    %299 = vector.multi_reduction <maximumf>, %298, %cst_109 [1] : vector<32x128xf32> to vector<32xf32>
    %300 = vector.shape_cast %299 : vector<32xf32> to vector<32x1xf32>
    %301 = vector.extract_strided_slice %1 {offsets = [4, 0], sizes = [1, 128], strides = [1, 1]} : vector<16x128xbf16> to vector<1x128xbf16>
    %cst_110 = arith.constant 0.000000e+00 : bf16
    %302 = vector.broadcast %cst_110 : bf16 to vector<1x128xbf16>
    %303 = arith.cmpf ogt, %301, %302 : vector<1x128xbf16>
    %cst_111 = arith.constant 0xFF800000 : f32
    %304 = vector.shape_cast %303 : vector<1x128xi1> to vector<1x128xi1>
    %305 = vector.broadcast %304 : vector<1x128xi1> to vector<32x128xi1>
    %306 = vector.broadcast %cst_111 : f32 to vector<32x128xf32>
    %307 = arith.select %305, %264, %306 : vector<32x128xi1>, vector<32x128xf32>
    %cst_112 = arith.constant dense<0xFF800000> : vector<32xf32>
    %308 = vector.multi_reduction <maximumf>, %307, %cst_112 [1] : vector<32x128xf32> to vector<32xf32>
    %309 = vector.shape_cast %308 : vector<32xf32> to vector<32x1xf32>
    %310 = vector.extract_strided_slice %1 {offsets = [5, 0], sizes = [1, 128], strides = [1, 1]} : vector<16x128xbf16> to vector<1x128xbf16>
    %cst_113 = arith.constant 0.000000e+00 : bf16
    %311 = vector.broadcast %cst_113 : bf16 to vector<1x128xbf16>
    %312 = arith.cmpf ogt, %310, %311 : vector<1x128xbf16>
    %cst_114 = arith.constant 0xFF800000 : f32
    %313 = vector.shape_cast %312 : vector<1x128xi1> to vector<1x128xi1>
    %314 = vector.broadcast %313 : vector<1x128xi1> to vector<32x128xi1>
    %315 = vector.broadcast %cst_114 : f32 to vector<32x128xf32>
    %316 = arith.select %314, %264, %315 : vector<32x128xi1>, vector<32x128xf32>
    %cst_115 = arith.constant dense<0xFF800000> : vector<32xf32>
    %317 = vector.multi_reduction <maximumf>, %316, %cst_115 [1] : vector<32x128xf32> to vector<32xf32>
    %318 = vector.shape_cast %317 : vector<32xf32> to vector<32x1xf32>
    %319 = vector.extract_strided_slice %1 {offsets = [6, 0], sizes = [1, 128], strides = [1, 1]} : vector<16x128xbf16> to vector<1x128xbf16>
    %cst_116 = arith.constant 0.000000e+00 : bf16
    %320 = vector.broadcast %cst_116 : bf16 to vector<1x128xbf16>
    %321 = arith.cmpf ogt, %319, %320 : vector<1x128xbf16>
    %cst_117 = arith.constant 0xFF800000 : f32
    %322 = vector.shape_cast %321 : vector<1x128xi1> to vector<1x128xi1>
    %323 = vector.broadcast %322 : vector<1x128xi1> to vector<32x128xi1>
    %324 = vector.broadcast %cst_117 : f32 to vector<32x128xf32>
    %325 = arith.select %323, %264, %324 : vector<32x128xi1>, vector<32x128xf32>
    %cst_118 = arith.constant dense<0xFF800000> : vector<32xf32>
    %326 = vector.multi_reduction <maximumf>, %325, %cst_118 [1] : vector<32x128xf32> to vector<32xf32>
    %327 = vector.shape_cast %326 : vector<32xf32> to vector<32x1xf32>
    %328 = vector.extract_strided_slice %1 {offsets = [7, 0], sizes = [1, 128], strides = [1, 1]} : vector<16x128xbf16> to vector<1x128xbf16>
    %cst_119 = arith.constant 0.000000e+00 : bf16
    %329 = vector.broadcast %cst_119 : bf16 to vector<1x128xbf16>
    %330 = arith.cmpf ogt, %328, %329 : vector<1x128xbf16>
    %cst_120 = arith.constant 0xFF800000 : f32
    %331 = vector.shape_cast %330 : vector<1x128xi1> to vector<1x128xi1>
    %332 = vector.broadcast %331 : vector<1x128xi1> to vector<32x128xi1>
    %333 = vector.broadcast %cst_120 : f32 to vector<32x128xf32>
    %334 = arith.select %332, %264, %333 : vector<32x128xi1>, vector<32x128xf32>
    %cst_121 = arith.constant dense<0xFF800000> : vector<32xf32>
    %335 = vector.multi_reduction <maximumf>, %334, %cst_121 [1] : vector<32x128xf32> to vector<32xf32>
    %336 = vector.shape_cast %335 : vector<32xf32> to vector<32x1xf32>
    %337 = vector.extract_strided_slice %1 {offsets = [8, 0], sizes = [1, 128], strides = [1, 1]} : vector<16x128xbf16> to vector<1x128xbf16>
    %cst_122 = arith.constant 0.000000e+00 : bf16
    %338 = vector.broadcast %cst_122 : bf16 to vector<1x128xbf16>
    %339 = arith.cmpf ogt, %337, %338 : vector<1x128xbf16>
    %cst_123 = arith.constant 0xFF800000 : f32
    %340 = vector.shape_cast %339 : vector<1x128xi1> to vector<1x128xi1>
    %341 = vector.broadcast %340 : vector<1x128xi1> to vector<32x128xi1>
    %342 = vector.broadcast %cst_123 : f32 to vector<32x128xf32>
    %343 = arith.select %341, %264, %342 : vector<32x128xi1>, vector<32x128xf32>
    %cst_124 = arith.constant dense<0xFF800000> : vector<32xf32>
    %344 = vector.multi_reduction <maximumf>, %343, %cst_124 [1] : vector<32x128xf32> to vector<32xf32>
    %345 = vector.shape_cast %344 : vector<32xf32> to vector<32x1xf32>
    %346 = vector.extract_strided_slice %1 {offsets = [9, 0], sizes = [1, 128], strides = [1, 1]} : vector<16x128xbf16> to vector<1x128xbf16>
    %cst_125 = arith.constant 0.000000e+00 : bf16
    %347 = vector.broadcast %cst_125 : bf16 to vector<1x128xbf16>
    %348 = arith.cmpf ogt, %346, %347 : vector<1x128xbf16>
    %cst_126 = arith.constant 0xFF800000 : f32
    %349 = vector.shape_cast %348 : vector<1x128xi1> to vector<1x128xi1>
    %350 = vector.broadcast %349 : vector<1x128xi1> to vector<32x128xi1>
    %351 = vector.broadcast %cst_126 : f32 to vector<32x128xf32>
    %352 = arith.select %350, %264, %351 : vector<32x128xi1>, vector<32x128xf32>
    %cst_127 = arith.constant dense<0xFF800000> : vector<32xf32>
    %353 = vector.multi_reduction <maximumf>, %352, %cst_127 [1] : vector<32x128xf32> to vector<32xf32>
    %354 = vector.shape_cast %353 : vector<32xf32> to vector<32x1xf32>
    %355 = vector.extract_strided_slice %1 {offsets = [10, 0], sizes = [1, 128], strides = [1, 1]} : vector<16x128xbf16> to vector<1x128xbf16>
    %cst_128 = arith.constant 0.000000e+00 : bf16
    %356 = vector.broadcast %cst_128 : bf16 to vector<1x128xbf16>
    %357 = arith.cmpf ogt, %355, %356 : vector<1x128xbf16>
    %cst_129 = arith.constant 0xFF800000 : f32
    %358 = vector.shape_cast %357 : vector<1x128xi1> to vector<1x128xi1>
    %359 = vector.broadcast %358 : vector<1x128xi1> to vector<32x128xi1>
    %360 = vector.broadcast %cst_129 : f32 to vector<32x128xf32>
    %361 = arith.select %359, %264, %360 : vector<32x128xi1>, vector<32x128xf32>
    %cst_130 = arith.constant dense<0xFF800000> : vector<32xf32>
    %362 = vector.multi_reduction <maximumf>, %361, %cst_130 [1] : vector<32x128xf32> to vector<32xf32>
    %363 = vector.shape_cast %362 : vector<32xf32> to vector<32x1xf32>
    %364 = vector.extract_strided_slice %1 {offsets = [11, 0], sizes = [1, 128], strides = [1, 1]} : vector<16x128xbf16> to vector<1x128xbf16>
    %cst_131 = arith.constant 0.000000e+00 : bf16
    %365 = vector.broadcast %cst_131 : bf16 to vector<1x128xbf16>
    %366 = arith.cmpf ogt, %364, %365 : vector<1x128xbf16>
    %cst_132 = arith.constant 0xFF800000 : f32
    %367 = vector.shape_cast %366 : vector<1x128xi1> to vector<1x128xi1>
    %368 = vector.broadcast %367 : vector<1x128xi1> to vector<32x128xi1>
    %369 = vector.broadcast %cst_132 : f32 to vector<32x128xf32>
    %370 = arith.select %368, %264, %369 : vector<32x128xi1>, vector<32x128xf32>
    %cst_133 = arith.constant dense<0xFF800000> : vector<32xf32>
    %371 = vector.multi_reduction <maximumf>, %370, %cst_133 [1] : vector<32x128xf32> to vector<32xf32>
    %372 = vector.shape_cast %371 : vector<32xf32> to vector<32x1xf32>
    %373 = vector.extract_strided_slice %1 {offsets = [12, 0], sizes = [1, 128], strides = [1, 1]} : vector<16x128xbf16> to vector<1x128xbf16>
    %cst_134 = arith.constant 0.000000e+00 : bf16
    %374 = vector.broadcast %cst_134 : bf16 to vector<1x128xbf16>
    %375 = arith.cmpf ogt, %373, %374 : vector<1x128xbf16>
    %cst_135 = arith.constant 0xFF800000 : f32
    %376 = vector.shape_cast %375 : vector<1x128xi1> to vector<1x128xi1>
    %377 = vector.broadcast %376 : vector<1x128xi1> to vector<32x128xi1>
    %378 = vector.broadcast %cst_135 : f32 to vector<32x128xf32>
    %379 = arith.select %377, %264, %378 : vector<32x128xi1>, vector<32x128xf32>
    %cst_136 = arith.constant dense<0xFF800000> : vector<32xf32>
    %380 = vector.multi_reduction <maximumf>, %379, %cst_136 [1] : vector<32x128xf32> to vector<32xf32>
    %381 = vector.shape_cast %380 : vector<32xf32> to vector<32x1xf32>
    %382 = vector.extract_strided_slice %1 {offsets = [13, 0], sizes = [1, 128], strides = [1, 1]} : vector<16x128xbf16> to vector<1x128xbf16>
    %cst_137 = arith.constant 0.000000e+00 : bf16
    %383 = vector.broadcast %cst_137 : bf16 to vector<1x128xbf16>
    %384 = arith.cmpf ogt, %382, %383 : vector<1x128xbf16>
    %cst_138 = arith.constant 0xFF800000 : f32
    %385 = vector.shape_cast %384 : vector<1x128xi1> to vector<1x128xi1>
    %386 = vector.broadcast %385 : vector<1x128xi1> to vector<32x128xi1>
    %387 = vector.broadcast %cst_138 : f32 to vector<32x128xf32>
    %388 = arith.select %386, %264, %387 : vector<32x128xi1>, vector<32x128xf32>
    %cst_139 = arith.constant dense<0xFF800000> : vector<32xf32>
    %389 = vector.multi_reduction <maximumf>, %388, %cst_139 [1] : vector<32x128xf32> to vector<32xf32>
    %390 = vector.shape_cast %389 : vector<32xf32> to vector<32x1xf32>
    %391 = vector.extract_strided_slice %1 {offsets = [14, 0], sizes = [1, 128], strides = [1, 1]} : vector<16x128xbf16> to vector<1x128xbf16>
    %cst_140 = arith.constant 0.000000e+00 : bf16
    %392 = vector.broadcast %cst_140 : bf16 to vector<1x128xbf16>
    %393 = arith.cmpf ogt, %391, %392 : vector<1x128xbf16>
    %cst_141 = arith.constant 0xFF800000 : f32
    %394 = vector.shape_cast %393 : vector<1x128xi1> to vector<1x128xi1>
    %395 = vector.broadcast %394 : vector<1x128xi1> to vector<32x128xi1>
    %396 = vector.broadcast %cst_141 : f32 to vector<32x128xf32>
    %397 = arith.select %395, %264, %396 : vector<32x128xi1>, vector<32x128xf32>
    %cst_142 = arith.constant dense<0xFF800000> : vector<32xf32>
    %398 = vector.multi_reduction <maximumf>, %397, %cst_142 [1] : vector<32x128xf32> to vector<32xf32>
    %399 = vector.shape_cast %398 : vector<32xf32> to vector<32x1xf32>
    %400 = vector.extract_strided_slice %1 {offsets = [15, 0], sizes = [1, 128], strides = [1, 1]} : vector<16x128xbf16> to vector<1x128xbf16>
    %cst_143 = arith.constant 0.000000e+00 : bf16
    %401 = vector.broadcast %cst_143 : bf16 to vector<1x128xbf16>
    %402 = arith.cmpf ogt, %400, %401 : vector<1x128xbf16>
    %cst_144 = arith.constant 0xFF800000 : f32
    %403 = vector.shape_cast %402 : vector<1x128xi1> to vector<1x128xi1>
    %404 = vector.broadcast %403 : vector<1x128xi1> to vector<32x128xi1>
    %405 = vector.broadcast %cst_144 : f32 to vector<32x128xf32>
    %406 = arith.select %404, %264, %405 : vector<32x128xi1>, vector<32x128xf32>
    %cst_145 = arith.constant dense<0xFF800000> : vector<32xf32>
    %407 = vector.multi_reduction <maximumf>, %406, %cst_145 [1] : vector<32x128xf32> to vector<32xf32>
    %408 = vector.shape_cast %407 : vector<32xf32> to vector<32x1xf32>
    %409 = tpu.concatenate %273, %282, %291, %300, %309, %318, %327, %336, %345, %354, %363, %372, %381, %390, %399, %408 in 1 : vector<32x1xf32>, vector<32x1xf32>, vector<32x1xf32>, vector<32x1xf32>, vector<32x1xf32>, vector<32x1xf32>, vector<32x1xf32>, vector<32x1xf32>, vector<32x1xf32>, vector<32x1xf32>, vector<32x1xf32>, vector<32x1xf32>, vector<32x1xf32>, vector<32x1xf32>, vector<32x1xf32>, vector<32x1xf32> -> vector<32x16xf32>
    %410 = tpu.transpose %409, [1, 0] : vector<32x16xf32> -> vector<16x32xf32>
    %cst_146 = arith.constant 0.000000e+00 : f32
    %411 = vector.broadcast %cst_146 : f32 to vector<16x1xf32>
    %412 = arith.cmpf ogt, %11, %411 : vector<16x1xf32>
    %cst_147 = arith.constant 0.000000e+00 : f32
    %413 = vector.shape_cast %412 : vector<16x1xi1> to vector<16x1xi1>
    %414 = vector.broadcast %413 : vector<16x1xi1> to vector<16x32xi1>
    %415 = vector.broadcast %cst_147 : f32 to vector<16x32xf32>
    %416 = arith.select %414, %410, %415 : vector<16x32xi1>, vector<16x32xf32>
    %c0_148 = arith.constant 0 : index
    %c0_149 = arith.constant 0 : index
    %417 = vector.load %arg3[%c0_148, %c0_149] : memref<2x16xbf16, #tpu.memory_space<vmem>>, vector<2x16xbf16>
    %418 = arith.extf %417 : vector<2x16xbf16> to vector<2x16xf32>
    %cst_150 = arith.constant dense<0.000000e+00> : vector<2x32xf32>
    %419 = tpu.matmul %418, %416, %cst_150 {dimension_numbers = #tpu.dot_dimension_numbers<[1], [0], [0], [1], [0, 0, 1, 1], [], []>} : vector<2x16xf32>, vector<16x32xf32>, vector<2x32xf32> -> vector<2x32xf32>
    %c0_151 = arith.constant 0 : index
    %c0_152 = arith.constant 0 : index
    %420 = vector.load %arg11[%c0_151, %c0_152] : memref<3x32xf32, #tpu.memory_space<vmem>>, vector<1x32xf32>
    %c1_153 = arith.constant 1 : index
    %c0_154 = arith.constant 0 : index
    %421 = vector.load %arg11[%c1_153, %c0_154] : memref<3x32xf32, #tpu.memory_space<vmem>>, vector<1x32xf32>
    %c2_155 = arith.constant 2 : index
    %c0_156 = arith.constant 0 : index
    %422 = vector.load %arg11[%c2_155, %c0_156] : memref<3x32xf32, #tpu.memory_space<vmem>>, vector<1x32xf32>
    %cst_157 = arith.constant dense<0.000000e+00> : vector<32xf32>
    %423 = vector.multi_reduction <add>, %419, %cst_157 [0] : vector<2x32xf32> to vector<32xf32>
    %424 = vector.shape_cast %423 : vector<32xf32> to vector<1x32xf32>
    %cst_158 = arith.constant 5.000000e-01 : f32
    %425 = vector.broadcast %cst_158 : f32 to vector<1x32xf32>
    %426 = arith.mulf %424, %425 : vector<1x32xf32>
    %427 = vector.broadcast %426 : vector<1x32xf32> to vector<2x32xf32>
    %428 = arith.subf %419, %427 : vector<2x32xf32>
    %429 = arith.mulf %428, %428 : vector<2x32xf32>
    %cst_159 = arith.constant dense<0.000000e+00> : vector<32xf32>
    %430 = vector.multi_reduction <add>, %429, %cst_159 [0] : vector<2x32xf32> to vector<32xf32>
    %431 = vector.shape_cast %430 : vector<32xf32> to vector<1x32xf32>
    %cst_160 = arith.constant 5.000000e-01 : f32
    %432 = vector.broadcast %cst_160 : f32 to vector<1x32xf32>
    %433 = arith.mulf %431, %432 : vector<1x32xf32>
    %cst_161 = arith.constant 9.99999974E-6 : f32
    %434 = vector.broadcast %cst_161 : f32 to vector<1x32xf32>
    %435 = arith.addf %433, %434 : vector<1x32xf32>
    %436 = math.rsqrt %435 : vector<1x32xf32>
    %437 = vector.broadcast %436 : vector<1x32xf32> to vector<2x32xf32>
    %438 = arith.mulf %428, %437 : vector<2x32xf32>
    %439 = vector.broadcast %420 : vector<1x32xf32> to vector<2x32xf32>
    %440 = arith.mulf %438, %439 : vector<2x32xf32>
    %441 = vector.broadcast %421 : vector<1x32xf32> to vector<2x32xf32>
    %442 = arith.addf %440, %441 : vector<2x32xf32>
    %c0_162 = arith.constant 0 : index
    %c0_163 = arith.constant 0 : index
    %443 = vector.load %arg10[%c0_162, %c0_163] : memref<32x32xf32, #tpu.memory_space<vmem>>, vector<32x32xf32>
    %cst_164 = arith.constant dense<0.000000e+00> : vector<2x32xf32>
    %444 = tpu.matmul %442, %443, %cst_164 {dimension_numbers = #tpu.dot_dimension_numbers<[1], [0], [0], [1], [0, 0, 1, 1], [], []>} : vector<2x32xf32>, vector<32x32xf32>, vector<2x32xf32> -> vector<2x32xf32>
    %445 = vector.broadcast %422 : vector<1x32xf32> to vector<2x32xf32>
    %446 = arith.addf %444, %445 : vector<2x32xf32>
    %c0_165 = arith.constant 0 : index
    %c0_166 = arith.constant 0 : index
    %447 = vector.load %arg12[%c0_165, %c0_166] : memref<32x32xf32, #tpu.memory_space<vmem>>, vector<32x32xf32>
    %cst_167 = arith.constant dense<0.000000e+00> : vector<2x32xf32>
    %448 = tpu.matmul %446, %447, %cst_167 {dimension_numbers = #tpu.dot_dimension_numbers<[1], [0], [0], [1], [0, 0, 1, 1], [], []>} : vector<2x32xf32>, vector<32x32xf32>, vector<2x32xf32> -> vector<2x32xf32>
    %c0_168 = arith.constant 0 : index
    %c0_169 = arith.constant 0 : index
    %449 = vector.load %arg13[%c0_168, %c0_169] : memref<1x32xf32, #tpu.memory_space<vmem>>, vector<1x32xf32>
    %450 = vector.broadcast %449 : vector<1x32xf32> to vector<2x32xf32>
    %451 = arith.addf %448, %450 : vector<2x32xf32>
    %452 = vector.extract_strided_slice %451 {offsets = [0, 0], sizes = [2, 16], strides = [1, 1]} : vector<2x32xf32> to vector<2x16xf32>
    %453 = vector.extract_strided_slice %451 {offsets = [0, 16], sizes = [2, 16], strides = [1, 1]} : vector<2x32xf32> to vector<2x16xf32>
    %c0_170 = arith.constant 0 : index
    %c0_171 = arith.constant 0 : index
    %454 = vector.load %arg14[%c0_170, %c0_171] : memref<2x16xf32, #tpu.memory_space<vmem>>, vector<2x16xf32>
    %cst_172 = arith.constant 5.000000e-01 : f32
    %455 = vector.broadcast %cst_172 : f32 to vector<2x16xf32>
    %456 = arith.mulf %455, %453 : vector<2x16xf32>
    %457 = math.exp %456 : vector<2x16xf32>
    %458 = arith.mulf %454, %457 : vector<2x16xf32>
    %459 = arith.addf %458, %452 : vector<2x16xf32>
    %c0_173 = arith.constant 0 : index
    %c0_174 = arith.constant 0 : index
    %460 = vector.load %arg15[%c0_173, %c0_174] : memref<16x32xf32, #tpu.memory_space<vmem>>, vector<16x32xf32>
    %cst_175 = arith.constant dense<0.000000e+00> : vector<2x32xf32>
    %461 = tpu.matmul %459, %460, %cst_175 {dimension_numbers = #tpu.dot_dimension_numbers<[1], [0], [0], [1], [0, 0, 1, 1], [], []>} : vector<2x16xf32>, vector<16x32xf32>, vector<2x32xf32> -> vector<2x32xf32>
    %c0_176 = arith.constant 0 : index
    %c0_177 = arith.constant 0 : index
    %462 = vector.load %arg18[%c0_176, %c0_177] : memref<2x32xf32, #tpu.memory_space<vmem>>, vector<1x32xf32>
    %463 = vector.broadcast %462 : vector<1x32xf32> to vector<2x32xf32>
    %464 = arith.addf %461, %463 : vector<2x32xf32>
    %cst_178 = arith.constant 0.000000e+00 : f32
    %465 = vector.broadcast %cst_178 : f32 to vector<2x32xf32>
    %466 = arith.maximumf %464, %465 : vector<2x32xf32>
    %c0_179 = arith.constant 0 : index
    %c0_180 = arith.constant 0 : index
    %467 = vector.load %arg16[%c0_179, %c0_180] : memref<32x32xf32, #tpu.memory_space<vmem>>, vector<32x32xf32>
    %cst_181 = arith.constant dense<0.000000e+00> : vector<2x32xf32>
    %468 = tpu.matmul %466, %467, %cst_181 {dimension_numbers = #tpu.dot_dimension_numbers<[1], [0], [0], [1], [0, 0, 1, 1], [], []>} : vector<2x32xf32>, vector<32x32xf32>, vector<2x32xf32> -> vector<2x32xf32>
    %c1_182 = arith.constant 1 : index
    %c0_183 = arith.constant 0 : index
    %469 = vector.load %arg18[%c1_182, %c0_183] : memref<2x32xf32, #tpu.memory_space<vmem>>, vector<1x32xf32>
    %470 = vector.broadcast %469 : vector<1x32xf32> to vector<2x32xf32>
    %471 = arith.addf %468, %470 : vector<2x32xf32>
    %cst_184 = arith.constant 0.000000e+00 : f32
    %472 = vector.broadcast %cst_184 : f32 to vector<2x32xf32>
    %473 = arith.maximumf %471, %472 : vector<2x32xf32>
    %c0_185 = arith.constant 0 : index
    %c0_186 = arith.constant 0 : index
    %474 = vector.load %arg17[%c0_185, %c0_186] : memref<32x56xf32, #tpu.memory_space<vmem>>, vector<32x56xf32>
    %cst_187 = arith.constant dense<0.000000e+00> : vector<2x56xf32>
    %475 = tpu.matmul %473, %474, %cst_187 {dimension_numbers = #tpu.dot_dimension_numbers<[1], [0], [0], [1], [0, 0, 1, 1], [], []>} : vector<2x32xf32>, vector<32x56xf32>, vector<2x56xf32> -> vector<2x56xf32>
    %c0_188 = arith.constant 0 : index
    %c0_189 = arith.constant 0 : index
    %476 = vector.load %arg19[%c0_188, %c0_189] : memref<1x56xf32, #tpu.memory_space<vmem>>, vector<1x56xf32>
    %477 = vector.broadcast %476 : vector<1x56xf32> to vector<2x56xf32>
    %478 = arith.addf %475, %477 : vector<2x56xf32>
    %c0_190 = arith.constant 0 : index
    %c0_191 = arith.constant 0 : index
    %479 = vector.load %arg20[%c0_190, %c0_191] : memref<2x56xf32, #tpu.memory_space<vmem>>, vector<2x56xf32>
    %480 = arith.addf %478, %479 : vector<2x56xf32>
    %481 = vector.extract_strided_slice %480 {offsets = [0, 0], sizes = [2, 28], strides = [1, 1]} : vector<2x56xf32> to vector<2x28xf32>
    %482 = vector.extract_strided_slice %480 {offsets = [0, 28], sizes = [2, 28], strides = [1, 1]} : vector<2x56xf32> to vector<2x28xf32>
    %483 = arith.cmpf oge, %481, %482 : vector<2x28xf32>
    %484 = arith.extui %483 : vector<2x28xi1> to vector<2x28xi32>
    %485 = arith.sitofp %484 : vector<2x28xi32> to vector<2x28xf32>
    %486 = arith.truncf %485 : vector<2x28xf32> to vector<2x28xbf16>
    %c0_192 = arith.constant 0 : index
    %c0_193 = arith.constant 0 : index
    %487 = vector.load %arg21[%c0_192, %c0_193] : memref<28x128xbf16, #tpu.memory_space<vmem>>, vector<28x128xbf16>
    %cst_194 = arith.constant dense<0.000000e+00> : vector<2x128xf32>
    %488 = tpu.matmul %486, %487, %cst_194 {dimension_numbers = #tpu.dot_dimension_numbers<[1], [0], [0], [1], [0, 0, 1, 1], [], []>} : vector<2x28xbf16>, vector<28x128xbf16>, vector<2x128xf32> -> vector<2x128xf32>
    %c0_195 = arith.constant 0 : index
    %c0_196 = arith.constant 0 : index
    %489 = vector.load %arg22[%c0_195, %c0_196] : memref<2x128xf32, #tpu.memory_space<vmem>>, vector<2x128xf32>
    tpu.vector_store %arg22[%c0_195, %c0_196], %488 {strides = array<i32>} : memref<2x128xf32, #tpu.memory_space<vmem>>, vector<2x128xf32>,
    return
  }
}

</mosaic_0001>

<llo_original>
// kernel: tpu_custom_call.1
$region0: #{tpu_custom_call.1}
  #allocation0 [shape = 'u32[]', space=smem, size = 0x4, offset = 0x4, fixed_abs, tag = 'smem constant byte address 0x4 - core index']
  #allocation1 [shape = 'u32[144,128]{1,0:T(1,128)}', space=vmem, size = 0x12000, scoped, tag = 'internal scratch']
  %s0 = inlined_call_operand.vmem [shape: f32[16,4], index: 0, kind: input, shape index: {}]
  %s1 = inlined_call_operand.vmem [shape: bf16[128,32], index: 1, kind: input, shape index: {}]
  %s2 = inlined_call_operand.hbm [shape: bf16[16,128], index: 2, kind: input, shape index: {}]
  %s3 = inlined_call_operand.hbm [shape: bf16[2,16], index: 3, kind: input, shape index: {}]
  %s4 = inlined_call_operand.hbm [shape: f32[4,64], index: 4, kind: input, shape index: {}]
  %s5 = inlined_call_operand.vmem [shape: f32[32,32], index: 5, kind: input, shape index: {}]
  %s6 = inlined_call_operand.hbm [shape: f32[4,32], index: 6, kind: input, shape index: {}]
  %s7 = inlined_call_operand.vmem [shape: f32[32,64], index: 7, kind: input, shape index: {}]
  %s8 = inlined_call_operand.vmem [shape: f32[32,32], index: 8, kind: input, shape index: {}]
  %s9 = inlined_call_operand.hbm [shape: f32[4,32], index: 9, kind: input, shape index: {}]
  %s10 = inlined_call_operand.vmem [shape: f32[32,32], index: 10, kind: input, shape index: {}]
  %s11 = inlined_call_operand.hbm [shape: f32[3,32], index: 11, kind: input, shape index: {}]
  %s12 = inlined_call_operand.hbm [shape: f32[32,32], index: 12, kind: input, shape index: {}]
  %s13 = inlined_call_operand.hbm [shape: f32[1,32], index: 13, kind: input, shape index: {}]
  %s14 = inlined_call_operand.hbm [shape: f32[2,16], index: 14, kind: input, shape index: {}]
  %s15 = inlined_call_operand.hbm [shape: f32[16,32], index: 15, kind: input, shape index: {}]
  %s16 = inlined_call_operand.vmem [shape: f32[32,32], index: 16, kind: input, shape index: {}]
  %s17 = inlined_call_operand.hbm [shape: f32[32,56], index: 17, kind: input, shape index: {}]
  %s18 = inlined_call_operand.vmem [shape: f32[2,32], index: 18, kind: input, shape index: {}]
  %s19 = inlined_call_operand.vmem [shape: f32[1,56], index: 19, kind: input, shape index: {}]
  %s20 = inlined_call_operand.hbm [shape: f32[2,56], index: 20, kind: input, shape index: {}]
  %s21 = inlined_call_operand.vmem [shape: bf16[28,128], index: 21, kind: input, shape index: {}]
  %s22 = inlined_call_operand.hbm [shape: f32[2,128], index: 22, kind: output, shape index: {}]
  %s23 = sld [smem:[#allocation0]]
  $region146: #{tpu_custom_call.1} parent=0
    _
  %s25 = ssub.s32 1, %s23
  %s26 = scalar_select 0, %s25, %s23
  $region1: #{tpu_custom_call.1} parent=0
    #allocation2 [shape = 'u8[4096]{0}', space=vmem, size = 0x1000, scoped, tag = 'input window, operand 2, single buffered']
    #allocation3 [shape = 's32[1]{0}', space=sflag, size = 0x4, scoped, tag = 'scoped memory for tpu_custom_call.1']
    #allocation4 [shape = 's32[1]{0}', space=sflag, size = 0x4, scoped, tag = 'scoped memory for tpu_custom_call.1']
    #allocation5 [shape = 'u8[512]{0}', space=vmem, size = 0x400, scoped, tag = 'input window, operand 3, single buffered']
    #allocation6 [shape = 's32[1]{0}', space=sflag, size = 0x4, scoped, tag = 'scoped memory for tpu_custom_call.1']
    #allocation7 [shape = 'u8[2048]{0}', space=vmem, size = 0x800, scoped, tag = 'input window, operand 4, single buffered']
    #allocation8 [shape = 'u8[2048]{0}', space=vmem, size = 0x800, scoped, tag = 'input window, operand 6, single buffered']
    #allocation9 [shape = 's32[1]{0}', space=sflag, size = 0x4, scoped, tag = 'scoped memory for tpu_custom_call.1']
    #allocation10 [shape = 'u8[2048]{0}', space=vmem, size = 0x800, scoped, tag = 'input window, operand 9, single buffered']
    #allocation11 [shape = 'u8[2048]{0}', space=vmem, size = 0x800, scoped, tag = 'input window, operand 11, single buffered']
    #allocation12 [shape = 's32[1]{0}', space=sflag, size = 0x4, scoped, tag = 'scoped memory for tpu_custom_call.1']
    #allocation13 [shape = 'u8[16384]{0}', space=vmem, size = 0x4000, scoped, tag = 'input window, operand 12, single buffered']
    #allocation14 [shape = 'u8[512]{0}', space=vmem, size = 0x400, scoped, tag = 'input window, operand 13, single buffered']
    #allocation15 [shape = 's32[1]{0}', space=sflag, size = 0x4, scoped, tag = 'scoped memory for tpu_custom_call.1']
    #allocation16 [shape = 'u8[1024]{0}', space=vmem, size = 0x400, scoped, tag = 'input window, operand 14, single buffered']
    #allocation17 [shape = 'u8[8192]{0}', space=vmem, size = 0x2000, scoped, tag = 'input window, operand 15, single buffered']
    #allocation18 [shape = 's32[1]{0}', space=sflag, size = 0x4, scoped, tag = 'scoped memory for tpu_custom_call.1']
    #allocation19 [shape = 'u8[16384]{0}', space=vmem, size = 0x4000, scoped, tag = 'input window, operand 17, single buffered']
    #allocation20 [shape = 'u8[1024]{0}', space=vmem, size = 0x400, scoped, tag = 'input window, operand 20, single buffered']
    #allocation21 [shape = 's32[1]{0}', space=sflag, size = 0x4, scoped, tag = 'scoped memory for tpu_custom_call.1']
    #allocation22 [shape = 'u8[1024]{0}', space=vmem, size = 0x400, scoped, tag = 'output window, operand 0, single buffered']
    %27 = vsyncpa [#allocation3], 0
    %28 = vsyncpa [#allocation6], 0
    %29 = vsyncpa [#allocation9], 0
    %30 = vsyncpa [#allocation12], 0
    %31 = vsyncpa [#allocation15], 0
    %32 = vsyncpa [#allocation18], 0
    %33 = vsyncpa [#allocation21], 0
    %34 = vsyncpa [#allocation4], 0
    // Predicated region
    $region2: #{tpu_custom_call.1} parent=1 // pred_check
      _
    $region3: #{tpu_custom_call.1} parent=1 // pred_check_branch
      %36 = sbr.rel (0) target = $region5
    $region4: #{tpu_custom_call.1} parent=1 // pred_region
      _
    $region5: #{tpu_custom_call.1} parent=1 // pred_fallthru
      _
    // Predicated region
    $region6: #{tpu_custom_call.1} parent=1 // pred_check
      _
    $region7: #{tpu_custom_call.1} parent=1 // pred_check_branch
      %38 = sbr.rel (0) target = $region9
    $region8: #{tpu_custom_call.1} parent=1 // pred_region
      _
    $region9: #{tpu_custom_call.1} parent=1 // pred_fallthru
      _
    // Predicated region
    $region10: #{tpu_custom_call.1} parent=1 // pred_check
      _
    $region11: #{tpu_custom_call.1} parent=1 // pred_check_branch
      %40 = sbr.rel (0) target = $region13
    $region12: #{tpu_custom_call.1} parent=1 // pred_region
      %s42 = ssub.s32 128, 128
      %43 = vsyncadd [#allocation3], %s42
      %s44 = sshll.u32 [#allocation2], 4
      %s45 = int_to_ptr.vmem [resolvable:$true] %s44
      %50 = dma.hbm_to_vmem [thread:$0]  %s2, 128, %s45, [#allocation3], 64, 64, 4
    $region13: #{tpu_custom_call.1} parent=1 // pred_fallthru
      _
    // Predicated region
    $region14: #{tpu_custom_call.1} parent=1 // pred_check
      _
    $region15: #{tpu_custom_call.1} parent=1 // pred_check_branch
      %52 = sbr.rel (0) target = $region17
    $region16: #{tpu_custom_call.1} parent=1 // pred_region
      %s54 = ssub.s32 16, 16
      %55 = vsyncadd [#allocation6], %s54
      %s57 = sshll.u32 [#allocation5], 4
      %s58 = int_to_ptr.vmem [resolvable:$true] %s57
      %60 = dma.hbm_to_vmem [thread:$0]  %s3, 16, %s58, [#allocation6]
    $region17: #{tpu_custom_call.1} parent=1 // pred_fallthru
      _
    // Predicated region
    $region18: #{tpu_custom_call.1} parent=1 // pred_check
      _
    $region19: #{tpu_custom_call.1} parent=1 // pred_check_branch
      %62 = sbr.rel (0) target = $region21
    $region20: #{tpu_custom_call.1} parent=1 // pred_region
      %s64 = ssub.s32 64, 64
      %65 = vsyncadd [#allocation6], %s64
      %s67 = sshll.u32 [#allocation7], 4
      %s68 = int_to_ptr.vmem [resolvable:$true] %s67
      %70 = dma.hbm_to_vmem [thread:$0]  %s4, 64, %s68, [#allocation6]
    $region21: #{tpu_custom_call.1} parent=1 // pred_fallthru
      _
    // Predicated region
    $region22: #{tpu_custom_call.1} parent=1 // pred_check
      _
    $region23: #{tpu_custom_call.1} parent=1 // pred_check_branch
      %72 = sbr.rel (0) target = $region25
    $region24: #{tpu_custom_call.1} parent=1 // pred_region
      _
    $region25: #{tpu_custom_call.1} parent=1 // pred_fallthru
      _
    // Predicated region
    $region26: #{tpu_custom_call.1} parent=1 // pred_check
      _
    $region27: #{tpu_custom_call.1} parent=1 // pred_check_branch
      %74 = sbr.rel (0) target = $region29
    $region28: #{tpu_custom_call.1} parent=1 // pred_region
      %s76 = ssub.s32 64, 64
      %77 = vsyncadd [#allocation9], %s76
      %s79 = sshll.u32 [#allocation8], 4
      %s80 = int_to_ptr.vmem [resolvable:$true] %s79
      %82 = dma.hbm_to_vmem [thread:$0]  %s6, 64, %s80, [#allocation9]
    $region29: #{tpu_custom_call.1} parent=1 // pred_fallthru
      _
    // Predicated region
    $region30: #{tpu_custom_call.1} parent=1 // pred_check
      _
    $region31: #{tpu_custom_call.1} parent=1 // pred_check_branch
      %84 = sbr.rel (0) target = $region33
    $region32: #{tpu_custom_call.1} parent=1 // pred_region
      _
    $region33: #{tpu_custom_call.1} parent=1 // pred_fallthru
      _
    // Predicated region
    $region34: #{tpu_custom_call.1} parent=1 // pred_check
      _
    $region35: #{tpu_custom_call.1} parent=1 // pred_check_branch
      %86 = sbr.rel (0) target = $region37
    $region36: #{tpu_custom_call.1} parent=1 // pred_region
      _
    $region37: #{tpu_custom_call.1} parent=1 // pred_fallthru
      _
    // Predicated region
    $region38: #{tpu_custom_call.1} parent=1 // pred_check
      _
    $region39: #{tpu_custom_call.1} parent=1 // pred_check_branch
      %88 = sbr.rel (0) target = $region41
    $region40: #{tpu_custom_call.1} parent=1 // pred_region
      %s90 = ssub.s32 64, 64
      %91 = vsyncadd [#allocation9], %s90
      %s93 = sshll.u32 [#allocation10], 4
      %s94 = int_to_ptr.vmem [resolvable:$true] %s93
      %96 = dma.hbm_to_vmem [thread:$0]  %s9, 64, %s94, [#allocation9]
    $region41: #{tpu_custom_call.1} parent=1 // pred_fallthru
      _
    // Predicated region
    $region42: #{tpu_custom_call.1} parent=1 // pred_check
      _
    $region43: #{tpu_custom_call.1} parent=1 // pred_check_branch
      %98 = sbr.rel (0) target = $region45
    $region44: #{tpu_custom_call.1} parent=1 // pred_region
      _
    $region45: #{tpu_custom_call.1} parent=1 // pred_fallthru
      _
    // Predicated region
    $region46: #{tpu_custom_call.1} parent=1 // pred_check
      _
    $region47: #{tpu_custom_call.1} parent=1 // pred_check_branch
      %100 = sbr.rel (0) target = $region49
    $region48: #{tpu_custom_call.1} parent=1 // pred_region
      %s102 = ssub.s32 64, 64
      %103 = vsyncadd [#allocation12], %s102
      %s105 = sshll.u32 [#allocation11], 4
      %s106 = int_to_ptr.vmem [resolvable:$true] %s105
      %108 = dma.hbm_to_vmem [thread:$0]  %s11, 64, %s106, [#allocation12]
    $region49: #{tpu_custom_call.1} parent=1 // pred_fallthru
      _
    // Predicated region
    $region50: #{tpu_custom_call.1} parent=1 // pred_check
      _
    $region51: #{tpu_custom_call.1} parent=1 // pred_check_branch
      %110 = sbr.rel (0) target = $region53
    $region52: #{tpu_custom_call.1} parent=1 // pred_region
      %s112 = ssub.s32 512, 512
      %113 = vsyncadd [#allocation12], %s112
      %s114 = sshll.u32 [#allocation13], 4
      %s115 = int_to_ptr.vmem [resolvable:$true] %s114
      %120 = dma.hbm_to_vmem [thread:$0]  %s12, 512, %s115, [#allocation12], 128, 128, 8
    $region53: #{tpu_custom_call.1} parent=1 // pred_fallthru
      _
    // Predicated region
    $region54: #{tpu_custom_call.1} parent=1 // pred_check
      _
    $region55: #{tpu_custom_call.1} parent=1 // pred_check_branch
      %122 = sbr.rel (0) target = $region57
    $region56: #{tpu_custom_call.1} parent=1 // pred_region
      %s124 = ssub.s32 16, 16
      %125 = vsyncadd [#allocation15], %s124
      %s127 = sshll.u32 [#allocation14], 4
      %s128 = int_to_ptr.vmem [resolvable:$true] %s127
      %130 = dma.hbm_to_vmem [thread:$0]  %s13, 16, %s128, [#allocation15]
    $region57: #{tpu_custom_call.1} parent=1 // pred_fallthru
      _
    // Predicated region
    $region58: #{tpu_custom_call.1} parent=1 // pred_check
      _
    $region59: #{tpu_custom_call.1} parent=1 // pred_check_branch
      %132 = sbr.rel (0) target = $region61
    $region60: #{tpu_custom_call.1} parent=1 // pred_region
      %s134 = ssub.s32 32, 32
      %135 = vsyncadd [#allocation15], %s134
      %s137 = sshll.u32 [#allocation16], 4
      %s138 = int_to_ptr.vmem [resolvable:$true] %s137
      %140 = dma.hbm_to_vmem [thread:$0]  %s14, 32, %s138, [#allocation15]
    $region61: #{tpu_custom_call.1} parent=1 // pred_fallthru
      _
    // Predicated region
    $region62: #{tpu_custom_call.1} parent=1 // pred_check
      _
    $region63: #{tpu_custom_call.1} parent=1 // pred_check_branch
      %142 = sbr.rel (0) target = $region65
    $region64: #{tpu_custom_call.1} parent=1 // pred_region
      %s144 = ssub.s32 256, 256
      %145 = vsyncadd [#allocation18], %s144
      %s146 = sshll.u32 [#allocation17], 4
      %s147 = int_to_ptr.vmem [resolvable:$true] %s146
      %152 = dma.hbm_to_vmem [thread:$0]  %s15, 256, %s147, [#allocation18], 128, 128, 8
    $region65: #{tpu_custom_call.1} parent=1 // pred_fallthru
      _
    // Predicated region
    $region66: #{tpu_custom_call.1} parent=1 // pred_check
      _
    $region67: #{tpu_custom_call.1} parent=1 // pred_check_branch
      %154 = sbr.rel (0) target = $region69
    $region68: #{tpu_custom_call.1} parent=1 // pred_region
      _
    $region69: #{tpu_custom_call.1} parent=1 // pred_fallthru
      _
    // Predicated region
    $region70: #{tpu_custom_call.1} parent=1 // pred_check
      _
    $region71: #{tpu_custom_call.1} parent=1 // pred_check_branch
      %156 = sbr.rel (0) target = $region73
    $region72: #{tpu_custom_call.1} parent=1 // pred_region
      %s158 = ssub.s32 512, 512
      %159 = vsyncadd [#allocation18], %s158
      %s160 = sshll.u32 [#allocation19], 4
      %s161 = int_to_ptr.vmem [resolvable:$true] %s160
      %166 = dma.hbm_to_vmem [thread:$0]  %s17, 512, %s161, [#allocation18], 128, 128, 8
    $region73: #{tpu_custom_call.1} parent=1 // pred_fallthru
      _
    // Predicated region
    $region74: #{tpu_custom_call.1} parent=1 // pred_check
      _
    $region75: #{tpu_custom_call.1} parent=1 // pred_check_branch
      %168 = sbr.rel (0) target = $region77
    $region76: #{tpu_custom_call.1} parent=1 // pred_region
      _
    $region77: #{tpu_custom_call.1} parent=1 // pred_fallthru
      _
    // Predicated region
    $region78: #{tpu_custom_call.1} parent=1 // pred_check
      _
    $region79: #{tpu_custom_call.1} parent=1 // pred_check_branch
      %170 = sbr.rel (0) target = $region81
    $region80: #{tpu_custom_call.1} parent=1 // pred_region
      _
    $region81: #{tpu_custom_call.1} parent=1 // pred_fallthru
      _
    // Predicated region
    $region82: #{tpu_custom_call.1} parent=1 // pred_check
      _
    $region83: #{tpu_custom_call.1} parent=1 // pred_check_branch
      %172 = sbr.rel (0) target = $region85
    $region84: #{tpu_custom_call.1} parent=1 // pred_region
      %s174 = ssub.s32 32, 32
      %175 = vsyncadd [#allocation21], %s174
      %s177 = sshll.u32 [#allocation20], 4
      %s178 = int_to_ptr.vmem [resolvable:$true] %s177
      %180 = dma.hbm_to_vmem [thread:$0]  %s20, 32, %s178, [#allocation21]
    $region85: #{tpu_custom_call.1} parent=1 // pred_fallthru
      _
    // Predicated region
    $region86: #{tpu_custom_call.1} parent=1 // pred_check
      _
    $region87: #{tpu_custom_call.1} parent=1 // pred_check_branch
      %182 = sbr.rel (0) target = $region89
    $region88: #{tpu_custom_call.1} parent=1 // pred_region
      _
    $region89: #{tpu_custom_call.1} parent=1 // pred_fallthru
      _
    // Predicated region
    $region90: #{tpu_custom_call.1} parent=1 // pred_check
      _
    $region91: #{tpu_custom_call.1} parent=1 // pred_check_branch
      %184 = sbr.rel (0) target = $region93
    $region92: #{tpu_custom_call.1} parent=1 // pred_region
      %185 = dma.done [#allocation3], 128
    $region93: #{tpu_custom_call.1} parent=1 // pred_fallthru
      _
    // Predicated region
    $region94: #{tpu_custom_call.1} parent=1 // pred_check
      _
    $region95: #{tpu_custom_call.1} parent=1 // pred_check_branch
      %187 = sbr.rel (0) target = $region97
    $region96: #{tpu_custom_call.1} parent=1 // pred_region
      %188 = dma.done [#allocation6], 16
    $region97: #{tpu_custom_call.1} parent=1 // pred_fallthru
      _
    // Predicated region
    $region98: #{tpu_custom_call.1} parent=1 // pred_check
      _
    $region99: #{tpu_custom_call.1} parent=1 // pred_check_branch
      %190 = sbr.rel (0) target = $region101
    $region100: #{tpu_custom_call.1} parent=1 // pred_region
      %191 = dma.done [#allocation6], 64
    $region101: #{tpu_custom_call.1} parent=1 // pred_fallthru
      _
    // Predicated region
    $region102: #{tpu_custom_call.1} parent=1 // pred_check
      _
    $region103: #{tpu_custom_call.1} parent=1 // pred_check_branch
      %193 = sbr.rel (0) target = $region105
    $region104: #{tpu_custom_call.1} parent=1 // pred_region
      %194 = dma.done [#allocation9], 64
    $region105: #{tpu_custom_call.1} parent=1 // pred_fallthru
      _
    // Predicated region
    $region106: #{tpu_custom_call.1} parent=1 // pred_check
      _
    $region107: #{tpu_custom_call.1} parent=1 // pred_check_branch
      %196 = sbr.rel (0) target = $region109
    $region108: #{tpu_custom_call.1} parent=1 // pred_region
      %197 = dma.done [#allocation9], 64
    $region109: #{tpu_custom_call.1} parent=1 // pred_fallthru
      _
    // Predicated region
    $region110: #{tpu_custom_call.1} parent=1 // pred_check
      _
    $region111: #{tpu_custom_call.1} parent=1 // pred_check_branch
      %199 = sbr.rel (0) target = $region113
    $region112: #{tpu_custom_call.1} parent=1 // pred_region
      %200 = dma.done [#allocation12], 64
    $region113: #{tpu_custom_call.1} parent=1 // pred_fallthru
      _
    // Predicated region
    $region114: #{tpu_custom_call.1} parent=1 // pred_check
      _
    $region115: #{tpu_custom_call.1} parent=1 // pred_check_branch
      %202 = sbr.rel (0) target = $region117
    $region116: #{tpu_custom_call.1} parent=1 // pred_region
      %203 = dma.done [#allocation12], 512
    $region117: #{tpu_custom_call.1} parent=1 // pred_fallthru
      _
    // Predicated region
    $region118: #{tpu_custom_call.1} parent=1 // pred_check
      _
    $region119: #{tpu_custom_call.1} parent=1 // pred_check_branch
      %205 = sbr.rel (0) target = $region121
    $region120: #{tpu_custom_call.1} parent=1 // pred_region
      %206 = dma.done [#allocation15], 16
    $region121: #{tpu_custom_call.1} parent=1 // pred_fallthru
      _
    // Predicated region
    $region122: #{tpu_custom_call.1} parent=1 // pred_check
      _
    $region123: #{tpu_custom_call.1} parent=1 // pred_check_branch
      %208 = sbr.rel (0) target = $region125
    $region124: #{tpu_custom_call.1} parent=1 // pred_region
      %209 = dma.done [#allocation15], 32
    $region125: #{tpu_custom_call.1} parent=1 // pred_fallthru
      _
    // Predicated region
    $region126: #{tpu_custom_call.1} parent=1 // pred_check
      _
    $region127: #{tpu_custom_call.1} parent=1 // pred_check_branch
      %211 = sbr.rel (0) target = $region129
    $region128: #{tpu_custom_call.1} parent=1 // pred_region
      %212 = dma.done [#allocation18], 256
    $region129: #{tpu_custom_call.1} parent=1 // pred_fallthru
      _
    // Predicated region
    $region130: #{tpu_custom_call.1} parent=1 // pred_check
      _
    $region131: #{tpu_custom_call.1} parent=1 // pred_check_branch
      %214 = sbr.rel (0) target = $region133
    $region132: #{tpu_custom_call.1} parent=1 // pred_region
      %215 = dma.done [#allocation18], 512
    $region133: #{tpu_custom_call.1} parent=1 // pred_fallthru
      _
    // Predicated region
    $region134: #{tpu_custom_call.1} parent=1 // pred_check
      _
    $region135: #{tpu_custom_call.1} parent=1 // pred_check_branch
      %217 = sbr.rel (0) target = $region137
    $region136: #{tpu_custom_call.1} parent=1 // pred_region
      %218 = dma.done [#allocation21], 32
    $region137: #{tpu_custom_call.1} parent=1 // pred_fallthru
      _
    %v222 = vld [vmem:[%s1] sm:$0xf]
    %v223 = vld [vmem:[%s1 + $0x4] sm:$0xf]
    %v224 = vld [vmem:[%s1 + $0x8] sm:$0xf]
    %v225 = vld [vmem:[%s1 + $0xc] sm:$0xf]
    %v226 = vld [vmem:[%s1 + $0x10] sm:$0xf]
    %v227 = vld [vmem:[%s1 + $0x14] sm:$0xf]
    %v228 = vld [vmem:[%s1 + $0x18] sm:$0xf]
    %v229 = vld [vmem:[%s1 + $0x1c] sm:$0xf]
    %v230 = vld [vmem:[%s1 + $0x20] sm:$0xf]
    %v231 = vld [vmem:[%s1 + $0x24] sm:$0xf]
    %v232 = vld [vmem:[%s1 + $0x28] sm:$0xf]
    %v233 = vld [vmem:[%s1 + $0x2c] sm:$0xf]
    %v234 = vld [vmem:[%s1 + $0x30] sm:$0xf]
    %v235 = vld [vmem:[%s1 + $0x34] sm:$0xf]
    %v236 = vld [vmem:[%s1 + $0x38] sm:$0xf]
    %v237 = vld [vmem:[%s1 + $0x3c] sm:$0xf]
    %v238 = vld [vmem:[#allocation2] sm:$0xf]
    %v239 = vld [vmem:[#allocation2 + $0x4] sm:$0xf]
    %v240 = vunpack.c.l.bf16 %v222
    %v241 = vunpack.c.l.bf16 %v223
    %v242 = vunpack.c.l.bf16 %v224
    %v243 = vunpack.c.l.bf16 %v225
    %v244 = vunpack.c.l.bf16 %v226
    %v245 = vunpack.c.l.bf16 %v227
    %v246 = vunpack.c.l.bf16 %v228
    %v247 = vunpack.c.l.bf16 %v229
    %v248 = vunpack.c.l.bf16 %v230
    %v249 = vunpack.c.l.bf16 %v231
    %v250 = vunpack.c.l.bf16 %v232
    %v251 = vunpack.c.l.bf16 %v233
    %v252 = vunpack.c.l.bf16 %v234
    %v253 = vunpack.c.l.bf16 %v235
    %v254 = vunpack.c.l.bf16 %v236
    %v255 = vunpack.c.l.bf16 %v237
    %vm256 = vcmask 261120
    %v257 = vsel %vm256, %v240, 0.0
    %258 = vadd.xlane.f32.xlu0 %v257
    %v259 = vpop.xlane.xlu0 %258
    %v260 = vsel %vm256, %v241, 0.0
    %261 = vadd.xlane.f32.xlu0 %v260
    %v262 = vpop.xlane.xlu0 %261
    %v263 = vsel %vm256, %v242, 0.0
    %264 = vadd.xlane.f32.xlu0 %v263
    %v265 = vpop.xlane.xlu0 %264
    %v266 = vsel %vm256, %v243, 0.0
    %267 = vadd.xlane.f32.xlu0 %v266
    %v268 = vpop.xlane.xlu0 %267
    %v269 = vsel %vm256, %v244, 0.0
    %270 = vadd.xlane.f32.xlu0 %v269
    %v271 = vpop.xlane.xlu0 %270
    %v272 = vsel %vm256, %v245, 0.0
    %273 = vadd.xlane.f32.xlu0 %v272
    %v274 = vpop.xlane.xlu0 %273
    %v275 = vsel %vm256, %v246, 0.0
    %276 = vadd.xlane.f32.xlu0 %v275
    %v277 = vpop.xlane.xlu0 %276
    %v278 = vsel %vm256, %v247, 0.0
    %279 = vadd.xlane.f32.xlu0 %v278
    %v280 = vpop.xlane.xlu0 %279
    %v281 = vsel %vm256, %v248, 0.0
    %282 = vadd.xlane.f32.xlu0 %v281
    %v283 = vpop.xlane.xlu0 %282
    %v284 = vsel %vm256, %v249, 0.0
    %285 = vadd.xlane.f32.xlu0 %v284
    %v286 = vpop.xlane.xlu0 %285
    %v287 = vsel %vm256, %v250, 0.0
    %288 = vadd.xlane.f32.xlu0 %v287
    %v289 = vpop.xlane.xlu0 %288
    %v290 = vsel %vm256, %v251, 0.0
    %291 = vadd.xlane.f32.xlu0 %v290
    %v292 = vpop.xlane.xlu0 %291
    %v293 = vsel %vm256, %v252, 0.0
    %294 = vadd.xlane.f32.xlu0 %v293
    %v295 = vpop.xlane.xlu0 %294
    %v296 = vsel %vm256, %v253, 0.0
    %297 = vadd.xlane.f32.xlu0 %v296
    %v298 = vpop.xlane.xlu0 %297
    %v299 = vsel %vm256, %v254, 0.0
    %300 = vadd.xlane.f32.xlu0 %v299
    %v301 = vpop.xlane.xlu0 %300
    %v302 = vsel %vm256, %v255, 0.0
    %303 = vadd.xlane.f32.xlu0 %v302
    %v304 = vpop.xlane.xlu0 %303
    %vm305 = vcmp.gt.f32.partialorder %v259, 0.5
    %vm306 = vcmp.gt.f32.partialorder %v262, 0.5
    %vm307 = vcmp.gt.f32.partialorder %v265, 0.5
    %vm308 = vcmp.gt.f32.partialorder %v268, 0.5
    %vm309 = vcmp.gt.f32.partialorder %v271, 0.5
    %vm310 = vcmp.gt.f32.partialorder %v274, 0.5
    %vm311 = vcmp.gt.f32.partialorder %v277, 0.5
    %vm312 = vcmp.gt.f32.partialorder %v280, 0.5
    %vm313 = vcmp.gt.f32.partialorder %v283, 0.5
    %vm314 = vcmp.gt.f32.partialorder %v286, 0.5
    %vm315 = vcmp.gt.f32.partialorder %v289, 0.5
    %vm316 = vcmp.gt.f32.partialorder %v292, 0.5
    %vm317 = vcmp.gt.f32.partialorder %v295, 0.5
    %vm318 = vcmp.gt.f32.partialorder %v298, 0.5
    %vm319 = vcmp.gt.f32.partialorder %v301, 0.5
    %vm320 = vcmp.gt.f32.partialorder %v304, 0.5
    %v321 = vsel %vm305, 1, 0
    %v322 = vsel %vm306, 1, 0
    %v323 = vsel %vm307, 1, 0
    %v324 = vsel %vm308, 1, 0
    %v325 = vsel %vm309, 1, 0
    %v326 = vsel %vm310, 1, 0
    %v327 = vsel %vm311, 1, 0
    %v328 = vsel %vm312, 1, 0
    %v329 = vsel %vm313, 1, 0
    %v330 = vsel %vm314, 1, 0
    %v331 = vsel %vm315, 1, 0
    %v332 = vsel %vm316, 1, 0
    %v333 = vsel %vm317, 1, 0
    %v334 = vsel %vm318, 1, 0
    %v335 = vsel %vm319, 1, 0
    %v336 = vsel %vm320, 1, 0
    %v337 = vcvt.s32.f32 %v321
    %v338 = vcvt.s32.f32 %v322
    %v339 = vcvt.s32.f32 %v323
    %v340 = vcvt.s32.f32 %v324
    %v341 = vcvt.s32.f32 %v325
    %v342 = vcvt.s32.f32 %v326
    %v343 = vcvt.s32.f32 %v327
    %v344 = vcvt.s32.f32 %v328
    %v345 = vcvt.s32.f32 %v329
    %v346 = vcvt.s32.f32 %v330
    %v347 = vcvt.s32.f32 %v331
    %v348 = vcvt.s32.f32 %v332
    %v349 = vcvt.s32.f32 %v333
    %v350 = vcvt.s32.f32 %v334
    %v351 = vcvt.s32.f32 %v335
    %v352 = vcvt.s32.f32 %v336
    %v353 = vunpack.c.l.bf16 %v238
    %v354 = vunpack.c.l.bf16 %v239
    %355 = vmax.xlane.f32.xlu0 %v353
    %v356 = vpop.xlane.xlu0 %355
    %357 = vmax.xlane.f32.xlu0 %v354
    %v358 = vpop.xlane.xlu0 %357
    %v359 = vld [vmem:[%s0] sm:$0xff]
    %v360 = vld [vmem:[%s0 + $0x8] sm:$0xff]
    %v361 = vld [vmem:[#allocation8] sm:$0x1]
    %v362 = vld [vmem:[#allocation8 + $0x1] sm:$0x1]
    %v363 = vld [vmem:[#allocation8 + $0x2] sm:$0x1]
    %v364 = vld [vmem:[#allocation8 + $0x3] sm:$0x1]
    %v365 = vld [vmem:[#allocation7] sm:$0xf]
    %vm366 = vcmask 31744
    %v368 = vsel %vm366, %v359, 0
    %v371 = vsel %vm366, %v360, 0
    %vm373 = vcmask 1043456
    %v375 = vsel %vm373, %v365, 0
    %377 = vmatprep.subr.mxu0 0.0
    %378 = vmatpush1.msra.mxu0 %v375
    %379 = vmatprep.subr.mxu0 0.0
    %380 = vmatpush1.msra.mxu0 0.0
    %381 = vmatprep.subr.mxu0 0.0
    %382 = vmatpush1.msra.mxu0 0.0
    %383 = vmatprep.subr.mxu0 0.0
    %384 = vmatpush1.msra.mxu0 0.0
    %385 = vmatprep.subr.mxu0 0.0
    %386 = vmatpush1.msra.mxu0 0.0
    %387 = vmatprep.subr.mxu0 0.0
    %388 = vmatpush1.msra.mxu0 0.0
    %389 = vmatprep.subr.mxu0 0.0
    %390 = vmatpush1.msra.mxu0 0.0
    %391 = vmatprep.subr.mxu0 0.0
    %392 = vmatpush1.msra.mxu0 0.0
    %393 = vmatprep.subr.mxu0 0.0
    %394 = vmatpush1.msra.mxu0 0.0
    %395 = vmatprep.subr.mxu0 0.0
    %396 = vmatpush1.msra.mxu0 0.0
    %397 = vmatprep.subr.mxu0 0.0
    %398 = vmatpush1.msra.mxu0 0.0
    %399 = vmatprep.subr.mxu0 0.0
    %400 = vmatpush1.msra.mxu0 0.0
    %401 = vmatprep.subr.mxu0 0.0
    %402 = vmatpush1.msra.mxu0 0.0
    %403 = vmatprep.subr.mxu0 0.0
    %404 = vmatpush1.msra.mxu0 0.0
    %405 = vmatprep.subr.mxu0 0.0
    %406 = vmatpush1.msra.mxu0 0.0
    %407 = vmatprep.subr.mxu0 0.0
    %408 = vmatpush1.msra.mxu0 0.0
    %409 = vmatprep.subr.mxu0 0.0
    %410 = vmatpush1.msra.mxu0 0.0
    %411 = vmatprep.subr.mxu0 0.0
    %412 = vmatpush1.msra.mxu0 0.0
    %413 = vmatprep.subr.mxu0 0.0
    %414 = vmatpush1.msra.mxu0 0.0
    %415 = vmatprep.subr.mxu0 0.0
    %416 = vmatpush1.msra.mxu0 0.0
    %417 = vmatprep.subr.mxu0 0.0
    %418 = vmatpush1.msra.mxu0 0.0
    %419 = vmatprep.subr.mxu0 0.0
    %420 = vmatpush1.msra.mxu0 0.0
    %421 = vmatprep.subr.mxu0 0.0
    %422 = vmatpush1.msra.mxu0 0.0
    %423 = vmatprep.subr.mxu0 0.0
    %424 = vmatpush1.msra.mxu0 0.0
    %425 = vmatprep.subr.mxu0 0.0
    %426 = vmatpush1.msra.mxu0 0.0
    %427 = vmatprep.subr.mxu0 0.0
    %428 = vmatpush1.msra.mxu0 0.0
    %429 = vmatprep.subr.mxu0 0.0
    %430 = vmatpush1.msra.mxu0 0.0
    %431 = vmatprep.subr.mxu0 0.0
    %432 = vmatpush1.msra.mxu0 0.0
    %433 = vmatprep.subr.mxu0 0.0
    %434 = vmatpush1.msra.mxu0 0.0
    %435 = vmatprep.subr.mxu0 0.0
    %436 = vmatpush1.msra.mxu0 0.0
    %437 = vmatprep.subr.mxu0 0.0
    %438 = vmatpush1.msra.mxu0 0.0
    %439 = vmatprep.subr.mxu0 0.0
    %440 = vmatpush1.msra.mxu0 0.0
    %441 = vmatprep.mubr.f32.mxu0 0.0
    %442 = vmatmul.mubr.f32.gmra.mrb[0].mxu0 %v368
    %v443 = vpop.f32.mrb[0].mxu0
    %v444 = vadd.f32 0.0, %v443
    %v445 = vpop.f32.mrb[0].mxu0
    %446 = vmatprep.mubr.f32.mxu0 0.0
    %447 = vmatmul.mubr.f32.gmra.mrb[0].mxu0 %v371
    %v448 = vpop.f32.mrb[0].mxu0
    %v449 = vadd.f32 0.0, %v448
    %v450 = vpop.f32.mrb[0].mxu0
    %451 = vdwg.mxu0
    %454 = vrot.lane.b32.xlu0 %v444, 96
    %v455 = vpop.permute.xlu0 %454
    %456 = vrot.lane.b32.xlu0 %v449, 96
    %v457 = vpop.permute.xlu0 %456
    %v460 = vpack.c.bf16 %v449, %v444
    %v461 = vpack.c.bf16 %v457, %v455
    %v462 = vlaneseq
    %v463 = vshrl.u32 %v462, 7
    %v464 = vsub.s32 0, %v463
    %v465 = vrot.slane %v361, %v464
    %v482 = vunpack.c.l.b16 %v222
    %v483 = vunpack.c.l.b16 %v223
    %v484 = vunpack.c.l.b16 %v224
    %v485 = vunpack.c.l.b16 %v225
    %v486 = vunpack.c.l.b16 %v226
    %v487 = vunpack.c.l.b16 %v227
    %v488 = vunpack.c.l.b16 %v228
    %v489 = vunpack.c.l.b16 %v229
    %v490 = vunpack.c.l.b16 %v230
    %v491 = vunpack.c.l.b16 %v231
    %v492 = vunpack.c.l.b16 %v232
    %v493 = vunpack.c.l.b16 %v233
    %v494 = vunpack.c.l.b16 %v234
    %v495 = vunpack.c.l.b16 %v235
    %v496 = vunpack.c.l.b16 %v236
    %v497 = vunpack.c.l.b16 %v237
    %v498 = vpack.c.b16 %v483, %v482
    %v499 = vpack.c.b16 %v485, %v484
    %v500 = vpack.c.b16 %v487, %v486
    %v501 = vpack.c.b16 %v489, %v488
    %v502 = vpack.c.b16 %v491, %v490
    %v503 = vpack.c.b16 %v493, %v492
    %v504 = vpack.c.b16 %v495, %v494
    %v505 = vpack.c.b16 %v497, %v496
    %v507 = vsel %vm256, %v498, 0
    %v510 = vsel %vm256, %v499, 0
    %v513 = vsel %vm256, %v500, 0
    %v516 = vsel %vm256, %v501, 0
    %v519 = vsel %vm256, %v502, 0
    %v522 = vsel %vm256, %v503, 0
    %v525 = vsel %vm256, %v504, 0
    %v528 = vsel %vm256, %v505, 0
    %530 = vmatprep.subr.bf16.mxu0 0
    %531 = vmatpush1.bf16.msra.mxu0 %v460
    %532 = vmatprep.subr.bf16.mxu0 0
    %533 = vmatpush1.bf16.msra.mxu0 %v461
    %534 = vmatprep.subr.bf16.mxu0 0
    %535 = vmatpush1.bf16.msra.mxu0 0
    %536 = vmatprep.subr.bf16.mxu0 0
    %537 = vmatpush1.bf16.msra.mxu0 0
    %538 = vmatprep.subr.bf16.mxu0 0
    %539 = vmatpush1.bf16.msra.mxu0 0
    %540 = vmatprep.subr.bf16.mxu0 0
    %541 = vmatpush1.bf16.msra.mxu0 0
    %542 = vmatprep.subr.bf16.mxu0 0
    %543 = vmatpush1.bf16.msra.mxu0 0
    %544 = vmatprep.subr.bf16.mxu0 0
    %545 = vmatpush1.bf16.msra.mxu0 0
    %546 = vmatprep.subr.bf16.mxu0 0
    %547 = vmatpush1.bf16.msra.mxu0 0
    %548 = vmatprep.subr.bf16.mxu0 0
    %549 = vmatpush1.bf16.msra.mxu0 0
    %550 = vmatprep.subr.bf16.mxu0 0
    %551 = vmatpush1.bf16.msra.mxu0 0
    %552 = vmatprep.subr.bf16.mxu0 0
    %553 = vmatpush1.bf16.msra.mxu0 0
    %554 = vmatprep.subr.bf16.mxu0 0
    %555 = vmatpush1.bf16.msra.mxu0 0
    %556 = vmatprep.subr.bf16.mxu0 0
    %557 = vmatpush1.bf16.msra.mxu0 0
    %558 = vmatprep.subr.bf16.mxu0 0
    %559 = vmatpush1.bf16.msra.mxu0 0
    %560 = vmatprep.subr.bf16.mxu0 0
    %561 = vmatpush1.bf16.msra.mxu0 0
    %562 = vmatprep.mubr.bf16.mxu0 0
    %563 = vmatmul.mubr.bf16.gmra.mrb[0].mxu0 %v507
    %v564 = vpop.f32.mrb[0].mxu0
    %v565 = vadd.f32 %v465, %v564
    %v566 = vpop.f32.mrb[0].mxu0
    %v567 = vpop.f32.mrb[0].mxu0
    %v568 = vadd.f32 %v465, %v567
    %v569 = vpop.f32.mrb[0].mxu0
    %570 = vmatprep.mubr.bf16.mxu0 0
    %571 = vmatmul.mubr.bf16.gmra.mrb[0].mxu0 %v510
    %v572 = vpop.f32.mrb[0].mxu0
    %v573 = vadd.f32 %v465, %v572
    %v574 = vpop.f32.mrb[0].mxu0
    %v575 = vpop.f32.mrb[0].mxu0
    %v576 = vadd.f32 %v465, %v575
    %v577 = vpop.f32.mrb[0].mxu0
    %578 = vmatprep.mubr.bf16.mxu0 0
    %579 = vmatmul.mubr.bf16.gmra.mrb[0].mxu0 %v513
    %v580 = vpop.f32.mrb[0].mxu0
    %v581 = vadd.f32 %v465, %v580
    %v582 = vpop.f32.mrb[0].mxu0
    %v583 = vpop.f32.mrb[0].mxu0
    %v584 = vadd.f32 %v465, %v583
    %v585 = vpop.f32.mrb[0].mxu0
    %586 = vmatprep.mubr.bf16.mxu0 0
    %587 = vmatmul.mubr.bf16.gmra.mrb[0].mxu0 %v516
    %v588 = vpop.f32.mrb[0].mxu0
    %v589 = vadd.f32 %v465, %v588
    %v590 = vpop.f32.mrb[0].mxu0
    %v591 = vpop.f32.mrb[0].mxu0
    %v592 = vadd.f32 %v465, %v591
    %v593 = vpop.f32.mrb[0].mxu0
    %594 = vmatprep.mubr.bf16.mxu0 0
    %595 = vmatmul.mubr.bf16.gmra.mrb[0].mxu0 %v519
    %v596 = vpop.f32.mrb[0].mxu0
    %v597 = vadd.f32 %v465, %v596
    %v598 = vpop.f32.mrb[0].mxu0
    %v599 = vpop.f32.mrb[0].mxu0
    %v600 = vadd.f32 %v465, %v599
    %v601 = vpop.f32.mrb[0].mxu0
    %602 = vmatprep.mubr.bf16.mxu0 0
    %603 = vmatmul.mubr.bf16.gmra.mrb[0].mxu0 %v522
    %v604 = vpop.f32.mrb[0].mxu0
    %v605 = vadd.f32 %v465, %v604
    %v606 = vpop.f32.mrb[0].mxu0
    %v607 = vpop.f32.mrb[0].mxu0
    %v608 = vadd.f32 %v465, %v607
    %v609 = vpop.f32.mrb[0].mxu0
    %610 = vmatprep.mubr.bf16.mxu0 0
    %611 = vmatmul.mubr.bf16.gmra.mrb[0].mxu0 %v525
    %v612 = vpop.f32.mrb[0].mxu0
    %v613 = vadd.f32 %v465, %v612
    %v614 = vpop.f32.mrb[0].mxu0
    %v615 = vpop.f32.mrb[0].mxu0
    %v616 = vadd.f32 %v465, %v615
    %v617 = vpop.f32.mrb[0].mxu0
    %618 = vmatprep.mubr.bf16.mxu0 0
    %619 = vmatmul.mubr.bf16.gmra.mrb[0].mxu0 %v528
    %v620 = vpop.f32.mrb[0].mxu0
    %v621 = vadd.f32 %v465, %v620
    %v622 = vpop.f32.mrb[0].mxu0
    %v623 = vpop.f32.mrb[0].mxu0
    %v624 = vadd.f32 %v465, %v623
    %v625 = vpop.f32.mrb[0].mxu0
    %626 = vdwg.mxu0
    %v627 = vmul.f32 %v565, 0.2
    %v628 = vmul.f32 %v568, 0.2
    %v629 = vmul.f32 %v573, 0.2
    %v630 = vmul.f32 %v576, 0.2
    %v631 = vmul.f32 %v581, 0.2
    %v632 = vmul.f32 %v584, 0.2
    %v633 = vmul.f32 %v589, 0.2
    %v634 = vmul.f32 %v592, 0.2
    %v635 = vmul.f32 %v597, 0.2
    %v636 = vmul.f32 %v600, 0.2
    %v637 = vmul.f32 %v605, 0.2
    %v638 = vmul.f32 %v608, 0.2
    %v639 = vmul.f32 %v613, 0.2
    %v640 = vmul.f32 %v616, 0.2
    %v641 = vmul.f32 %v621, 0.2
    %v642 = vmul.f32 %v624, 0.2
    %v643 = vmax.f32 %v565, %v627
    %v644 = vmax.f32 %v568, %v628
    %v645 = vmax.f32 %v573, %v629
    %v646 = vmax.f32 %v576, %v630
    %v647 = vmax.f32 %v581, %v631
    %v648 = vmax.f32 %v584, %v632
    %v649 = vmax.f32 %v589, %v633
    %v650 = vmax.f32 %v592, %v634
    %v651 = vmax.f32 %v597, %v635
    %v652 = vmax.f32 %v600, %v636
    %v653 = vmax.f32 %v605, %v637
    %v654 = vmax.f32 %v608, %v638
    %v655 = vmax.f32 %v613, %v639
    %v656 = vmax.f32 %v616, %v640
    %v657 = vmax.f32 %v621, %v641
    %v658 = vmax.f32 %v624, %v642
    %v659 = vmul.f32 %v643, %v337
    %v660 = vmul.f32 %v644, %v338
    %v661 = vmul.f32 %v645, %v339
    %v662 = vmul.f32 %v646, %v340
    %v663 = vmul.f32 %v647, %v341
    %v664 = vmul.f32 %v648, %v342
    %v665 = vmul.f32 %v649, %v343
    %v666 = vmul.f32 %v650, %v344
    %v667 = vmul.f32 %v651, %v345
    %v668 = vmul.f32 %v652, %v346
    %v669 = vmul.f32 %v653, %v347
    %v670 = vmul.f32 %v654, %v348
    %v671 = vmul.f32 %v655, %v349
    %v672 = vmul.f32 %v656, %v350
    %v673 = vmul.f32 %v657, %v351
    %v674 = vmul.f32 %v658, %v352
    %v675 = vsel %vm256, %v659, 0.0
    %v676 = vsel %vm256, %v660, 0.0
    %v677 = vadd.f32 %v675, %v676
    %v678 = vsel %vm256, %v661, 0.0
    %v679 = vadd.f32 %v677, %v678
    %v680 = vsel %vm256, %v662, 0.0
    %v681 = vadd.f32 %v679, %v680
    %v682 = vsel %vm256, %v663, 0.0
    %v683 = vadd.f32 %v681, %v682
    %v684 = vsel %vm256, %v664, 0.0
    %v685 = vadd.f32 %v683, %v684
    %v686 = vsel %vm256, %v665, 0.0
    %v687 = vadd.f32 %v685, %v686
    %v688 = vsel %vm256, %v666, 0.0
    %v689 = vadd.f32 %v687, %v688
    %v690 = vsel %vm256, %v667, 0.0
    %v691 = vadd.f32 %v689, %v690
    %v692 = vsel %vm256, %v668, 0.0
    %v693 = vadd.f32 %v691, %v692
    %v694 = vsel %vm256, %v669, 0.0
    %v695 = vadd.f32 %v693, %v694
    %v696 = vsel %vm256, %v670, 0.0
    %v697 = vadd.f32 %v695, %v696
    %v698 = vsel %vm256, %v671, 0.0
    %v699 = vadd.f32 %v697, %v698
    %v700 = vsel %vm256, %v672, 0.0
    %v701 = vadd.f32 %v699, %v700
    %v702 = vsel %vm256, %v673, 0.0
    %v703 = vadd.f32 %v701, %v702
    %v704 = vsel %vm256, %v674, 0.0
    %v705 = vadd.f32 %v703, %v704
    %v706 = vrot.slane %v705, 4
    %v707 = vadd.f32 %v705, %v706
    %v708 = vrot.slane %v707, 2
    %v709 = vadd.f32 %v707, %v708
    %v710 = vrot.slane %v709, 1
    %v711 = vadd.f32 %v709, %v710
    %v712 = vmul.f32 %v711, 0.008928572
    %v713 = vsub.f32 %v643, %v712
    %v714 = vsub.f32 %v644, %v712
    %v715 = vsub.f32 %v645, %v712
    %v716 = vsub.f32 %v646, %v712
    %v717 = vsub.f32 %v647, %v712
    %v718 = vsub.f32 %v648, %v712
    %v719 = vsub.f32 %v649, %v712
    %v720 = vsub.f32 %v650, %v712
    %v721 = vsub.f32 %v651, %v712
    %v722 = vsub.f32 %v652, %v712
    %v723 = vsub.f32 %v653, %v712
    %v724 = vsub.f32 %v654, %v712
    %v725 = vsub.f32 %v655, %v712
    %v726 = vsub.f32 %v656, %v712
    %v727 = vsub.f32 %v657, %v712
    %v728 = vsub.f32 %v658, %v712
    %v729 = vmul.f32 %v713, %v337
    %v730 = vmul.f32 %v714, %v338
    %v731 = vmul.f32 %v715, %v339
    %v732 = vmul.f32 %v716, %v340
    %v733 = vmul.f32 %v717, %v341
    %v734 = vmul.f32 %v718, %v342
    %v735 = vmul.f32 %v719, %v343
    %v736 = vmul.f32 %v720, %v344
    %v737 = vmul.f32 %v721, %v345
    %v738 = vmul.f32 %v722, %v346
    %v739 = vmul.f32 %v723, %v347
    %v740 = vmul.f32 %v724, %v348
    %v741 = vmul.f32 %v725, %v349
    %v742 = vmul.f32 %v726, %v350
    %v743 = vmul.f32 %v727, %v351
    %v744 = vmul.f32 %v728, %v352
    %v745 = vmul.f32 %v729, %v729
    %v746 = vmul.f32 %v730, %v730
    %v747 = vmul.f32 %v731, %v731
    %v748 = vmul.f32 %v732, %v732
    %v749 = vmul.f32 %v733, %v733
    %v750 = vmul.f32 %v734, %v734
    %v751 = vmul.f32 %v735, %v735
    %v752 = vmul.f32 %v736, %v736
    %v753 = vmul.f32 %v737, %v737
    %v754 = vmul.f32 %v738, %v738
    %v755 = vmul.f32 %v739, %v739
    %v756 = vmul.f32 %v740, %v740
    %v757 = vmul.f32 %v741, %v741
    %v758 = vmul.f32 %v742, %v742
    %v759 = vmul.f32 %v743, %v743
    %v760 = vmul.f32 %v744, %v744
    %v761 = vsel %vm256, %v745, 0.0
    %v762 = vsel %vm256, %v746, 0.0
    %v763 = vadd.f32 %v761, %v762
    %v764 = vsel %vm256, %v747, 0.0
    %v765 = vadd.f32 %v763, %v764
    %v766 = vsel %vm256, %v748, 0.0
    %v767 = vadd.f32 %v765, %v766
    %v768 = vsel %vm256, %v749, 0.0
    %v769 = vadd.f32 %v767, %v768
    %v770 = vsel %vm256, %v750, 0.0
    %v771 = vadd.f32 %v769, %v770
    %v772 = vsel %vm256, %v751, 0.0
    %v773 = vadd.f32 %v771, %v772
    %v774 = vsel %vm256, %v752, 0.0
    %v775 = vadd.f32 %v773, %v774
    %v776 = vsel %vm256, %v753, 0.0
    %v777 = vadd.f32 %v775, %v776
    %v778 = vsel %vm256, %v754, 0.0
    %v779 = vadd.f32 %v777, %v778
    %v780 = vsel %vm256, %v755, 0.0
    %v781 = vadd.f32 %v779, %v780
    %v782 = vsel %vm256, %v756, 0.0
    %v783 = vadd.f32 %v781, %v782
    %v784 = vsel %vm256, %v757, 0.0
    %v785 = vadd.f32 %v783, %v784
    %v786 = vsel %vm256, %v758, 0.0
    %v787 = vadd.f32 %v785, %v786
    %v788 = vsel %vm256, %v759, 0.0
    %v789 = vadd.f32 %v787, %v788
    %v790 = vsel %vm256, %v760, 0.0
    %v791 = vadd.f32 %v789, %v790
    %v792 = vrot.slane %v791, 4
    %v793 = vadd.f32 %v791, %v792
    %v794 = vrot.slane %v793, 2
    %v795 = vadd.f32 %v793, %v794
    %v796 = vrot.slane %v795, 1
    %v797 = vadd.f32 %v795, %v796
    %v798 = vmul.f32 %v797, 0.008928572
    %v799 = vadd.f32 %v798, 1e-05
    %v800 = vrsqrt.pop %v799
    %v801 = vmul.f32 %v713, %v800
    %v802 = vmul.f32 %v714, %v800
    %v803 = vmul.f32 %v715, %v800
    %v804 = vmul.f32 %v716, %v800
    %v805 = vmul.f32 %v717, %v800
    %v806 = vmul.f32 %v718, %v800
    %v807 = vmul.f32 %v719, %v800
    %v808 = vmul.f32 %v720, %v800
    %v809 = vmul.f32 %v721, %v800
    %v810 = vmul.f32 %v722, %v800
    %v811 = vmul.f32 %v723, %v800
    %v812 = vmul.f32 %v724, %v800
    %v813 = vmul.f32 %v725, %v800
    %v814 = vmul.f32 %v726, %v800
    %v815 = vmul.f32 %v727, %v800
    %v816 = vmul.f32 %v728, %v800
    %v817 = vlaneseq
    %v818 = vshrl.u32 %v817, 7
    %v819 = vsub.s32 0, %v818
    %v820 = vrot.slane %v362, %v819
    %v821 = vmul.f32 %v801, %v820
    %v822 = vmul.f32 %v802, %v820
    %v823 = vmul.f32 %v803, %v820
    %v824 = vmul.f32 %v804, %v820
    %v825 = vmul.f32 %v805, %v820
    %v826 = vmul.f32 %v806, %v820
    %v827 = vmul.f32 %v807, %v820
    %v828 = vmul.f32 %v808, %v820
    %v829 = vmul.f32 %v809, %v820
    %v830 = vmul.f32 %v810, %v820
    %v831 = vmul.f32 %v811, %v820
    %v832 = vmul.f32 %v812, %v820
    %v833 = vmul.f32 %v813, %v820
    %v834 = vmul.f32 %v814, %v820
    %v835 = vmul.f32 %v815, %v820
    %v836 = vmul.f32 %v816, %v820
    %v837 = vlaneseq
    %v838 = vshrl.u32 %v837, 7
    %v839 = vsub.s32 0, %v838
    %v840 = vrot.slane %v363, %v839
    %v841 = vadd.f32 %v821, %v840
    %v842 = vadd.f32 %v822, %v840
    %v843 = vadd.f32 %v823, %v840
    %v844 = vadd.f32 %v824, %v840
    %v845 = vadd.f32 %v825, %v840
    %v846 = vadd.f32 %v826, %v840
    %v847 = vadd.f32 %v827, %v840
    %v848 = vadd.f32 %v828, %v840
    %v849 = vadd.f32 %v829, %v840
    %v850 = vadd.f32 %v830, %v840
    %v851 = vadd.f32 %v831, %v840
    %v852 = vadd.f32 %v832, %v840
    %v853 = vadd.f32 %v833, %v840
    %v854 = vadd.f32 %v834, %v840
    %v855 = vadd.f32 %v835, %v840
    %v856 = vadd.f32 %v836, %v840
    %v857 = vld [vmem:[%s5] sm:$0xff]
    %v858 = vld [vmem:[%s5 + $0x8] sm:$0xff]
    %v859 = vld [vmem:[%s5 + $0x10] sm:$0xff]
    %v860 = vld [vmem:[%s5 + $0x18] sm:$0xff]
    %v861 = vlaneseq
    %v862 = vshrl.u32 %v861, 7
    %v863 = vsub.s32 0, %v862
    %v864 = vrot.slane %v364, %v863
    %v866 = vsel %vm256, %v841, 0
    %v869 = vsel %vm256, %v842, 0
    %v872 = vsel %vm256, %v843, 0
    %v875 = vsel %vm256, %v844, 0
    %v878 = vsel %vm256, %v845, 0
    %v881 = vsel %vm256, %v846, 0
    %v884 = vsel %vm256, %v847, 0
    %v887 = vsel %vm256, %v848, 0
    %v890 = vsel %vm256, %v849, 0
    %v893 = vsel %vm256, %v850, 0
    %v896 = vsel %vm256, %v851, 0
    %v899 = vsel %vm256, %v852, 0
    %v902 = vsel %vm256, %v853, 0
    %v905 = vsel %vm256, %v854, 0
    %v908 = vsel %vm256, %v855, 0
    %v911 = vsel %vm256, %v856, 0
    %913 = vmatprep.subr.mxu0 0.0
    %914 = vmatpush1.msra.mxu0 %v857
    %915 = vmatprep.subr.mxu0 0.0
    %916 = vmatpush1.msra.mxu0 %v858
    %917 = vmatprep.subr.mxu0 0.0
    %918 = vmatpush1.msra.mxu0 %v859
    %919 = vmatprep.subr.mxu0 0.0
    %920 = vmatpush1.msra.mxu0 %v860
    %921 = vmatprep.subr.mxu0 0.0
    %922 = vmatpush1.msra.mxu0 0.0
    %923 = vmatprep.subr.mxu0 0.0
    %924 = vmatpush1.msra.mxu0 0.0
    %925 = vmatprep.subr.mxu0 0.0
    %926 = vmatpush1.msra.mxu0 0.0
    %927 = vmatprep.subr.mxu0 0.0
    %928 = vmatpush1.msra.mxu0 0.0
    %929 = vmatprep.subr.mxu0 0.0
    %930 = vmatpush1.msra.mxu0 0.0
    %931 = vmatprep.subr.mxu0 0.0
    %932 = vmatpush1.msra.mxu0 0.0
    %933 = vmatprep.subr.mxu0 0.0
    %934 = vmatpush1.msra.mxu0 0.0
    %935 = vmatprep.subr.mxu0 0.0
    %936 = vmatpush1.msra.mxu0 0.0
    %937 = vmatprep.subr.mxu0 0.0
    %938 = vmatpush1.msra.mxu0 0.0
    %939 = vmatprep.subr.mxu0 0.0
    %940 = vmatpush1.msra.mxu0 0.0
    %941 = vmatprep.subr.mxu0 0.0
    %942 = vmatpush1.msra.mxu0 0.0
    %943 = vmatprep.subr.mxu0 0.0
    %944 = vmatpush1.msra.mxu0 0.0
    %945 = vmatprep.subr.mxu0 0.0
    %946 = vmatpush1.msra.mxu0 0.0
    %947 = vmatprep.subr.mxu0 0.0
    %948 = vmatpush1.msra.mxu0 0.0
    %949 = vmatprep.subr.mxu0 0.0
    %950 = vmatpush1.msra.mxu0 0.0
    %951 = vmatprep.subr.mxu0 0.0
    %952 = vmatpush1.msra.mxu0 0.0
    %953 = vmatprep.subr.mxu0 0.0
    %954 = vmatpush1.msra.mxu0 0.0
    %955 = vmatprep.subr.mxu0 0.0
    %956 = vmatpush1.msra.mxu0 0.0
    %957 = vmatprep.subr.mxu0 0.0
    %958 = vmatpush1.msra.mxu0 0.0
    %959 = vmatprep.subr.mxu0 0.0
    %960 = vmatpush1.msra.mxu0 0.0
    %961 = vmatprep.subr.mxu0 0.0
    %962 = vmatpush1.msra.mxu0 0.0
    %963 = vmatprep.subr.mxu0 0.0
    %964 = vmatpush1.msra.mxu0 0.0
    %965 = vmatprep.subr.mxu0 0.0
    %966 = vmatpush1.msra.mxu0 0.0
    %967 = vmatprep.subr.mxu0 0.0
    %968 = vmatpush1.msra.mxu0 0.0
    %969 = vmatprep.subr.mxu0 0.0
    %970 = vmatpush1.msra.mxu0 0.0
    %971 = vmatprep.subr.mxu0 0.0
    %972 = vmatpush1.msra.mxu0 0.0
    %973 = vmatprep.subr.mxu0 0.0
    %974 = vmatpush1.msra.mxu0 0.0
    %975 = vmatprep.subr.mxu0 0.0
    %976 = vmatpush1.msra.mxu0 0.0
    %977 = vmatprep.mubr.f32.mxu0 0.0
    %978 = vmatmul.mubr.f32.gmra.mrb[0].mxu0 %v866
    %v979 = vpop.f32.mrb[0].mxu0
    %v980 = vadd.f32 %v864, %v979
    %v981 = vpop.f32.mrb[0].mxu0
    %982 = vmatprep.mubr.f32.mxu0 0.0
    %983 = vmatmul.mubr.f32.gmra.mrb[0].mxu0 %v869
    %v984 = vpop.f32.mrb[0].mxu0
    %v985 = vadd.f32 %v864, %v984
    %v986 = vpop.f32.mrb[0].mxu0
    %987 = vmatprep.mubr.f32.mxu0 0.0
    %988 = vmatmul.mubr.f32.gmra.mrb[0].mxu0 %v872
    %v989 = vpop.f32.mrb[0].mxu0
    %v990 = vadd.f32 %v864, %v989
    %v991 = vpop.f32.mrb[0].mxu0
    %992 = vmatprep.mubr.f32.mxu0 0.0
    %993 = vmatmul.mubr.f32.gmra.mrb[0].mxu0 %v875
    %v994 = vpop.f32.mrb[0].mxu0
    %v995 = vadd.f32 %v864, %v994
    %v996 = vpop.f32.mrb[0].mxu0
    %997 = vmatprep.mubr.f32.mxu0 0.0
    %998 = vmatmul.mubr.f32.gmra.mrb[0].mxu0 %v878
    %v999 = vpop.f32.mrb[0].mxu0
    %v1000 = vadd.f32 %v864, %v999
    %v1001 = vpop.f32.mrb[0].mxu0
    %1002 = vmatprep.mubr.f32.mxu0 0.0
    %1003 = vmatmul.mubr.f32.gmra.mrb[0].mxu0 %v881
    %v1004 = vpop.f32.mrb[0].mxu0
    %v1005 = vadd.f32 %v864, %v1004
    %v1006 = vpop.f32.mrb[0].mxu0
    %1007 = vmatprep.mubr.f32.mxu0 0.0
    %1008 = vmatmul.mubr.f32.gmra.mrb[0].mxu0 %v884
    %v1009 = vpop.f32.mrb[0].mxu0
    %v1010 = vadd.f32 %v864, %v1009
    %v1011 = vpop.f32.mrb[0].mxu0
    %1012 = vmatprep.mubr.f32.mxu0 0.0
    %1013 = vmatmul.mubr.f32.gmra.mrb[0].mxu0 %v887
    %v1014 = vpop.f32.mrb[0].mxu0
    %v1015 = vadd.f32 %v864, %v1014
    %v1016 = vpop.f32.mrb[0].mxu0
    %1017 = vmatprep.mubr.f32.mxu0 0.0
    %1018 = vmatmul.mubr.f32.gmra.mrb[0].mxu0 %v890
    %v1019 = vpop.f32.mrb[0].mxu0
    %v1020 = vadd.f32 %v864, %v1019
    %v1021 = vpop.f32.mrb[0].mxu0
    %1022 = vmatprep.mubr.f32.mxu0 0.0
    %1023 = vmatmul.mubr.f32.gmra.mrb[0].mxu0 %v893
    %v1024 = vpop.f32.mrb[0].mxu0
    %v1025 = vadd.f32 %v864, %v1024
    %v1026 = vpop.f32.mrb[0].mxu0
    %1027 = vmatprep.mubr.f32.mxu0 0.0
    %1028 = vmatmul.mubr.f32.gmra.mrb[0].mxu0 %v896
    %v1029 = vpop.f32.mrb[0].mxu0
    %v1030 = vadd.f32 %v864, %v1029
    %v1031 = vpop.f32.mrb[0].mxu0
    %1032 = vmatprep.mubr.f32.mxu0 0.0
    %1033 = vmatmul.mubr.f32.gmra.mrb[0].mxu0 %v899
    %v1034 = vpop.f32.mrb[0].mxu0
    %v1035 = vadd.f32 %v864, %v1034
    %v1036 = vpop.f32.mrb[0].mxu0
    %1037 = vmatprep.mubr.f32.mxu0 0.0
    %1038 = vmatmul.mubr.f32.gmra.mrb[0].mxu0 %v902
    %v1039 = vpop.f32.mrb[0].mxu0
    %v1040 = vadd.f32 %v864, %v1039
    %v1041 = vpop.f32.mrb[0].mxu0
    %1042 = vmatprep.mubr.f32.mxu0 0.0
    %1043 = vmatmul.mubr.f32.gmra.mrb[0].mxu0 %v905
    %v1044 = vpop.f32.mrb[0].mxu0
    %v1045 = vadd.f32 %v864, %v1044
    %v1046 = vpop.f32.mrb[0].mxu0
    %1047 = vmatprep.mubr.f32.mxu0 0.0
    %1048 = vmatmul.mubr.f32.gmra.mrb[0].mxu0 %v908
    %v1049 = vpop.f32.mrb[0].mxu0
    %v1050 = vadd.f32 %v864, %v1049
    %v1051 = vpop.f32.mrb[0].mxu0
    %1052 = vmatprep.mubr.f32.mxu0 0.0
    %1053 = vmatmul.mubr.f32.gmra.mrb[0].mxu0 %v911
    %v1054 = vpop.f32.mrb[0].mxu0
    %v1055 = vadd.f32 %v864, %v1054
    %v1056 = vpop.f32.mrb[0].mxu0
    %1057 = vdwg.mxu0
    %v1058 = vmul.f32 %v980, 0.2
    %v1059 = vmul.f32 %v985, 0.2
    %v1060 = vmul.f32 %v990, 0.2
    %v1061 = vmul.f32 %v995, 0.2
    %v1062 = vmul.f32 %v1000, 0.2
    %v1063 = vmul.f32 %v1005, 0.2
    %v1064 = vmul.f32 %v1010, 0.2
    %v1065 = vmul.f32 %v1015, 0.2
    %v1066 = vmul.f32 %v1020, 0.2
    %v1067 = vmul.f32 %v1025, 0.2
    %v1068 = vmul.f32 %v1030, 0.2
    %v1069 = vmul.f32 %v1035, 0.2
    %v1070 = vmul.f32 %v1040, 0.2
    %v1071 = vmul.f32 %v1045, 0.2
    %v1072 = vmul.f32 %v1050, 0.2
    %v1073 = vmul.f32 %v1055, 0.2
    %v1074 = vmax.f32 %v980, %v1058
    %v1075 = vmax.f32 %v985, %v1059
    %v1076 = vmax.f32 %v990, %v1060
    %v1077 = vmax.f32 %v995, %v1061
    %v1078 = vmax.f32 %v1000, %v1062
    %v1079 = vmax.f32 %v1005, %v1063
    %v1080 = vmax.f32 %v1010, %v1064
    %v1081 = vmax.f32 %v1015, %v1065
    %v1082 = vmax.f32 %v1020, %v1066
    %v1083 = vmax.f32 %v1025, %v1067
    %v1084 = vmax.f32 %v1030, %v1068
    %v1085 = vmax.f32 %v1035, %v1069
    %v1086 = vmax.f32 %v1040, %v1070
    %v1087 = vmax.f32 %v1045, %v1071
    %v1088 = vmax.f32 %v1050, %v1072
    %v1089 = vmax.f32 %v1055, %v1073
    %1090 = vxpose.xlu0.b32.start [1/16] %v1074, 128
    %1091 = vxpose.xlu0.b32.cont [2/16] %v1075, 128
    %1092 = vxpose.xlu0.b32.cont [3/16] %v1076, 128
    %1093 = vxpose.xlu0.b32.cont [4/16] %v1077, 128
    %1094 = vxpose.xlu0.b32.cont [5/16] %v1078, 128
    %1095 = vxpose.xlu0.b32.cont [6/16] %v1079, 128
    %1096 = vxpose.xlu0.b32.cont [7/16] %v1080, 128
    %1097 = vxpose.xlu0.b32.cont [8/16] %v1081, 128
    %1098 = vxpose.xlu0.b32.cont [9/16] %v1082, 128
    %1099 = vxpose.xlu0.b32.cont [10/16] %v1083, 128
    %1100 = vxpose.xlu0.b32.cont [11/16] %v1084, 128
    %1101 = vxpose.xlu0.b32.cont [12/16] %v1085, 128
    %1102 = vxpose.xlu0.b32.cont [13/16] %v1086, 128
    %1103 = vxpose.xlu0.b32.cont [14/16] %v1087, 128
    %1104 = vxpose.xlu0.b32.cont [15/16] %v1088, 128
    %1105 = vxpose.xlu0.b32.end [16/16] %v1089, 128
    %v1106 = vpop.trf.xlu0
    %v1107 = vpop.trf.xlu0
    %v1108 = vpop.trf.xlu0
    %v1109 = vpop.trf.xlu0
    %v1110 = vpop.trf.xlu0
    %v1111 = vpop.trf.xlu0
    %v1112 = vpop.trf.xlu0
    %v1113 = vpop.trf.xlu0
    %v1114 = vpop.trf.xlu0
    %v1115 = vpop.trf.xlu0
    %v1116 = vpop.trf.xlu0
    %v1117 = vpop.trf.xlu0
    %v1118 = vpop.trf.xlu0
    %v1119 = vpop.trf.xlu0
    %v1120 = vpop.trf.xlu0
    %v1121 = vpop.trf.xlu0
    %vm1122 = vcmp.gt.bf16.partialorder %v238, 0
    %v1123 = vsel %vm1122, 65537, 0
    %v1124 = vunpack.c.l.b16 %v1123
    %vm1125 = vcmp.ne.s32.totalorder %v1124, 0
    %v1126 = vsel %vm1125, 1, 0
    %v1127 = vlaneseq
    %v1128 = vshrl.u32 %v1127, 7
    %v1129 = vsub.s32 0, %v1128
    %v1130 = vrot.slane %v1126, %v1129
    %vm1131 = vcmp.eq.s32.totalorder %v1130, 1
    %v1132 = vsel %vm1131, %v1106, -inf
    %v1133 = vsel %vm1131, %v1107, -inf
    %v1134 = vsel %vm1131, %v1108, -inf
    %v1135 = vsel %vm1131, %v1109, -inf
    %1136 = vmax.xlane.f32.xlu0 %v1132
    %v1137 = vpop.xlane.xlu0 %1136
    %1138 = vmax.xlane.f32.xlu0 %v1133
    %v1139 = vpop.xlane.xlu0 %1138
    %1140 = vmax.xlane.f32.xlu0 %v1134
    %v1141 = vpop.xlane.xlu0 %1140
    %1142 = vmax.xlane.f32.xlu0 %v1135
    %v1143 = vpop.xlane.xlu0 %1142
    %v1144 = vrot.slane %v1126, 1
    %vm1145 = vcmp.ne.s32.totalorder %v1144, 0
    %v1146 = vsel %vm1145, 1, 0
    %v1147 = vlaneseq
    %v1148 = vshrl.u32 %v1147, 7
    %v1149 = vsub.s32 0, %v1148
    %v1150 = vrot.slane %v1146, %v1149
    %vm1151 = vcmp.eq.s32.totalorder %v1150, 1
    %v1152 = vsel %vm1151, %v1106, -inf
    %v1153 = vsel %vm1151, %v1107, -inf
    %v1154 = vsel %vm1151, %v1108, -inf
    %v1155 = vsel %vm1151, %v1109, -inf
    %1156 = vmax.xlane.f32.xlu0 %v1152
    %v1157 = vpop.xlane.xlu0 %1156
    %1158 = vmax.xlane.f32.xlu0 %v1153
    %v1159 = vpop.xlane.xlu0 %1158
    %1160 = vmax.xlane.f32.xlu0 %v1154
    %v1161 = vpop.xlane.xlu0 %1160
    %1162 = vmax.xlane.f32.xlu0 %v1155
    %v1163 = vpop.xlane.xlu0 %1162
    %v1164 = vrot.slane %v1126, 2
    %vm1165 = vcmp.ne.s32.totalorder %v1164, 0
    %v1166 = vsel %vm1165, 1, 0
    %v1167 = vlaneseq
    %v1168 = vshrl.u32 %v1167, 7
    %v1169 = vsub.s32 0, %v1168
    %v1170 = vrot.slane %v1166, %v1169
    %vm1171 = vcmp.eq.s32.totalorder %v1170, 1
    %v1172 = vsel %vm1171, %v1106, -inf
    %v1173 = vsel %vm1171, %v1107, -inf
    %v1174 = vsel %vm1171, %v1108, -inf
    %v1175 = vsel %vm1171, %v1109, -inf
    %1176 = vmax.xlane.f32.xlu0 %v1172
    %v1177 = vpop.xlane.xlu0 %1176
    %1178 = vmax.xlane.f32.xlu0 %v1173
    %v1179 = vpop.xlane.xlu0 %1178
    %1180 = vmax.xlane.f32.xlu0 %v1174
    %v1181 = vpop.xlane.xlu0 %1180
    %1182 = vmax.xlane.f32.xlu0 %v1175
    %v1183 = vpop.xlane.xlu0 %1182
    %v1184 = vrot.slane %v1126, 3
    %vm1185 = vcmp.ne.s32.totalorder %v1184, 0
    %v1186 = vsel %vm1185, 1, 0
    %v1187 = vlaneseq
    %v1188 = vshrl.u32 %v1187, 7
    %v1189 = vsub.s32 0, %v1188
    %v1190 = vrot.slane %v1186, %v1189
    %vm1191 = vcmp.eq.s32.totalorder %v1190, 1
    %v1192 = vsel %vm1191, %v1106, -inf
    %v1193 = vsel %vm1191, %v1107, -inf
    %v1194 = vsel %vm1191, %v1108, -inf
    %v1195 = vsel %vm1191, %v1109, -inf
    %1196 = vmax.xlane.f32.xlu0 %v1192
    %v1197 = vpop.xlane.xlu0 %1196
    %1198 = vmax.xlane.f32.xlu0 %v1193
    %v1199 = vpop.xlane.xlu0 %1198
    %1200 = vmax.xlane.f32.xlu0 %v1194
    %v1201 = vpop.xlane.xlu0 %1200
    %1202 = vmax.xlane.f32.xlu0 %v1195
    %v1203 = vpop.xlane.xlu0 %1202
    %v1204 = vrot.slane %v1126, 4
    %vm1205 = vcmp.ne.s32.totalorder %v1204, 0
    %v1206 = vsel %vm1205, 1, 0
    %v1207 = vlaneseq
    %v1208 = vshrl.u32 %v1207, 7
    %v1209 = vsub.s32 0, %v1208
    %v1210 = vrot.slane %v1206, %v1209
    %vm1211 = vcmp.eq.s32.totalorder %v1210, 1
    %v1212 = vsel %vm1211, %v1106, -inf
    %v1213 = vsel %vm1211, %v1107, -inf
    %v1214 = vsel %vm1211, %v1108, -inf
    %v1215 = vsel %vm1211, %v1109, -inf
    %1216 = vmax.xlane.f32.xlu0 %v1212
    %v1217 = vpop.xlane.xlu0 %1216
    %1218 = vmax.xlane.f32.xlu0 %v1213
    %v1219 = vpop.xlane.xlu0 %1218
    %1220 = vmax.xlane.f32.xlu0 %v1214
    %v1221 = vpop.xlane.xlu0 %1220
    %1222 = vmax.xlane.f32.xlu0 %v1215
    %v1223 = vpop.xlane.xlu0 %1222
    %v1224 = vrot.slane %v1126, 5
    %vm1225 = vcmp.ne.s32.totalorder %v1224, 0
    %v1226 = vsel %vm1225, 1, 0
    %v1227 = vlaneseq
    %v1228 = vshrl.u32 %v1227, 7
    %v1229 = vsub.s32 0, %v1228
    %v1230 = vrot.slane %v1226, %v1229
    %vm1231 = vcmp.eq.s32.totalorder %v1230, 1
    %v1232 = vsel %vm1231, %v1106, -inf
    %v1233 = vsel %vm1231, %v1107, -inf
    %v1234 = vsel %vm1231, %v1108, -inf
    %v1235 = vsel %vm1231, %v1109, -inf
    %1236 = vmax.xlane.f32.xlu0 %v1232
    %v1237 = vpop.xlane.xlu0 %1236
    %1238 = vmax.xlane.f32.xlu0 %v1233
    %v1239 = vpop.xlane.xlu0 %1238
    %1240 = vmax.xlane.f32.xlu0 %v1234
    %v1241 = vpop.xlane.xlu0 %1240
    %1242 = vmax.xlane.f32.xlu0 %v1235
    %v1243 = vpop.xlane.xlu0 %1242
    %v1244 = vrot.slane %v1126, 6
    %vm1245 = vcmp.ne.s32.totalorder %v1244, 0
    %v1246 = vsel %vm1245, 1, 0
    %v1247 = vlaneseq
    %v1248 = vshrl.u32 %v1247, 7
    %v1249 = vsub.s32 0, %v1248
    %v1250 = vrot.slane %v1246, %v1249
    %vm1251 = vcmp.eq.s32.totalorder %v1250, 1
    %v1252 = vsel %vm1251, %v1106, -inf
    %v1253 = vsel %vm1251, %v1107, -inf
    %v1254 = vsel %vm1251, %v1108, -inf
    %v1255 = vsel %vm1251, %v1109, -inf
    %1256 = vmax.xlane.f32.xlu0 %v1252
    %v1257 = vpop.xlane.xlu0 %1256
    %1258 = vmax.xlane.f32.xlu0 %v1253
    %v1259 = vpop.xlane.xlu0 %1258
    %1260 = vmax.xlane.f32.xlu0 %v1254
    %v1261 = vpop.xlane.xlu0 %1260
    %1262 = vmax.xlane.f32.xlu0 %v1255
    %v1263 = vpop.xlane.xlu0 %1262
    %v1264 = vrot.slane %v1126, 7
    %vm1265 = vcmp.ne.s32.totalorder %v1264, 0
    %v1266 = vsel %vm1265, 1, 0
    %v1267 = vlaneseq
    %v1268 = vshrl.u32 %v1267, 7
    %v1269 = vsub.s32 0, %v1268
    %v1270 = vrot.slane %v1266, %v1269
    %vm1271 = vcmp.eq.s32.totalorder %v1270, 1
    %v1272 = vsel %vm1271, %v1106, -inf
    %v1273 = vsel %vm1271, %v1107, -inf
    %v1274 = vsel %vm1271, %v1108, -inf
    %v1275 = vsel %vm1271, %v1109, -inf
    %1276 = vmax.xlane.f32.xlu0 %v1272
    %v1277 = vpop.xlane.xlu0 %1276
    %1278 = vmax.xlane.f32.xlu0 %v1273
    %v1279 = vpop.xlane.xlu0 %1278
    %1280 = vmax.xlane.f32.xlu0 %v1274
    %v1281 = vpop.xlane.xlu0 %1280
    %1282 = vmax.xlane.f32.xlu0 %v1275
    %v1283 = vpop.xlane.xlu0 %1282
    %vm1284 = vcmp.gt.bf16.partialorder %v239, 0
    %v1285 = vsel %vm1284, 65537, 0
    %v1286 = vunpack.c.l.b16 %v1285
    %vm1287 = vcmp.ne.s32.totalorder %v1286, 0
    %v1288 = vsel %vm1287, 1, 0
    %v1289 = vlaneseq
    %v1290 = vshrl.u32 %v1289, 7
    %v1291 = vsub.s32 0, %v1290
    %v1292 = vrot.slane %v1288, %v1291
    %vm1293 = vcmp.eq.s32.totalorder %v1292, 1
    %v1294 = vsel %vm1293, %v1106, -inf
    %v1295 = vsel %vm1293, %v1107, -inf
    %v1296 = vsel %vm1293, %v1108, -inf
    %v1297 = vsel %vm1293, %v1109, -inf
    %1298 = vmax.xlane.f32.xlu0 %v1294
    %v1299 = vpop.xlane.xlu0 %1298
    %1300 = vmax.xlane.f32.xlu0 %v1295
    %v1301 = vpop.xlane.xlu0 %1300
    %1302 = vmax.xlane.f32.xlu0 %v1296
    %v1303 = vpop.xlane.xlu0 %1302
    %1304 = vmax.xlane.f32.xlu0 %v1297
    %v1305 = vpop.xlane.xlu0 %1304
    %v1306 = vrot.slane %v1288, 1
    %vm1307 = vcmp.ne.s32.totalorder %v1306, 0
    %v1308 = vsel %vm1307, 1, 0
    %v1309 = vlaneseq
    %v1310 = vshrl.u32 %v1309, 7
    %v1311 = vsub.s32 0, %v1310
    %v1312 = vrot.slane %v1308, %v1311
    %vm1313 = vcmp.eq.s32.totalorder %v1312, 1
    %v1314 = vsel %vm1313, %v1106, -inf
    %v1315 = vsel %vm1313, %v1107, -inf
    %v1316 = vsel %vm1313, %v1108, -inf
    %v1317 = vsel %vm1313, %v1109, -inf
    %1318 = vmax.xlane.f32.xlu0 %v1314
    %v1319 = vpop.xlane.xlu0 %1318
    %1320 = vmax.xlane.f32.xlu0 %v1315
    %v1321 = vpop.xlane.xlu0 %1320
    %1322 = vmax.xlane.f32.xlu0 %v1316
    %v1323 = vpop.xlane.xlu0 %1322
    %1324 = vmax.xlane.f32.xlu0 %v1317
    %v1325 = vpop.xlane.xlu0 %1324
    %v1326 = vrot.slane %v1288, 2
    %vm1327 = vcmp.ne.s32.totalorder %v1326, 0
    %v1328 = vsel %vm1327, 1, 0
    %v1329 = vlaneseq
    %v1330 = vshrl.u32 %v1329, 7
    %v1331 = vsub.s32 0, %v1330
    %v1332 = vrot.slane %v1328, %v1331
    %vm1333 = vcmp.eq.s32.totalorder %v1332, 1
    %v1334 = vsel %vm1333, %v1106, -inf
    %v1335 = vsel %vm1333, %v1107, -inf
    %v1336 = vsel %vm1333, %v1108, -inf
    %v1337 = vsel %vm1333, %v1109, -inf
    %1338 = vmax.xlane.f32.xlu0 %v1334
    %v1339 = vpop.xlane.xlu0 %1338
    %1340 = vmax.xlane.f32.xlu0 %v1335
    %v1341 = vpop.xlane.xlu0 %1340
    %1342 = vmax.xlane.f32.xlu0 %v1336
    %v1343 = vpop.xlane.xlu0 %1342
    %1344 = vmax.xlane.f32.xlu0 %v1337
    %v1345 = vpop.xlane.xlu0 %1344
    %v1346 = vrot.slane %v1288, 3
    %vm1347 = vcmp.ne.s32.totalorder %v1346, 0
    %v1348 = vsel %vm1347, 1, 0
    %v1349 = vlaneseq
    %v1350 = vshrl.u32 %v1349, 7
    %v1351 = vsub.s32 0, %v1350
    %v1352 = vrot.slane %v1348, %v1351
    %vm1353 = vcmp.eq.s32.totalorder %v1352, 1
    %v1354 = vsel %vm1353, %v1106, -inf
    %v1355 = vsel %vm1353, %v1107, -inf
    %v1356 = vsel %vm1353, %v1108, -inf
    %v1357 = vsel %vm1353, %v1109, -inf
    %1358 = vmax.xlane.f32.xlu0 %v1354
    %v1359 = vpop.xlane.xlu0 %1358
    %1360 = vmax.xlane.f32.xlu0 %v1355
    %v1361 = vpop.xlane.xlu0 %1360
    %1362 = vmax.xlane.f32.xlu0 %v1356
    %v1363 = vpop.xlane.xlu0 %1362
    %1364 = vmax.xlane.f32.xlu0 %v1357
    %v1365 = vpop.xlane.xlu0 %1364
    %v1366 = vrot.slane %v1288, 4
    %vm1367 = vcmp.ne.s32.totalorder %v1366, 0
    %v1368 = vsel %vm1367, 1, 0
    %v1369 = vlaneseq
    %v1370 = vshrl.u32 %v1369, 7
    %v1371 = vsub.s32 0, %v1370
    %v1372 = vrot.slane %v1368, %v1371
    %vm1373 = vcmp.eq.s32.totalorder %v1372, 1
    %v1374 = vsel %vm1373, %v1106, -inf
    %v1375 = vsel %vm1373, %v1107, -inf
    %v1376 = vsel %vm1373, %v1108, -inf
    %v1377 = vsel %vm1373, %v1109, -inf
    %1378 = vmax.xlane.f32.xlu0 %v1374
    %v1379 = vpop.xlane.xlu0 %1378
    %1380 = vmax.xlane.f32.xlu0 %v1375
    %v1381 = vpop.xlane.xlu0 %1380
    %1382 = vmax.xlane.f32.xlu0 %v1376
    %v1383 = vpop.xlane.xlu0 %1382
    %1384 = vmax.xlane.f32.xlu0 %v1377
    %v1385 = vpop.xlane.xlu0 %1384
    %v1386 = vrot.slane %v1288, 5
    %vm1387 = vcmp.ne.s32.totalorder %v1386, 0
    %v1388 = vsel %vm1387, 1, 0
    %v1389 = vlaneseq
    %v1390 = vshrl.u32 %v1389, 7
    %v1391 = vsub.s32 0, %v1390
    %v1392 = vrot.slane %v1388, %v1391
    %vm1393 = vcmp.eq.s32.totalorder %v1392, 1
    %v1394 = vsel %vm1393, %v1106, -inf
    %v1395 = vsel %vm1393, %v1107, -inf
    %v1396 = vsel %vm1393, %v1108, -inf
    %v1397 = vsel %vm1393, %v1109, -inf
    %1398 = vmax.xlane.f32.xlu0 %v1394
    %v1399 = vpop.xlane.xlu0 %1398
    %1400 = vmax.xlane.f32.xlu0 %v1395
    %v1401 = vpop.xlane.xlu0 %1400
    %1402 = vmax.xlane.f32.xlu0 %v1396
    %v1403 = vpop.xlane.xlu0 %1402
    %1404 = vmax.xlane.f32.xlu0 %v1397
    %v1405 = vpop.xlane.xlu0 %1404
    %v1406 = vrot.slane %v1288, 6
    %vm1407 = vcmp.ne.s32.totalorder %v1406, 0
    %v1408 = vsel %vm1407, 1, 0
    %v1409 = vlaneseq
    %v1410 = vshrl.u32 %v1409, 7
    %v1411 = vsub.s32 0, %v1410
    %v1412 = vrot.slane %v1408, %v1411
    %vm1413 = vcmp.eq.s32.totalorder %v1412, 1
    %v1414 = vsel %vm1413, %v1106, -inf
    %v1415 = vsel %vm1413, %v1107, -inf
    %v1416 = vsel %vm1413, %v1108, -inf
    %v1417 = vsel %vm1413, %v1109, -inf
    %1418 = vmax.xlane.f32.xlu0 %v1414
    %v1419 = vpop.xlane.xlu0 %1418
    %1420 = vmax.xlane.f32.xlu0 %v1415
    %v1421 = vpop.xlane.xlu0 %1420
    %1422 = vmax.xlane.f32.xlu0 %v1416
    %v1423 = vpop.xlane.xlu0 %1422
    %1424 = vmax.xlane.f32.xlu0 %v1417
    %v1425 = vpop.xlane.xlu0 %1424
    %v1426 = vrot.slane %v1288, 7
    %vm1427 = vcmp.ne.s32.totalorder %v1426, 0
    %v1428 = vsel %vm1427, 1, 0
    %v1429 = vlaneseq
    %v1430 = vshrl.u32 %v1429, 7
    %v1431 = vsub.s32 0, %v1430
    %v1432 = vrot.slane %v1428, %v1431
    %vm1433 = vcmp.eq.s32.totalorder %v1432, 1
    %v1434 = vsel %vm1433, %v1106, -inf
    %v1435 = vsel %vm1433, %v1107, -inf
    %v1436 = vsel %vm1433, %v1108, -inf
    %v1437 = vsel %vm1433, %v1109, -inf
    %1438 = vmax.xlane.f32.xlu0 %v1434
    %v1439 = vpop.xlane.xlu0 %1438
    %1440 = vmax.xlane.f32.xlu0 %v1435
    %v1441 = vpop.xlane.xlu0 %1440
    %1442 = vmax.xlane.f32.xlu0 %v1436
    %v1443 = vpop.xlane.xlu0 %1442
    %1444 = vmax.xlane.f32.xlu0 %v1437
    %v1445 = vpop.xlane.xlu0 %1444
    %vm1446 = vcmask 7168
    %v1447 = vsel %vm1446, %v1137, %v1157
    %v1448 = vsel %vm1446, %v1139, %v1159
    %v1449 = vsel %vm1446, %v1141, %v1161
    %v1450 = vsel %vm1446, %v1143, %v1163
    %vm1451 = vcmask 15360
    %v1452 = vsel %vm1451, %v1447, %v1177
    %v1453 = vsel %vm1451, %v1448, %v1179
    %v1454 = vsel %vm1451, %v1449, %v1181
    %v1455 = vsel %vm1451, %v1450, %v1183
    %vm1456 = vcmask 23552
    %v1457 = vsel %vm1456, %v1452, %v1197
    %v1458 = vsel %vm1456, %v1453, %v1199
    %v1459 = vsel %vm1456, %v1454, %v1201
    %v1460 = vsel %vm1456, %v1455, %v1203
    %v1461 = vsel %vm366, %v1457, %v1217
    %v1462 = vsel %vm366, %v1458, %v1219
    %v1463 = vsel %vm366, %v1459, %v1221
    %v1464 = vsel %vm366, %v1460, %v1223
    %vm1465 = vcmask 39936
    %v1466 = vsel %vm1465, %v1461, %v1237
    %v1467 = vsel %vm1465, %v1462, %v1239
    %v1468 = vsel %vm1465, %v1463, %v1241
    %v1469 = vsel %vm1465, %v1464, %v1243
    %vm1470 = vcmask 48128
    %v1471 = vsel %vm1470, %v1466, %v1257
    %v1472 = vsel %vm1470, %v1467, %v1259
    %v1473 = vsel %vm1470, %v1468, %v1261
    %v1474 = vsel %vm1470, %v1469, %v1263
    %vm1475 = vcmask 56320
    %v1476 = vsel %vm1475, %v1471, %v1277
    %v1477 = vsel %vm1475, %v1472, %v1279
    %v1478 = vsel %vm1475, %v1473, %v1281
    %v1479 = vsel %vm1475, %v1474, %v1283
    %vm1480 = vcmask 64512
    %v1481 = vsel %vm1480, %v1476, %v1299
    %v1482 = vsel %vm1480, %v1477, %v1301
    %v1483 = vsel %vm1480, %v1478, %v1303
    %v1484 = vsel %vm1480, %v1479, %v1305
    %vm1485 = vcmask 72704
    %v1486 = vsel %vm1485, %v1481, %v1319
    %v1487 = vsel %vm1485, %v1482, %v1321
    %v1488 = vsel %vm1485, %v1483, %v1323
    %v1489 = vsel %vm1485, %v1484, %v1325
    %vm1490 = vcmask 80896
    %v1491 = vsel %vm1490, %v1486, %v1339
    %v1492 = vsel %vm1490, %v1487, %v1341
    %v1493 = vsel %vm1490, %v1488, %v1343
    %v1494 = vsel %vm1490, %v1489, %v1345
    %vm1495 = vcmask 89088
    %v1496 = vsel %vm1495, %v1491, %v1359
    %v1497 = vsel %vm1495, %v1492, %v1361
    %v1498 = vsel %vm1495, %v1493, %v1363
    %v1499 = vsel %vm1495, %v1494, %v1365
    %vm1500 = vcmask 97280
    %v1501 = vsel %vm1500, %v1496, %v1379
    %v1502 = vsel %vm1500, %v1497, %v1381
    %v1503 = vsel %vm1500, %v1498, %v1383
    %v1504 = vsel %vm1500, %v1499, %v1385
    %vm1505 = vcmask 105472
    %v1506 = vsel %vm1505, %v1501, %v1399
    %v1507 = vsel %vm1505, %v1502, %v1401
    %v1508 = vsel %vm1505, %v1503, %v1403
    %v1509 = vsel %vm1505, %v1504, %v1405
    %vm1510 = vcmask 113664
    %v1511 = vsel %vm1510, %v1506, %v1419
    %v1512 = vsel %vm1510, %v1507, %v1421
    %v1513 = vsel %vm1510, %v1508, %v1423
    %v1514 = vsel %vm1510, %v1509, %v1425
    %vm1515 = vcmask 121856
    %v1516 = vsel %vm1515, %v1511, %v1439
    %v1517 = vsel %vm1515, %v1512, %v1441
    %v1518 = vsel %vm1515, %v1513, %v1443
    %v1519 = vsel %vm1515, %v1514, %v1445
    %1520 = vxpose.xlu0.b32.start [1/16] %v1516, 128
    %1521 = vxpose.xlu0.b32.cont [2/16] %v1517, 128
    %1522 = vxpose.xlu0.b32.cont [3/16] %v1518, 128
    %1523 = vxpose.xlu0.b32.cont [4/16] %v1519, 128
    %1524 = vxpose.xlu0.b32.cont [5/16] 0.0, 128
    %1525 = vxpose.xlu0.b32.cont [6/16] 0.0, 128
    %1526 = vxpose.xlu0.b32.cont [7/16] 0.0, 128
    %1527 = vxpose.xlu0.b32.cont [8/16] 0.0, 128
    %1528 = vxpose.xlu0.b32.cont [9/16] 0.0, 128
    %1529 = vxpose.xlu0.b32.cont [10/16] 0.0, 128
    %1530 = vxpose.xlu0.b32.cont [11/16] 0.0, 128
    %1531 = vxpose.xlu0.b32.cont [12/16] 0.0, 128
    %1532 = vxpose.xlu0.b32.cont [13/16] 0.0, 128
    %1533 = vxpose.xlu0.b32.cont [14/16] 0.0, 128
    %1534 = vxpose.xlu0.b32.cont [15/16] 0.0, 128
    %1535 = vxpose.xlu0.b32.end [16/16] 0.0, 128
    %v1536 = vpop.trf.xlu0
    %v1537 = vpop.trf.xlu0
    %v1538 = vpop.trf.xlu0
    %v1539 = vpop.trf.xlu0
    %v1540 = vpop.trf.xlu0
    %v1541 = vpop.trf.xlu0
    %v1542 = vpop.trf.xlu0
    %v1543 = vpop.trf.xlu0
    %v1544 = vpop.trf.xlu0
    %v1545 = vpop.trf.xlu0
    %v1546 = vpop.trf.xlu0
    %v1547 = vpop.trf.xlu0
    %v1548 = vpop.trf.xlu0
    %v1549 = vpop.trf.xlu0
    %v1550 = vpop.trf.xlu0
    %v1551 = vpop.trf.xlu0
    %vm1552 = vcmp.gt.f32.partialorder %v356, 0.0
    %vm1553 = vcmp.gt.f32.partialorder %v358, 0.0
    %v1554 = vsel %vm1552, 1, 0
    %v1555 = vsel %vm1553, 1, 0
    %vm1556 = vcmp.eq.s32.totalorder %v1554, 1
    %vm1557 = vcmp.eq.s32.totalorder %v1555, 1
    %v1558 = vsel %vm1556, %v1536, 0.0
    %v1559 = vsel %vm1557, %v1537, 0.0
    %v1560 = vld [vmem:[#allocation10] sm:$0x1]
    %v1561 = vld [vmem:[#allocation10 + $0x1] sm:$0x1]
    %v1562 = vld [vmem:[#allocation10 + $0x2] sm:$0x1]
    %v1563 = vld [vmem:[#allocation10 + $0x3] sm:$0x1]
    %v1564 = vld [vmem:[%s7] sm:$0xff]
    %v1565 = vld [vmem:[%s7 + $0x8] sm:$0xff]
    %v1566 = vld [vmem:[%s7 + $0x10] sm:$0xff]
    %v1567 = vld [vmem:[%s7 + $0x18] sm:$0xff]
    %v1569 = vsel %vm256, %v1558, 0
    %v1572 = vsel %vm256, %v1559, 0
    %1574 = vmatprep.subr.mxu0 0.0
    %1575 = vmatpush1.msra.mxu0 %v1564
    %1576 = vmatprep.subr.mxu0 0.0
    %1577 = vmatpush1.msra.mxu0 %v1565
    %1578 = vmatprep.subr.mxu0 0.0
    %1579 = vmatpush1.msra.mxu0 %v1566
    %1580 = vmatprep.subr.mxu0 0.0
    %1581 = vmatpush1.msra.mxu0 %v1567
    %1582 = vmatprep.subr.mxu0 0.0
    %1583 = vmatpush1.msra.mxu0 0.0
    %1584 = vmatprep.subr.mxu0 0.0
    %1585 = vmatpush1.msra.mxu0 0.0
    %1586 = vmatprep.subr.mxu0 0.0
    %1587 = vmatpush1.msra.mxu0 0.0
    %1588 = vmatprep.subr.mxu0 0.0
    %1589 = vmatpush1.msra.mxu0 0.0
    %1590 = vmatprep.subr.mxu0 0.0
    %1591 = vmatpush1.msra.mxu0 0.0
    %1592 = vmatprep.subr.mxu0 0.0
    %1593 = vmatpush1.msra.mxu0 0.0
    %1594 = vmatprep.subr.mxu0 0.0
    %1595 = vmatpush1.msra.mxu0 0.0
    %1596 = vmatprep.subr.mxu0 0.0
    %1597 = vmatpush1.msra.mxu0 0.0
    %1598 = vmatprep.subr.mxu0 0.0
    %1599 = vmatpush1.msra.mxu0 0.0
    %1600 = vmatprep.subr.mxu0 0.0
    %1601 = vmatpush1.msra.mxu0 0.0
    %1602 = vmatprep.subr.mxu0 0.0
    %1603 = vmatpush1.msra.mxu0 0.0
    %1604 = vmatprep.subr.mxu0 0.0
    %1605 = vmatpush1.msra.mxu0 0.0
    %1606 = vmatprep.subr.mxu0 0.0
    %1607 = vmatpush1.msra.mxu0 0.0
    %1608 = vmatprep.subr.mxu0 0.0
    %1609 = vmatpush1.msra.mxu0 0.0
    %1610 = vmatprep.subr.mxu0 0.0
    %1611 = vmatpush1.msra.mxu0 0.0
    %1612 = vmatprep.subr.mxu0 0.0
    %1613 = vmatpush1.msra.mxu0 0.0
    %1614 = vmatprep.subr.mxu0 0.0
    %1615 = vmatpush1.msra.mxu0 0.0
    %1616 = vmatprep.subr.mxu0 0.0
    %1617 = vmatpush1.msra.mxu0 0.0
    %1618 = vmatprep.subr.mxu0 0.0
    %1619 = vmatpush1.msra.mxu0 0.0
    %1620 = vmatprep.subr.mxu0 0.0
    %1621 = vmatpush1.msra.mxu0 0.0
    %1622 = vmatprep.subr.mxu0 0.0
    %1623 = vmatpush1.msra.mxu0 0.0
    %1624 = vmatprep.subr.mxu0 0.0
    %1625 = vmatpush1.msra.mxu0 0.0
    %1626 = vmatprep.subr.mxu0 0.0
    %1627 = vmatpush1.msra.mxu0 0.0
    %1628 = vmatprep.subr.mxu0 0.0
    %1629 = vmatpush1.msra.mxu0 0.0
    %1630 = vmatprep.subr.mxu0 0.0
    %1631 = vmatpush1.msra.mxu0 0.0
    %1632 = vmatprep.subr.mxu0 0.0
    %1633 = vmatpush1.msra.mxu0 0.0
    %1634 = vmatprep.subr.mxu0 0.0
    %1635 = vmatpush1.msra.mxu0 0.0
    %1636 = vmatprep.subr.mxu0 0.0
    %1637 = vmatpush1.msra.mxu0 0.0
    %1638 = vmatprep.mubr.f32.mxu0 0.0
    %1639 = vmatmul.mubr.f32.gmra.mrb[0].mxu0 %v1569
    %v1640 = vpop.f32.mrb[0].mxu0
    %v1641 = vadd.f32 0.0, %v1640
    %v1642 = vpop.f32.mrb[0].mxu0
    %1643 = vmatprep.mubr.f32.mxu0 0.0
    %1644 = vmatmul.mubr.f32.gmra.mrb[0].mxu0 %v1572
    %v1645 = vpop.f32.mrb[0].mxu0
    %v1646 = vadd.f32 0.0, %v1645
    %v1647 = vpop.f32.mrb[0].mxu0
    %1648 = vdwg.mxu0
    %1651 = vrot.lane.b32.xlu0 %v1641, 96
    %v1652 = vpop.permute.xlu0 %1651
    %1653 = vrot.lane.b32.xlu0 %v1646, 96
    %v1654 = vpop.permute.xlu0 %1653
    %v1657 = vpack.c.bf16 %v1646, %v1641
    %v1658 = vpack.c.bf16 %v1654, %v1652
    %v1659 = vlaneseq
    %v1660 = vshrl.u32 %v1659, 7
    %v1661 = vsub.s32 0, %v1660
    %v1662 = vrot.slane %v1560, %v1661
    %1663 = vmatprep.subr.bf16.mxu0 0
    %1664 = vmatpush1.bf16.msra.mxu0 %v1657
    %1665 = vmatprep.subr.bf16.mxu0 0
    %1666 = vmatpush1.bf16.msra.mxu0 %v1658
    %1667 = vmatprep.subr.bf16.mxu0 0
    %1668 = vmatpush1.bf16.msra.mxu0 0
    %1669 = vmatprep.subr.bf16.mxu0 0
    %1670 = vmatpush1.bf16.msra.mxu0 0
    %1671 = vmatprep.subr.bf16.mxu0 0
    %1672 = vmatpush1.bf16.msra.mxu0 0
    %1673 = vmatprep.subr.bf16.mxu0 0
    %1674 = vmatpush1.bf16.msra.mxu0 0
    %1675 = vmatprep.subr.bf16.mxu0 0
    %1676 = vmatpush1.bf16.msra.mxu0 0
    %1677 = vmatprep.subr.bf16.mxu0 0
    %1678 = vmatpush1.bf16.msra.mxu0 0
    %1679 = vmatprep.subr.bf16.mxu0 0
    %1680 = vmatpush1.bf16.msra.mxu0 0
    %1681 = vmatprep.subr.bf16.mxu0 0
    %1682 = vmatpush1.bf16.msra.mxu0 0
    %1683 = vmatprep.subr.bf16.mxu0 0
    %1684 = vmatpush1.bf16.msra.mxu0 0
    %1685 = vmatprep.subr.bf16.mxu0 0
    %1686 = vmatpush1.bf16.msra.mxu0 0
    %1687 = vmatprep.subr.bf16.mxu0 0
    %1688 = vmatpush1.bf16.msra.mxu0 0
    %1689 = vmatprep.subr.bf16.mxu0 0
    %1690 = vmatpush1.bf16.msra.mxu0 0
    %1691 = vmatprep.subr.bf16.mxu0 0
    %1692 = vmatpush1.bf16.msra.mxu0 0
    %1693 = vmatprep.subr.bf16.mxu0 0
    %1694 = vmatpush1.bf16.msra.mxu0 0
    %1695 = vmatprep.mubr.bf16.mxu0 0
    %1696 = vmatmul.mubr.bf16.gmra.mrb[0].mxu0 %v507
    %v1697 = vpop.f32.mrb[0].mxu0
    %v1698 = vadd.f32 %v1662, %v1697
    %v1699 = vpop.f32.mrb[0].mxu0
    %v1700 = vpop.f32.mrb[0].mxu0
    %v1701 = vadd.f32 %v1662, %v1700
    %v1702 = vpop.f32.mrb[0].mxu0
    %1703 = vmatprep.mubr.bf16.mxu0 0
    %1704 = vmatmul.mubr.bf16.gmra.mrb[0].mxu0 %v510
    %v1705 = vpop.f32.mrb[0].mxu0
    %v1706 = vadd.f32 %v1662, %v1705
    %v1707 = vpop.f32.mrb[0].mxu0
    %v1708 = vpop.f32.mrb[0].mxu0
    %v1709 = vadd.f32 %v1662, %v1708
    %v1710 = vpop.f32.mrb[0].mxu0
    %1711 = vmatprep.mubr.bf16.mxu0 0
    %1712 = vmatmul.mubr.bf16.gmra.mrb[0].mxu0 %v513
    %v1713 = vpop.f32.mrb[0].mxu0
    %v1714 = vadd.f32 %v1662, %v1713
    %v1715 = vpop.f32.mrb[0].mxu0
    %v1716 = vpop.f32.mrb[0].mxu0
    %v1717 = vadd.f32 %v1662, %v1716
    %v1718 = vpop.f32.mrb[0].mxu0
    %1719 = vmatprep.mubr.bf16.mxu0 0
    %1720 = vmatmul.mubr.bf16.gmra.mrb[0].mxu0 %v516
    %v1721 = vpop.f32.mrb[0].mxu0
    %v1722 = vadd.f32 %v1662, %v1721
    %v1723 = vpop.f32.mrb[0].mxu0
    %v1724 = vpop.f32.mrb[0].mxu0
    %v1725 = vadd.f32 %v1662, %v1724
    %v1726 = vpop.f32.mrb[0].mxu0
    %1727 = vmatprep.mubr.bf16.mxu0 0
    %1728 = vmatmul.mubr.bf16.gmra.mrb[0].mxu0 %v519
    %v1729 = vpop.f32.mrb[0].mxu0
    %v1730 = vadd.f32 %v1662, %v1729
    %v1731 = vpop.f32.mrb[0].mxu0
    %v1732 = vpop.f32.mrb[0].mxu0
    %v1733 = vadd.f32 %v1662, %v1732
    %v1734 = vpop.f32.mrb[0].mxu0
    %1735 = vmatprep.mubr.bf16.mxu0 0
    %1736 = vmatmul.mubr.bf16.gmra.mrb[0].mxu0 %v522
    %v1737 = vpop.f32.mrb[0].mxu0
    %v1738 = vadd.f32 %v1662, %v1737
    %v1739 = vpop.f32.mrb[0].mxu0
    %v1740 = vpop.f32.mrb[0].mxu0
    %v1741 = vadd.f32 %v1662, %v1740
    %v1742 = vpop.f32.mrb[0].mxu0
    %1743 = vmatprep.mubr.bf16.mxu0 0
    %1744 = vmatmul.mubr.bf16.gmra.mrb[0].mxu0 %v525
    %v1745 = vpop.f32.mrb[0].mxu0
    %v1746 = vadd.f32 %v1662, %v1745
    %v1747 = vpop.f32.mrb[0].mxu0
    %v1748 = vpop.f32.mrb[0].mxu0
    %v1749 = vadd.f32 %v1662, %v1748
    %v1750 = vpop.f32.mrb[0].mxu0
    %1751 = vmatprep.mubr.bf16.mxu0 0
    %1752 = vmatmul.mubr.bf16.gmra.mrb[0].mxu0 %v528
    %v1753 = vpop.f32.mrb[0].mxu0
    %v1754 = vadd.f32 %v1662, %v1753
    %v1755 = vpop.f32.mrb[0].mxu0
    %v1756 = vpop.f32.mrb[0].mxu0
    %v1757 = vadd.f32 %v1662, %v1756
    %v1758 = vpop.f32.mrb[0].mxu0
    %1759 = vdwg.mxu0
    %v1760 = vmul.f32 %v1698, 0.2
    %v1761 = vmul.f32 %v1701, 0.2
    %v1762 = vmul.f32 %v1706, 0.2
    %v1763 = vmul.f32 %v1709, 0.2
    %v1764 = vmul.f32 %v1714, 0.2
    %v1765 = vmul.f32 %v1717, 0.2
    %v1766 = vmul.f32 %v1722, 0.2
    %v1767 = vmul.f32 %v1725, 0.2
    %v1768 = vmul.f32 %v1730, 0.2
    %v1769 = vmul.f32 %v1733, 0.2
    %v1770 = vmul.f32 %v1738, 0.2
    %v1771 = vmul.f32 %v1741, 0.2
    %v1772 = vmul.f32 %v1746, 0.2
    %v1773 = vmul.f32 %v1749, 0.2
    %v1774 = vmul.f32 %v1754, 0.2
    %v1775 = vmul.f32 %v1757, 0.2
    %v1776 = vmax.f32 %v1698, %v1760
    %v1777 = vmax.f32 %v1701, %v1761
    %v1778 = vmax.f32 %v1706, %v1762
    %v1779 = vmax.f32 %v1709, %v1763
    %v1780 = vmax.f32 %v1714, %v1764
    %v1781 = vmax.f32 %v1717, %v1765
    %v1782 = vmax.f32 %v1722, %v1766
    %v1783 = vmax.f32 %v1725, %v1767
    %v1784 = vmax.f32 %v1730, %v1768
    %v1785 = vmax.f32 %v1733, %v1769
    %v1786 = vmax.f32 %v1738, %v1770
    %v1787 = vmax.f32 %v1741, %v1771
    %v1788 = vmax.f32 %v1746, %v1772
    %v1789 = vmax.f32 %v1749, %v1773
    %v1790 = vmax.f32 %v1754, %v1774
    %v1791 = vmax.f32 %v1757, %v1775
    %v1792 = vmul.f32 %v1776, %v337
    %v1793 = vmul.f32 %v1777, %v338
    %v1794 = vmul.f32 %v1778, %v339
    %v1795 = vmul.f32 %v1779, %v340
    %v1796 = vmul.f32 %v1780, %v341
    %v1797 = vmul.f32 %v1781, %v342
    %v1798 = vmul.f32 %v1782, %v343
    %v1799 = vmul.f32 %v1783, %v344
    %v1800 = vmul.f32 %v1784, %v345
    %v1801 = vmul.f32 %v1785, %v346
    %v1802 = vmul.f32 %v1786, %v347
    %v1803 = vmul.f32 %v1787, %v348
    %v1804 = vmul.f32 %v1788, %v349
    %v1805 = vmul.f32 %v1789, %v350
    %v1806 = vmul.f32 %v1790, %v351
    %v1807 = vmul.f32 %v1791, %v352
    %v1808 = vsel %vm256, %v1792, 0.0
    %v1809 = vsel %vm256, %v1793, 0.0
    %v1810 = vadd.f32 %v1808, %v1809
    %v1811 = vsel %vm256, %v1794, 0.0
    %v1812 = vadd.f32 %v1810, %v1811
    %v1813 = vsel %vm256, %v1795, 0.0
    %v1814 = vadd.f32 %v1812, %v1813
    %v1815 = vsel %vm256, %v1796, 0.0
    %v1816 = vadd.f32 %v1814, %v1815
    %v1817 = vsel %vm256, %v1797, 0.0
    %v1818 = vadd.f32 %v1816, %v1817
    %v1819 = vsel %vm256, %v1798, 0.0
    %v1820 = vadd.f32 %v1818, %v1819
    %v1821 = vsel %vm256, %v1799, 0.0
    %v1822 = vadd.f32 %v1820, %v1821
    %v1823 = vsel %vm256, %v1800, 0.0
    %v1824 = vadd.f32 %v1822, %v1823
    %v1825 = vsel %vm256, %v1801, 0.0
    %v1826 = vadd.f32 %v1824, %v1825
    %v1827 = vsel %vm256, %v1802, 0.0
    %v1828 = vadd.f32 %v1826, %v1827
    %v1829 = vsel %vm256, %v1803, 0.0
    %v1830 = vadd.f32 %v1828, %v1829
    %v1831 = vsel %vm256, %v1804, 0.0
    %v1832 = vadd.f32 %v1830, %v1831
    %v1833 = vsel %vm256, %v1805, 0.0
    %v1834 = vadd.f32 %v1832, %v1833
    %v1835 = vsel %vm256, %v1806, 0.0
    %v1836 = vadd.f32 %v1834, %v1835
    %v1837 = vsel %vm256, %v1807, 0.0
    %v1838 = vadd.f32 %v1836, %v1837
    %v1839 = vrot.slane %v1838, 4
    %v1840 = vadd.f32 %v1838, %v1839
    %v1841 = vrot.slane %v1840, 2
    %v1842 = vadd.f32 %v1840, %v1841
    %v1843 = vrot.slane %v1842, 1
    %v1844 = vadd.f32 %v1842, %v1843
    %v1845 = vmul.f32 %v1844, 0.008928572
    %v1846 = vsub.f32 %v1776, %v1845
    %v1847 = vsub.f32 %v1777, %v1845
    %v1848 = vsub.f32 %v1778, %v1845
    %v1849 = vsub.f32 %v1779, %v1845
    %v1850 = vsub.f32 %v1780, %v1845
    %v1851 = vsub.f32 %v1781, %v1845
    %v1852 = vsub.f32 %v1782, %v1845
    %v1853 = vsub.f32 %v1783, %v1845
    %v1854 = vsub.f32 %v1784, %v1845
    %v1855 = vsub.f32 %v1785, %v1845
    %v1856 = vsub.f32 %v1786, %v1845
    %v1857 = vsub.f32 %v1787, %v1845
    %v1858 = vsub.f32 %v1788, %v1845
    %v1859 = vsub.f32 %v1789, %v1845
    %v1860 = vsub.f32 %v1790, %v1845
    %v1861 = vsub.f32 %v1791, %v1845
    %v1862 = vmul.f32 %v1846, %v337
    %v1863 = vmul.f32 %v1847, %v338
    %v1864 = vmul.f32 %v1848, %v339
    %v1865 = vmul.f32 %v1849, %v340
    %v1866 = vmul.f32 %v1850, %v341
    %v1867 = vmul.f32 %v1851, %v342
    %v1868 = vmul.f32 %v1852, %v343
    %v1869 = vmul.f32 %v1853, %v344
    %v1870 = vmul.f32 %v1854, %v345
    %v1871 = vmul.f32 %v1855, %v346
    %v1872 = vmul.f32 %v1856, %v347
    %v1873 = vmul.f32 %v1857, %v348
    %v1874 = vmul.f32 %v1858, %v349
    %v1875 = vmul.f32 %v1859, %v350
    %v1876 = vmul.f32 %v1860, %v351
    %v1877 = vmul.f32 %v1861, %v352
    %v1878 = vmul.f32 %v1862, %v1862
    %v1879 = vmul.f32 %v1863, %v1863
    %v1880 = vmul.f32 %v1864, %v1864
    %v1881 = vmul.f32 %v1865, %v1865
    %v1882 = vmul.f32 %v1866, %v1866
    %v1883 = vmul.f32 %v1867, %v1867
    %v1884 = vmul.f32 %v1868, %v1868
    %v1885 = vmul.f32 %v1869, %v1869
    %v1886 = vmul.f32 %v1870, %v1870
    %v1887 = vmul.f32 %v1871, %v1871
    %v1888 = vmul.f32 %v1872, %v1872
    %v1889 = vmul.f32 %v1873, %v1873
    %v1890 = vmul.f32 %v1874, %v1874
    %v1891 = vmul.f32 %v1875, %v1875
    %v1892 = vmul.f32 %v1876, %v1876
    %v1893 = vmul.f32 %v1877, %v1877
    %v1894 = vsel %vm256, %v1878, 0.0
    %v1895 = vsel %vm256, %v1879, 0.0
    %v1896 = vadd.f32 %v1894, %v1895
    %v1897 = vsel %vm256, %v1880, 0.0
    %v1898 = vadd.f32 %v1896, %v1897
    %v1899 = vsel %vm256, %v1881, 0.0
    %v1900 = vadd.f32 %v1898, %v1899
    %v1901 = vsel %vm256, %v1882, 0.0
    %v1902 = vadd.f32 %v1900, %v1901
    %v1903 = vsel %vm256, %v1883, 0.0
    %v1904 = vadd.f32 %v1902, %v1903
    %v1905 = vsel %vm256, %v1884, 0.0
    %v1906 = vadd.f32 %v1904, %v1905
    %v1907 = vsel %vm256, %v1885, 0.0
    %v1908 = vadd.f32 %v1906, %v1907
    %v1909 = vsel %vm256, %v1886, 0.0
    %v1910 = vadd.f32 %v1908, %v1909
    %v1911 = vsel %vm256, %v1887, 0.0
    %v1912 = vadd.f32 %v1910, %v1911
    %v1913 = vsel %vm256, %v1888, 0.0
    %v1914 = vadd.f32 %v1912, %v1913
    %v1915 = vsel %vm256, %v1889, 0.0
    %v1916 = vadd.f32 %v1914, %v1915
    %v1917 = vsel %vm256, %v1890, 0.0
    %v1918 = vadd.f32 %v1916, %v1917
    %v1919 = vsel %vm256, %v1891, 0.0
    %v1920 = vadd.f32 %v1918, %v1919
    %v1921 = vsel %vm256, %v1892, 0.0
    %v1922 = vadd.f32 %v1920, %v1921
    %v1923 = vsel %vm256, %v1893, 0.0
    %v1924 = vadd.f32 %v1922, %v1923
    %v1925 = vrot.slane %v1924, 4
    %v1926 = vadd.f32 %v1924, %v1925
    %v1927 = vrot.slane %v1926, 2
    %v1928 = vadd.f32 %v1926, %v1927
    %v1929 = vrot.slane %v1928, 1
    %v1930 = vadd.f32 %v1928, %v1929
    %v1931 = vmul.f32 %v1930, 0.008928572
    %v1932 = vadd.f32 %v1931, 1e-05
    %v1933 = vrsqrt.pop %v1932
    %v1934 = vmul.f32 %v1846, %v1933
    %v1935 = vmul.f32 %v1847, %v1933
    %v1936 = vmul.f32 %v1848, %v1933
    %v1937 = vmul.f32 %v1849, %v1933
    %v1938 = vmul.f32 %v1850, %v1933
    %v1939 = vmul.f32 %v1851, %v1933
    %v1940 = vmul.f32 %v1852, %v1933
    %v1941 = vmul.f32 %v1853, %v1933
    %v1942 = vmul.f32 %v1854, %v1933
    %v1943 = vmul.f32 %v1855, %v1933
    %v1944 = vmul.f32 %v1856, %v1933
    %v1945 = vmul.f32 %v1857, %v1933
    %v1946 = vmul.f32 %v1858, %v1933
    %v1947 = vmul.f32 %v1859, %v1933
    %v1948 = vmul.f32 %v1860, %v1933
    %v1949 = vmul.f32 %v1861, %v1933
    %v1950 = vlaneseq
    %v1951 = vshrl.u32 %v1950, 7
    %v1952 = vsub.s32 0, %v1951
    %v1953 = vrot.slane %v1561, %v1952
    %v1954 = vmul.f32 %v1934, %v1953
    %v1955 = vmul.f32 %v1935, %v1953
    %v1956 = vmul.f32 %v1936, %v1953
    %v1957 = vmul.f32 %v1937, %v1953
    %v1958 = vmul.f32 %v1938, %v1953
    %v1959 = vmul.f32 %v1939, %v1953
    %v1960 = vmul.f32 %v1940, %v1953
    %v1961 = vmul.f32 %v1941, %v1953
    %v1962 = vmul.f32 %v1942, %v1953
    %v1963 = vmul.f32 %v1943, %v1953
    %v1964 = vmul.f32 %v1944, %v1953
    %v1965 = vmul.f32 %v1945, %v1953
    %v1966 = vmul.f32 %v1946, %v1953
    %v1967 = vmul.f32 %v1947, %v1953
    %v1968 = vmul.f32 %v1948, %v1953
    %v1969 = vmul.f32 %v1949, %v1953
    %v1970 = vlaneseq
    %v1971 = vshrl.u32 %v1970, 7
    %v1972 = vsub.s32 0, %v1971
    %v1973 = vrot.slane %v1562, %v1972
    %v1974 = vadd.f32 %v1954, %v1973
    %v1975 = vadd.f32 %v1955, %v1973
    %v1976 = vadd.f32 %v1956, %v1973
    %v1977 = vadd.f32 %v1957, %v1973
    %v1978 = vadd.f32 %v1958, %v1973
    %v1979 = vadd.f32 %v1959, %v1973
    %v1980 = vadd.f32 %v1960, %v1973
    %v1981 = vadd.f32 %v1961, %v1973
    %v1982 = vadd.f32 %v1962, %v1973
    %v1983 = vadd.f32 %v1963, %v1973
    %v1984 = vadd.f32 %v1964, %v1973
    %v1985 = vadd.f32 %v1965, %v1973
    %v1986 = vadd.f32 %v1966, %v1973
    %v1987 = vadd.f32 %v1967, %v1973
    %v1988 = vadd.f32 %v1968, %v1973
    %v1989 = vadd.f32 %v1969, %v1973
    %v1990 = vld [vmem:[%s8] sm:$0xff]
    %v1991 = vld [vmem:[%s8 + $0x8] sm:$0xff]
    %v1992 = vld [vmem:[%s8 + $0x10] sm:$0xff]
    %v1993 = vld [vmem:[%s8 + $0x18] sm:$0xff]
    %v1994 = vlaneseq
    %v1995 = vshrl.u32 %v1994, 7
    %v1996 = vsub.s32 0, %v1995
    %v1997 = vrot.slane %v1563, %v1996
    %v1999 = vsel %vm256, %v1974, 0
    %v2002 = vsel %vm256, %v1975, 0
    %v2005 = vsel %vm256, %v1976, 0
    %v2008 = vsel %vm256, %v1977, 0
    %v2011 = vsel %vm256, %v1978, 0
    %v2014 = vsel %vm256, %v1979, 0
    %v2017 = vsel %vm256, %v1980, 0
    %v2020 = vsel %vm256, %v1981, 0
    %v2023 = vsel %vm256, %v1982, 0
    %v2026 = vsel %vm256, %v1983, 0
    %v2029 = vsel %vm256, %v1984, 0
    %v2032 = vsel %vm256, %v1985, 0
    %v2035 = vsel %vm256, %v1986, 0
    %v2038 = vsel %vm256, %v1987, 0
    %v2041 = vsel %vm256, %v1988, 0
    %v2044 = vsel %vm256, %v1989, 0
    %2046 = vmatprep.subr.mxu0 0.0
    %2047 = vmatpush1.msra.mxu0 %v1990
    %2048 = vmatprep.subr.mxu0 0.0
    %2049 = vmatpush1.msra.mxu0 %v1991
    %2050 = vmatprep.subr.mxu0 0.0
    %2051 = vmatpush1.msra.mxu0 %v1992
    %2052 = vmatprep.subr.mxu0 0.0
    %2053 = vmatpush1.msra.mxu0 %v1993
    %2054 = vmatprep.subr.mxu0 0.0
    %2055 = vmatpush1.msra.mxu0 0.0
    %2056 = vmatprep.subr.mxu0 0.0
    %2057 = vmatpush1.msra.mxu0 0.0
    %2058 = vmatprep.subr.mxu0 0.0
    %2059 = vmatpush1.msra.mxu0 0.0
    %2060 = vmatprep.subr.mxu0 0.0
    %2061 = vmatpush1.msra.mxu0 0.0
    %2062 = vmatprep.subr.mxu0 0.0
    %2063 = vmatpush1.msra.mxu0 0.0
    %2064 = vmatprep.subr.mxu0 0.0
    %2065 = vmatpush1.msra.mxu0 0.0
    %2066 = vmatprep.subr.mxu0 0.0
    %2067 = vmatpush1.msra.mxu0 0.0
    %2068 = vmatprep.subr.mxu0 0.0
    %2069 = vmatpush1.msra.mxu0 0.0
    %2070 = vmatprep.subr.mxu0 0.0
    %2071 = vmatpush1.msra.mxu0 0.0
    %2072 = vmatprep.subr.mxu0 0.0
    %2073 = vmatpush1.msra.mxu0 0.0
    %2074 = vmatprep.subr.mxu0 0.0
    %2075 = vmatpush1.msra.mxu0 0.0
    %2076 = vmatprep.subr.mxu0 0.0
    %2077 = vmatpush1.msra.mxu0 0.0
    %2078 = vmatprep.subr.mxu0 0.0
    %2079 = vmatpush1.msra.mxu0 0.0
    %2080 = vmatprep.subr.mxu0 0.0
    %2081 = vmatpush1.msra.mxu0 0.0
    %2082 = vmatprep.subr.mxu0 0.0
    %2083 = vmatpush1.msra.mxu0 0.0
    %2084 = vmatprep.subr.mxu0 0.0
    %2085 = vmatpush1.msra.mxu0 0.0
    %2086 = vmatprep.subr.mxu0 0.0
    %2087 = vmatpush1.msra.mxu0 0.0
    %2088 = vmatprep.subr.mxu0 0.0
    %2089 = vmatpush1.msra.mxu0 0.0
    %2090 = vmatprep.subr.mxu0 0.0
    %2091 = vmatpush1.msra.mxu0 0.0
    %2092 = vmatprep.subr.mxu0 0.0
    %2093 = vmatpush1.msra.mxu0 0.0
    %2094 = vmatprep.subr.mxu0 0.0
    %2095 = vmatpush1.msra.mxu0 0.0
    %2096 = vmatprep.subr.mxu0 0.0
    %2097 = vmatpush1.msra.mxu0 0.0
    %2098 = vmatprep.subr.mxu0 0.0
    %2099 = vmatpush1.msra.mxu0 0.0
    %2100 = vmatprep.subr.mxu0 0.0
    %2101 = vmatpush1.msra.mxu0 0.0
    %2102 = vmatprep.subr.mxu0 0.0
    %2103 = vmatpush1.msra.mxu0 0.0
    %2104 = vmatprep.subr.mxu0 0.0
    %2105 = vmatpush1.msra.mxu0 0.0
    %2106 = vmatprep.subr.mxu0 0.0
    %2107 = vmatpush1.msra.mxu0 0.0
    %2108 = vmatprep.subr.mxu0 0.0
    %2109 = vmatpush1.msra.mxu0 0.0
    %2110 = vmatprep.mubr.f32.mxu0 0.0
    %2111 = vmatmul.mubr.f32.gmra.mrb[0].mxu0 %v1999
    %v2112 = vpop.f32.mrb[0].mxu0
    %v2113 = vadd.f32 %v1997, %v2112
    %v2114 = vpop.f32.mrb[0].mxu0
    %2115 = vmatprep.mubr.f32.mxu0 0.0
    %2116 = vmatmul.mubr.f32.gmra.mrb[0].mxu0 %v2002
    %v2117 = vpop.f32.mrb[0].mxu0
    %v2118 = vadd.f32 %v1997, %v2117
    %v2119 = vpop.f32.mrb[0].mxu0
    %2120 = vmatprep.mubr.f32.mxu0 0.0
    %2121 = vmatmul.mubr.f32.gmra.mrb[0].mxu0 %v2005
    %v2122 = vpop.f32.mrb[0].mxu0
    %v2123 = vadd.f32 %v1997, %v2122
    %v2124 = vpop.f32.mrb[0].mxu0
    %2125 = vmatprep.mubr.f32.mxu0 0.0
    %2126 = vmatmul.mubr.f32.gmra.mrb[0].mxu0 %v2008
    %v2127 = vpop.f32.mrb[0].mxu0
    %v2128 = vadd.f32 %v1997, %v2127
    %v2129 = vpop.f32.mrb[0].mxu0
    %2130 = vmatprep.mubr.f32.mxu0 0.0
    %2131 = vmatmul.mubr.f32.gmra.mrb[0].mxu0 %v2011
    %v2132 = vpop.f32.mrb[0].mxu0
    %v2133 = vadd.f32 %v1997, %v2132
    %v2134 = vpop.f32.mrb[0].mxu0
    %2135 = vmatprep.mubr.f32.mxu0 0.0
    %2136 = vmatmul.mubr.f32.gmra.mrb[0].mxu0 %v2014
    %v2137 = vpop.f32.mrb[0].mxu0
    %v2138 = vadd.f32 %v1997, %v2137
    %v2139 = vpop.f32.mrb[0].mxu0
    %2140 = vmatprep.mubr.f32.mxu0 0.0
    %2141 = vmatmul.mubr.f32.gmra.mrb[0].mxu0 %v2017
    %v2142 = vpop.f32.mrb[0].mxu0
    %v2143 = vadd.f32 %v1997, %v2142
    %v2144 = vpop.f32.mrb[0].mxu0
    %2145 = vmatprep.mubr.f32.mxu0 0.0
    %2146 = vmatmul.mubr.f32.gmra.mrb[0].mxu0 %v2020
    %v2147 = vpop.f32.mrb[0].mxu0
    %v2148 = vadd.f32 %v1997, %v2147
    %v2149 = vpop.f32.mrb[0].mxu0
    %2150 = vmatprep.mubr.f32.mxu0 0.0
    %2151 = vmatmul.mubr.f32.gmra.mrb[0].mxu0 %v2023
    %v2152 = vpop.f32.mrb[0].mxu0
    %v2153 = vadd.f32 %v1997, %v2152
    %v2154 = vpop.f32.mrb[0].mxu0
    %2155 = vmatprep.mubr.f32.mxu0 0.0
    %2156 = vmatmul.mubr.f32.gmra.mrb[0].mxu0 %v2026
    %v2157 = vpop.f32.mrb[0].mxu0
    %v2158 = vadd.f32 %v1997, %v2157
    %v2159 = vpop.f32.mrb[0].mxu0
    %2160 = vmatprep.mubr.f32.mxu0 0.0
    %2161 = vmatmul.mubr.f32.gmra.mrb[0].mxu0 %v2029
    %v2162 = vpop.f32.mrb[0].mxu0
    %v2163 = vadd.f32 %v1997, %v2162
    %v2164 = vpop.f32.mrb[0].mxu0
    %2165 = vmatprep.mubr.f32.mxu0 0.0
    %2166 = vmatmul.mubr.f32.gmra.mrb[0].mxu0 %v2032
    %v2167 = vpop.f32.mrb[0].mxu0
    %v2168 = vadd.f32 %v1997, %v2167
    %v2169 = vpop.f32.mrb[0].mxu0
    %2170 = vmatprep.mubr.f32.mxu0 0.0
    %2171 = vmatmul.mubr.f32.gmra.mrb[0].mxu0 %v2035
    %v2172 = vpop.f32.mrb[0].mxu0
    %v2173 = vadd.f32 %v1997, %v2172
    %v2174 = vpop.f32.mrb[0].mxu0
    %2175 = vmatprep.mubr.f32.mxu0 0.0
    %2176 = vmatmul.mubr.f32.gmra.mrb[0].mxu0 %v2038
    %v2177 = vpop.f32.mrb[0].mxu0
    %v2178 = vadd.f32 %v1997, %v2177
    %v2179 = vpop.f32.mrb[0].mxu0
    %2180 = vmatprep.mubr.f32.mxu0 0.0
    %2181 = vmatmul.mubr.f32.gmra.mrb[0].mxu0 %v2041
    %v2182 = vpop.f32.mrb[0].mxu0
    %v2183 = vadd.f32 %v1997, %v2182
    %v2184 = vpop.f32.mrb[0].mxu0
    %2185 = vmatprep.mubr.f32.mxu0 0.0
    %2186 = vmatmul.mubr.f32.gmra.mrb[0].mxu0 %v2044
    %v2187 = vpop.f32.mrb[0].mxu0
    %v2188 = vadd.f32 %v1997, %v2187
    %v2189 = vpop.f32.mrb[0].mxu0
    %2190 = vdwg.mxu0
    %v2191 = vmul.f32 %v2113, 0.2
    %v2192 = vmul.f32 %v2118, 0.2
    %v2193 = vmul.f32 %v2123, 0.2
    %v2194 = vmul.f32 %v2128, 0.2
    %v2195 = vmul.f32 %v2133, 0.2
    %v2196 = vmul.f32 %v2138, 0.2
    %v2197 = vmul.f32 %v2143, 0.2
    %v2198 = vmul.f32 %v2148, 0.2
    %v2199 = vmul.f32 %v2153, 0.2
    %v2200 = vmul.f32 %v2158, 0.2
    %v2201 = vmul.f32 %v2163, 0.2
    %v2202 = vmul.f32 %v2168, 0.2
    %v2203 = vmul.f32 %v2173, 0.2
    %v2204 = vmul.f32 %v2178, 0.2
    %v2205 = vmul.f32 %v2183, 0.2
    %v2206 = vmul.f32 %v2188, 0.2
    %v2207 = vmax.f32 %v2113, %v2191
    %v2208 = vmax.f32 %v2118, %v2192
    %v2209 = vmax.f32 %v2123, %v2193
    %v2210 = vmax.f32 %v2128, %v2194
    %v2211 = vmax.f32 %v2133, %v2195
    %v2212 = vmax.f32 %v2138, %v2196
    %v2213 = vmax.f32 %v2143, %v2197
    %v2214 = vmax.f32 %v2148, %v2198
    %v2215 = vmax.f32 %v2153, %v2199
    %v2216 = vmax.f32 %v2158, %v2200
    %v2217 = vmax.f32 %v2163, %v2201
    %v2218 = vmax.f32 %v2168, %v2202
    %v2219 = vmax.f32 %v2173, %v2203
    %v2220 = vmax.f32 %v2178, %v2204
    %v2221 = vmax.f32 %v2183, %v2205
    %v2222 = vmax.f32 %v2188, %v2206
    %2223 = vxpose.xlu0.b32.start [1/16] %v2207, 128
    %2224 = vxpose.xlu0.b32.cont [2/16] %v2208, 128
    %2225 = vxpose.xlu0.b32.cont [3/16] %v2209, 128
    %2226 = vxpose.xlu0.b32.cont [4/16] %v2210, 128
    %2227 = vxpose.xlu0.b32.cont [5/16] %v2211, 128
    %2228 = vxpose.xlu0.b32.cont [6/16] %v2212, 128
    %2229 = vxpose.xlu0.b32.cont [7/16] %v2213, 128
    %2230 = vxpose.xlu0.b32.cont [8/16] %v2214, 128
    %2231 = vxpose.xlu0.b32.cont [9/16] %v2215, 128
    %2232 = vxpose.xlu0.b32.cont [10/16] %v2216, 128
    %2233 = vxpose.xlu0.b32.cont [11/16] %v2217, 128
    %2234 = vxpose.xlu0.b32.cont [12/16] %v2218, 128
    %2235 = vxpose.xlu0.b32.cont [13/16] %v2219, 128
    %2236 = vxpose.xlu0.b32.cont [14/16] %v2220, 128
    %2237 = vxpose.xlu0.b32.cont [15/16] %v2221, 128
    %2238 = vxpose.xlu0.b32.end [16/16] %v2222, 128
    %v2239 = vpop.trf.xlu0
    %v2240 = vpop.trf.xlu0
    %v2241 = vpop.trf.xlu0
    %v2242 = vpop.trf.xlu0
    %v2243 = vpop.trf.xlu0
    %v2244 = vpop.trf.xlu0
    %v2245 = vpop.trf.xlu0
    %v2246 = vpop.trf.xlu0
    %v2247 = vpop.trf.xlu0
    %v2248 = vpop.trf.xlu0
    %v2249 = vpop.trf.xlu0
    %v2250 = vpop.trf.xlu0
    %v2251 = vpop.trf.xlu0
    %v2252 = vpop.trf.xlu0
    %v2253 = vpop.trf.xlu0
    %v2254 = vpop.trf.xlu0
    %v2255 = vsel %vm1131, %v2239, -inf
    %v2256 = vsel %vm1131, %v2240, -inf
    %v2257 = vsel %vm1131, %v2241, -inf
    %v2258 = vsel %vm1131, %v2242, -inf
    %2259 = vmax.xlane.f32.xlu0 %v2255
    %v2260 = vpop.xlane.xlu0 %2259
    %2261 = vmax.xlane.f32.xlu0 %v2256
    %v2262 = vpop.xlane.xlu0 %2261
    %2263 = vmax.xlane.f32.xlu0 %v2257
    %v2264 = vpop.xlane.xlu0 %2263
    %2265 = vmax.xlane.f32.xlu0 %v2258
    %v2266 = vpop.xlane.xlu0 %2265
    %v2267 = vsel %vm1151, %v2239, -inf
    %v2268 = vsel %vm1151, %v2240, -inf
    %v2269 = vsel %vm1151, %v2241, -inf
    %v2270 = vsel %vm1151, %v2242, -inf
    %2271 = vmax.xlane.f32.xlu0 %v2267
    %v2272 = vpop.xlane.xlu0 %2271
    %2273 = vmax.xlane.f32.xlu0 %v2268
    %v2274 = vpop.xlane.xlu0 %2273
    %2275 = vmax.xlane.f32.xlu0 %v2269
    %v2276 = vpop.xlane.xlu0 %2275
    %2277 = vmax.xlane.f32.xlu0 %v2270
    %v2278 = vpop.xlane.xlu0 %2277
    %v2279 = vsel %vm1171, %v2239, -inf
    %v2280 = vsel %vm1171, %v2240, -inf
    %v2281 = vsel %vm1171, %v2241, -inf
    %v2282 = vsel %vm1171, %v2242, -inf
    %2283 = vmax.xlane.f32.xlu0 %v2279
    %v2284 = vpop.xlane.xlu0 %2283
    %2285 = vmax.xlane.f32.xlu0 %v2280
    %v2286 = vpop.xlane.xlu0 %2285
    %2287 = vmax.xlane.f32.xlu0 %v2281
    %v2288 = vpop.xlane.xlu0 %2287
    %2289 = vmax.xlane.f32.xlu0 %v2282
    %v2290 = vpop.xlane.xlu0 %2289
    %v2291 = vsel %vm1191, %v2239, -inf
    %v2292 = vsel %vm1191, %v2240, -inf
    %v2293 = vsel %vm1191, %v2241, -inf
    %v2294 = vsel %vm1191, %v2242, -inf
    %2295 = vmax.xlane.f32.xlu0 %v2291
    %v2296 = vpop.xlane.xlu0 %2295
    %2297 = vmax.xlane.f32.xlu0 %v2292
    %v2298 = vpop.xlane.xlu0 %2297
    %2299 = vmax.xlane.f32.xlu0 %v2293
    %v2300 = vpop.xlane.xlu0 %2299
    %2301 = vmax.xlane.f32.xlu0 %v2294
    %v2302 = vpop.xlane.xlu0 %2301
    %v2303 = vsel %vm1211, %v2239, -inf
    %v2304 = vsel %vm1211, %v2240, -inf
    %v2305 = vsel %vm1211, %v2241, -inf
    %v2306 = vsel %vm1211, %v2242, -inf
    %2307 = vmax.xlane.f32.xlu0 %v2303
    %v2308 = vpop.xlane.xlu0 %2307
    %2309 = vmax.xlane.f32.xlu0 %v2304
    %v2310 = vpop.xlane.xlu0 %2309
    %2311 = vmax.xlane.f32.xlu0 %v2305
    %v2312 = vpop.xlane.xlu0 %2311
    %2313 = vmax.xlane.f32.xlu0 %v2306
    %v2314 = vpop.xlane.xlu0 %2313
    %v2315 = vsel %vm1231, %v2239, -inf
    %v2316 = vsel %vm1231, %v2240, -inf
    %v2317 = vsel %vm1231, %v2241, -inf
    %v2318 = vsel %vm1231, %v2242, -inf
    %2319 = vmax.xlane.f32.xlu0 %v2315
    %v2320 = vpop.xlane.xlu0 %2319
    %2321 = vmax.xlane.f32.xlu0 %v2316
    %v2322 = vpop.xlane.xlu0 %2321
    %2323 = vmax.xlane.f32.xlu0 %v2317
    %v2324 = vpop.xlane.xlu0 %2323
    %2325 = vmax.xlane.f32.xlu0 %v2318
    %v2326 = vpop.xlane.xlu0 %2325
    %v2327 = vsel %vm1251, %v2239, -inf
    %v2328 = vsel %vm1251, %v2240, -inf
    %v2329 = vsel %vm1251, %v2241, -inf
    %v2330 = vsel %vm1251, %v2242, -inf
    %2331 = vmax.xlane.f32.xlu0 %v2327
    %v2332 = vpop.xlane.xlu0 %2331
    %2333 = vmax.xlane.f32.xlu0 %v2328
    %v2334 = vpop.xlane.xlu0 %2333
    %2335 = vmax.xlane.f32.xlu0 %v2329
    %v2336 = vpop.xlane.xlu0 %2335
    %2337 = vmax.xlane.f32.xlu0 %v2330
    %v2338 = vpop.xlane.xlu0 %2337
    %v2339 = vsel %vm1271, %v2239, -inf
    %v2340 = vsel %vm1271, %v2240, -inf
    %v2341 = vsel %vm1271, %v2241, -inf
    %v2342 = vsel %vm1271, %v2242, -inf
    %2343 = vmax.xlane.f32.xlu0 %v2339
    %v2344 = vpop.xlane.xlu0 %2343
    %2345 = vmax.xlane.f32.xlu0 %v2340
    %v2346 = vpop.xlane.xlu0 %2345
    %2347 = vmax.xlane.f32.xlu0 %v2341
    %v2348 = vpop.xlane.xlu0 %2347
    %2349 = vmax.xlane.f32.xlu0 %v2342
    %v2350 = vpop.xlane.xlu0 %2349
    %v2351 = vsel %vm1293, %v2239, -inf
    %v2352 = vsel %vm1293, %v2240, -inf
    %v2353 = vsel %vm1293, %v2241, -inf
    %v2354 = vsel %vm1293, %v2242, -inf
    %2355 = vmax.xlane.f32.xlu0 %v2351
    %v2356 = vpop.xlane.xlu0 %2355
    %2357 = vmax.xlane.f32.xlu0 %v2352
    %v2358 = vpop.xlane.xlu0 %2357
    %2359 = vmax.xlane.f32.xlu0 %v2353
    %v2360 = vpop.xlane.xlu0 %2359
    %2361 = vmax.xlane.f32.xlu0 %v2354
    %v2362 = vpop.xlane.xlu0 %2361
    %v2363 = vsel %vm1313, %v2239, -inf
    %v2364 = vsel %vm1313, %v2240, -inf
    %v2365 = vsel %vm1313, %v2241, -inf
    %v2366 = vsel %vm1313, %v2242, -inf
    %2367 = vmax.xlane.f32.xlu0 %v2363
    %v2368 = vpop.xlane.xlu0 %2367
    %2369 = vmax.xlane.f32.xlu0 %v2364
    %v2370 = vpop.xlane.xlu0 %2369
    %2371 = vmax.xlane.f32.xlu0 %v2365
    %v2372 = vpop.xlane.xlu0 %2371
    %2373 = vmax.xlane.f32.xlu0 %v2366
    %v2374 = vpop.xlane.xlu0 %2373
    %v2375 = vsel %vm1333, %v2239, -inf
    %v2376 = vsel %vm1333, %v2240, -inf
    %v2377 = vsel %vm1333, %v2241, -inf
    %v2378 = vsel %vm1333, %v2242, -inf
    %2379 = vmax.xlane.f32.xlu0 %v2375
    %v2380 = vpop.xlane.xlu0 %2379
    %2381 = vmax.xlane.f32.xlu0 %v2376
    %v2382 = vpop.xlane.xlu0 %2381
    %2383 = vmax.xlane.f32.xlu0 %v2377
    %v2384 = vpop.xlane.xlu0 %2383
    %2385 = vmax.xlane.f32.xlu0 %v2378
    %v2386 = vpop.xlane.xlu0 %2385
    %v2387 = vsel %vm1353, %v2239, -inf
    %v2388 = vsel %vm1353, %v2240, -inf
    %v2389 = vsel %vm1353, %v2241, -inf
    %v2390 = vsel %vm1353, %v2242, -inf
    %2391 = vmax.xlane.f32.xlu0 %v2387
    %v2392 = vpop.xlane.xlu0 %2391
    %2393 = vmax.xlane.f32.xlu0 %v2388
    %v2394 = vpop.xlane.xlu0 %2393
    %2395 = vmax.xlane.f32.xlu0 %v2389
    %v2396 = vpop.xlane.xlu0 %2395
    %2397 = vmax.xlane.f32.xlu0 %v2390
    %v2398 = vpop.xlane.xlu0 %2397
    %v2399 = vsel %vm1373, %v2239, -inf
    %v2400 = vsel %vm1373, %v2240, -inf
    %v2401 = vsel %vm1373, %v2241, -inf
    %v2402 = vsel %vm1373, %v2242, -inf
    %2403 = vmax.xlane.f32.xlu0 %v2399
    %v2404 = vpop.xlane.xlu0 %2403
    %2405 = vmax.xlane.f32.xlu0 %v2400
    %v2406 = vpop.xlane.xlu0 %2405
    %2407 = vmax.xlane.f32.xlu0 %v2401
    %v2408 = vpop.xlane.xlu0 %2407
    %2409 = vmax.xlane.f32.xlu0 %v2402
    %v2410 = vpop.xlane.xlu0 %2409
    %v2411 = vsel %vm1393, %v2239, -inf
    %v2412 = vsel %vm1393, %v2240, -inf
    %v2413 = vsel %vm1393, %v2241, -inf
    %v2414 = vsel %vm1393, %v2242, -inf
    %2415 = vmax.xlane.f32.xlu0 %v2411
    %v2416 = vpop.xlane.xlu0 %2415
    %2417 = vmax.xlane.f32.xlu0 %v2412
    %v2418 = vpop.xlane.xlu0 %2417
    %2419 = vmax.xlane.f32.xlu0 %v2413
    %v2420 = vpop.xlane.xlu0 %2419
    %2421 = vmax.xlane.f32.xlu0 %v2414
    %v2422 = vpop.xlane.xlu0 %2421
    %v2423 = vsel %vm1413, %v2239, -inf
    %v2424 = vsel %vm1413, %v2240, -inf
    %v2425 = vsel %vm1413, %v2241, -inf
    %v2426 = vsel %vm1413, %v2242, -inf
    %2427 = vmax.xlane.f32.xlu0 %v2423
    %v2428 = vpop.xlane.xlu0 %2427
    %2429 = vmax.xlane.f32.xlu0 %v2424
    %v2430 = vpop.xlane.xlu0 %2429
    %2431 = vmax.xlane.f32.xlu0 %v2425
    %v2432 = vpop.xlane.xlu0 %2431
    %2433 = vmax.xlane.f32.xlu0 %v2426
    %v2434 = vpop.xlane.xlu0 %2433
    %v2435 = vsel %vm1433, %v2239, -inf
    %v2436 = vsel %vm1433, %v2240, -inf
    %v2437 = vsel %vm1433, %v2241, -inf
    %v2438 = vsel %vm1433, %v2242, -inf
    %2439 = vmax.xlane.f32.xlu0 %v2435
    %v2440 = vpop.xlane.xlu0 %2439
    %2441 = vmax.xlane.f32.xlu0 %v2436
    %v2442 = vpop.xlane.xlu0 %2441
    %2443 = vmax.xlane.f32.xlu0 %v2437
    %v2444 = vpop.xlane.xlu0 %2443
    %2445 = vmax.xlane.f32.xlu0 %v2438
    %v2446 = vpop.xlane.xlu0 %2445
    %v2447 = vsel %vm1446, %v2260, %v2272
    %v2448 = vsel %vm1446, %v2262, %v2274
    %v2449 = vsel %vm1446, %v2264, %v2276
    %v2450 = vsel %vm1446, %v2266, %v2278
    %v2451 = vsel %vm1451, %v2447, %v2284
    %v2452 = vsel %vm1451, %v2448, %v2286
    %v2453 = vsel %vm1451, %v2449, %v2288
    %v2454 = vsel %vm1451, %v2450, %v2290
    %v2455 = vsel %vm1456, %v2451, %v2296
    %v2456 = vsel %vm1456, %v2452, %v2298
    %v2457 = vsel %vm1456, %v2453, %v2300
    %v2458 = vsel %vm1456, %v2454, %v2302
    %v2459 = vsel %vm366, %v2455, %v2308
    %v2460 = vsel %vm366, %v2456, %v2310
    %v2461 = vsel %vm366, %v2457, %v2312
    %v2462 = vsel %vm366, %v2458, %v2314
    %v2463 = vsel %vm1465, %v2459, %v2320
    %v2464 = vsel %vm1465, %v2460, %v2322
    %v2465 = vsel %vm1465, %v2461, %v2324
    %v2466 = vsel %vm1465, %v2462, %v2326
    %v2467 = vsel %vm1470, %v2463, %v2332
    %v2468 = vsel %vm1470, %v2464, %v2334
    %v2469 = vsel %vm1470, %v2465, %v2336
    %v2470 = vsel %vm1470, %v2466, %v2338
    %v2471 = vsel %vm1475, %v2467, %v2344
    %v2472 = vsel %vm1475, %v2468, %v2346
    %v2473 = vsel %vm1475, %v2469, %v2348
    %v2474 = vsel %vm1475, %v2470, %v2350
    %v2475 = vsel %vm1480, %v2471, %v2356
    %v2476 = vsel %vm1480, %v2472, %v2358
    %v2477 = vsel %vm1480, %v2473, %v2360
    %v2478 = vsel %vm1480, %v2474, %v2362
    %v2479 = vsel %vm1485, %v2475, %v2368
    %v2480 = vsel %vm1485, %v2476, %v2370
    %v2481 = vsel %vm1485, %v2477, %v2372
    %v2482 = vsel %vm1485, %v2478, %v2374
    %v2483 = vsel %vm1490, %v2479, %v2380
    %v2484 = vsel %vm1490, %v2480, %v2382
    %v2485 = vsel %vm1490, %v2481, %v2384
    %v2486 = vsel %vm1490, %v2482, %v2386
    %v2487 = vsel %vm1495, %v2483, %v2392
    %v2488 = vsel %vm1495, %v2484, %v2394
    %v2489 = vsel %vm1495, %v2485, %v2396
    %v2490 = vsel %vm1495, %v2486, %v2398
    %v2491 = vsel %vm1500, %v2487, %v2404
    %v2492 = vsel %vm1500, %v2488, %v2406
    %v2493 = vsel %vm1500, %v2489, %v2408
    %v2494 = vsel %vm1500, %v2490, %v2410
    %v2495 = vsel %vm1505, %v2491, %v2416
    %v2496 = vsel %vm1505, %v2492, %v2418
    %v2497 = vsel %vm1505, %v2493, %v2420
    %v2498 = vsel %vm1505, %v2494, %v2422
    %v2499 = vsel %vm1510, %v2495, %v2428
    %v2500 = vsel %vm1510, %v2496, %v2430
    %v2501 = vsel %vm1510, %v2497, %v2432
    %v2502 = vsel %vm1510, %v2498, %v2434
    %v2503 = vsel %vm1515, %v2499, %v2440
    %v2504 = vsel %vm1515, %v2500, %v2442
    %v2505 = vsel %vm1515, %v2501, %v2444
    %v2506 = vsel %vm1515, %v2502, %v2446
    %2507 = vxpose.xlu0.b32.start [1/16] %v2503, 128
    %2508 = vxpose.xlu0.b32.cont [2/16] %v2504, 128
    %2509 = vxpose.xlu0.b32.cont [3/16] %v2505, 128
    %2510 = vxpose.xlu0.b32.cont [4/16] %v2506, 128
    %2511 = vxpose.xlu0.b32.cont [5/16] 0.0, 128
    %2512 = vxpose.xlu0.b32.cont [6/16] 0.0, 128
    %2513 = vxpose.xlu0.b32.cont [7/16] 0.0, 128
    %2514 = vxpose.xlu0.b32.cont [8/16] 0.0, 128
    %2515 = vxpose.xlu0.b32.cont [9/16] 0.0, 128
    %2516 = vxpose.xlu0.b32.cont [10/16] 0.0, 128
    %2517 = vxpose.xlu0.b32.cont [11/16] 0.0, 128
    %2518 = vxpose.xlu0.b32.cont [12/16] 0.0, 128
    %2519 = vxpose.xlu0.b32.cont [13/16] 0.0, 128
    %2520 = vxpose.xlu0.b32.cont [14/16] 0.0, 128
    %2521 = vxpose.xlu0.b32.cont [15/16] 0.0, 128
    %2522 = vxpose.xlu0.b32.end [16/16] 0.0, 128
    %v2523 = vpop.trf.xlu0
    %v2524 = vpop.trf.xlu0
    %v2525 = vpop.trf.xlu0
    %v2526 = vpop.trf.xlu0
    %v2527 = vpop.trf.xlu0
    %v2528 = vpop.trf.xlu0
    %v2529 = vpop.trf.xlu0
    %v2530 = vpop.trf.xlu0
    %v2531 = vpop.trf.xlu0
    %v2532 = vpop.trf.xlu0
    %v2533 = vpop.trf.xlu0
    %v2534 = vpop.trf.xlu0
    %v2535 = vpop.trf.xlu0
    %v2536 = vpop.trf.xlu0
    %v2537 = vpop.trf.xlu0
    %v2538 = vpop.trf.xlu0
    %v2539 = vsel %vm1556, %v2523, 0.0
    %v2540 = vsel %vm1557, %v2524, 0.0
    %v2541 = vld [vmem:[#allocation5] sm:$0x1]
    %v2542 = vunpack.c.l.bf16 %v2541
    %vm2543 = vcmask 130048
    %v2545 = vsel %vm2543, %v2542, 0
    %2547 = vmatprep.subr.mxu0 0.0
    %2548 = vmatpush1.msra.mxu0 %v2539
    %2549 = vmatprep.subr.mxu0 0.0
    %2550 = vmatpush1.msra.mxu0 %v2540
    %2551 = vmatprep.subr.mxu0 0.0
    %2552 = vmatpush1.msra.mxu0 0.0
    %2553 = vmatprep.subr.mxu0 0.0
    %2554 = vmatpush1.msra.mxu0 0.0
    %2555 = vmatprep.subr.mxu0 0.0
    %2556 = vmatpush1.msra.mxu0 0.0
    %2557 = vmatprep.subr.mxu0 0.0
    %2558 = vmatpush1.msra.mxu0 0.0
    %2559 = vmatprep.subr.mxu0 0.0
    %2560 = vmatpush1.msra.mxu0 0.0
    %2561 = vmatprep.subr.mxu0 0.0
    %2562 = vmatpush1.msra.mxu0 0.0
    %2563 = vmatprep.subr.mxu0 0.0
    %2564 = vmatpush1.msra.mxu0 0.0
    %2565 = vmatprep.subr.mxu0 0.0
    %2566 = vmatpush1.msra.mxu0 0.0
    %2567 = vmatprep.subr.mxu0 0.0
    %2568 = vmatpush1.msra.mxu0 0.0
    %2569 = vmatprep.subr.mxu0 0.0
    %2570 = vmatpush1.msra.mxu0 0.0
    %2571 = vmatprep.subr.mxu0 0.0
    %2572 = vmatpush1.msra.mxu0 0.0
    %2573 = vmatprep.subr.mxu0 0.0
    %2574 = vmatpush1.msra.mxu0 0.0
    %2575 = vmatprep.subr.mxu0 0.0
    %2576 = vmatpush1.msra.mxu0 0.0
    %2577 = vmatprep.subr.mxu0 0.0
    %2578 = vmatpush1.msra.mxu0 0.0
    %2579 = vmatprep.subr.mxu0 0.0
    %2580 = vmatpush1.msra.mxu0 0.0
    %2581 = vmatprep.subr.mxu0 0.0
    %2582 = vmatpush1.msra.mxu0 0.0
    %2583 = vmatprep.subr.mxu0 0.0
    %2584 = vmatpush1.msra.mxu0 0.0
    %2585 = vmatprep.subr.mxu0 0.0
    %2586 = vmatpush1.msra.mxu0 0.0
    %2587 = vmatprep.subr.mxu0 0.0
    %2588 = vmatpush1.msra.mxu0 0.0
    %2589 = vmatprep.subr.mxu0 0.0
    %2590 = vmatpush1.msra.mxu0 0.0
    %2591 = vmatprep.subr.mxu0 0.0
    %2592 = vmatpush1.msra.mxu0 0.0
    %2593 = vmatprep.subr.mxu0 0.0
    %2594 = vmatpush1.msra.mxu0 0.0
    %2595 = vmatprep.subr.mxu0 0.0
    %2596 = vmatpush1.msra.mxu0 0.0
    %2597 = vmatprep.subr.mxu0 0.0
    %2598 = vmatpush1.msra.mxu0 0.0
    %2599 = vmatprep.subr.mxu0 0.0
    %2600 = vmatpush1.msra.mxu0 0.0
    %2601 = vmatprep.subr.mxu0 0.0
    %2602 = vmatpush1.msra.mxu0 0.0
    %2603 = vmatprep.subr.mxu0 0.0
    %2604 = vmatpush1.msra.mxu0 0.0
    %2605 = vmatprep.subr.mxu0 0.0
    %2606 = vmatpush1.msra.mxu0 0.0
    %2607 = vmatprep.subr.mxu0 0.0
    %2608 = vmatpush1.msra.mxu0 0.0
    %2609 = vmatprep.subr.mxu0 0.0
    %2610 = vmatpush1.msra.mxu0 0.0
    %2611 = vmatprep.mubr.f32.mxu0 0.0
    %2612 = vmatmul.mubr.f32.gmra.mrb[0].mxu0 %v2545
    %v2613 = vpop.f32.mrb[0].mxu0
    %v2614 = vadd.f32 0.0, %v2613
    %v2615 = vpop.f32.mrb[0].mxu0
    %2616 = vdwg.mxu0
    %v2617 = vld [vmem:[#allocation11] sm:$0x1]
    %v2618 = vld [vmem:[#allocation11 + $0x1] sm:$0x1]
    %v2619 = vld [vmem:[#allocation11 + $0x2] sm:$0x1]
    %vm2620 = vcmask 254976
    %v2621 = vsel %vm2620, %v2614, 0.0
    %v2622 = vrot.slane %v2621, 4
    %v2623 = vadd.f32 %v2621, %v2622
    %v2624 = vrot.slane %v2623, 2
    %v2625 = vadd.f32 %v2623, %v2624
    %v2626 = vrot.slane %v2625, 1
    %v2627 = vadd.f32 %v2625, %v2626
    %v2628 = vmul.f32 %v2627, 0.5
    %v2629 = vsub.f32 %v2614, %v2628
    %v2630 = vmul.f32 %v2629, %v2629
    %v2631 = vsel %vm2620, %v2630, 0.0
    %v2632 = vrot.slane %v2631, 4
    %v2633 = vadd.f32 %v2631, %v2632
    %v2634 = vrot.slane %v2633, 2
    %v2635 = vadd.f32 %v2633, %v2634
    %v2636 = vrot.slane %v2635, 1
    %v2637 = vadd.f32 %v2635, %v2636
    %v2638 = vmul.f32 %v2637, 0.5
    %v2639 = vadd.f32 %v2638, 1e-05
    %v2640 = vrsqrt.pop %v2639
    %v2641 = vmul.f32 %v2629, %v2640
    %v2642 = vlaneseq
    %v2643 = vshrl.u32 %v2642, 7
    %v2644 = vsub.s32 0, %v2643
    %v2645 = vrot.slane %v2617, %v2644
    %v2646 = vmul.f32 %v2641, %v2645
    %v2647 = vlaneseq
    %v2648 = vshrl.u32 %v2647, 7
    %v2649 = vsub.s32 0, %v2648
    %v2650 = vrot.slane %v2618, %v2649
    %v2651 = vadd.f32 %v2646, %v2650
    %v2652 = vld [vmem:[%s10] sm:$0xff]
    %v2653 = vld [vmem:[%s10 + $0x8] sm:$0xff]
    %v2654 = vld [vmem:[%s10 + $0x10] sm:$0xff]
    %v2655 = vld [vmem:[%s10 + $0x18] sm:$0xff]
    %v2656 = vlaneseq
    %v2657 = vshrl.u32 %v2656, 7
    %v2658 = vsub.s32 0, %v2657
    %v2659 = vrot.slane %v2619, %v2658
    %v2661 = vsel %vm256, %v2651, 0
    %2663 = vmatprep.subr.mxu0 0.0
    %2664 = vmatpush1.msra.mxu0 %v2652
    %2665 = vmatprep.subr.mxu0 0.0
    %2666 = vmatpush1.msra.mxu0 %v2653
    %2667 = vmatprep.subr.mxu0 0.0
    %2668 = vmatpush1.msra.mxu0 %v2654
    %2669 = vmatprep.subr.mxu0 0.0
    %2670 = vmatpush1.msra.mxu0 %v2655
    %2671 = vmatprep.subr.mxu0 0.0
    %2672 = vmatpush1.msra.mxu0 0.0
    %2673 = vmatprep.subr.mxu0 0.0
    %2674 = vmatpush1.msra.mxu0 0.0
    %2675 = vmatprep.subr.mxu0 0.0
    %2676 = vmatpush1.msra.mxu0 0.0
    %2677 = vmatprep.subr.mxu0 0.0
    %2678 = vmatpush1.msra.mxu0 0.0
    %2679 = vmatprep.subr.mxu0 0.0
    %2680 = vmatpush1.msra.mxu0 0.0
    %2681 = vmatprep.subr.mxu0 0.0
    %2682 = vmatpush1.msra.mxu0 0.0
    %2683 = vmatprep.subr.mxu0 0.0
    %2684 = vmatpush1.msra.mxu0 0.0
    %2685 = vmatprep.subr.mxu0 0.0
    %2686 = vmatpush1.msra.mxu0 0.0
    %2687 = vmatprep.subr.mxu0 0.0
    %2688 = vmatpush1.msra.mxu0 0.0
    %2689 = vmatprep.subr.mxu0 0.0
    %2690 = vmatpush1.msra.mxu0 0.0
    %2691 = vmatprep.subr.mxu0 0.0
    %2692 = vmatpush1.msra.mxu0 0.0
    %2693 = vmatprep.subr.mxu0 0.0
    %2694 = vmatpush1.msra.mxu0 0.0
    %2695 = vmatprep.subr.mxu0 0.0
    %2696 = vmatpush1.msra.mxu0 0.0
    %2697 = vmatprep.subr.mxu0 0.0
    %2698 = vmatpush1.msra.mxu0 0.0
    %2699 = vmatprep.subr.mxu0 0.0
    %2700 = vmatpush1.msra.mxu0 0.0
    %2701 = vmatprep.subr.mxu0 0.0
    %2702 = vmatpush1.msra.mxu0 0.0
    %2703 = vmatprep.subr.mxu0 0.0
    %2704 = vmatpush1.msra.mxu0 0.0
    %2705 = vmatprep.subr.mxu0 0.0
    %2706 = vmatpush1.msra.mxu0 0.0
    %2707 = vmatprep.subr.mxu0 0.0
    %2708 = vmatpush1.msra.mxu0 0.0
    %2709 = vmatprep.subr.mxu0 0.0
    %2710 = vmatpush1.msra.mxu0 0.0
    %2711 = vmatprep.subr.mxu0 0.0
    %2712 = vmatpush1.msra.mxu0 0.0
    %2713 = vmatprep.subr.mxu0 0.0
    %2714 = vmatpush1.msra.mxu0 0.0
    %2715 = vmatprep.subr.mxu0 0.0
    %2716 = vmatpush1.msra.mxu0 0.0
    %2717 = vmatprep.subr.mxu0 0.0
    %2718 = vmatpush1.msra.mxu0 0.0
    %2719 = vmatprep.subr.mxu0 0.0
    %2720 = vmatpush1.msra.mxu0 0.0
    %2721 = vmatprep.subr.mxu0 0.0
    %2722 = vmatpush1.msra.mxu0 0.0
    %2723 = vmatprep.subr.mxu0 0.0
    %2724 = vmatpush1.msra.mxu0 0.0
    %2725 = vmatprep.subr.mxu0 0.0
    %2726 = vmatpush1.msra.mxu0 0.0
    %2727 = vmatprep.mubr.f32.mxu0 0.0
    %2728 = vmatmul.mubr.f32.gmra.mrb[0].mxu0 %v2661
    %v2729 = vpop.f32.mrb[0].mxu0
    %v2730 = vadd.f32 %v2659, %v2729
    %v2731 = vpop.f32.mrb[0].mxu0
    %2732 = vdwg.mxu0
    %v2733 = vld [vmem:[#allocation13] sm:$0xff]
    %v2734 = vld [vmem:[#allocation13 + $0x8] sm:$0xff]
    %v2735 = vld [vmem:[#allocation13 + $0x10] sm:$0xff]
    %v2736 = vld [vmem:[#allocation13 + $0x18] sm:$0xff]
    %v2737 = vld [vmem:[#allocation14] sm:$0x1]
    %v2739 = vlaneseq
    %v2740 = vshrl.u32 %v2739, 7
    %v2741 = vsub.s32 0, %v2740
    %v2742 = vrot.slane %v2737, %v2741
    %v2745 = vsel %vm256, %v2730, 0
    %2747 = vmatprep.subr.mxu0 0.0
    %2748 = vmatpush1.msra.mxu0 %v2733
    %2749 = vmatprep.subr.mxu0 0.0
    %2750 = vmatpush1.msra.mxu0 %v2734
    %2751 = vmatprep.subr.mxu0 0.0
    %2752 = vmatpush1.msra.mxu0 %v2735
    %2753 = vmatprep.subr.mxu0 0.0
    %2754 = vmatpush1.msra.mxu0 %v2736
    %2755 = vmatprep.subr.mxu0 0.0
    %2756 = vmatpush1.msra.mxu0 0.0
    %2757 = vmatprep.subr.mxu0 0.0
    %2758 = vmatpush1.msra.mxu0 0.0
    %2759 = vmatprep.subr.mxu0 0.0
    %2760 = vmatpush1.msra.mxu0 0.0
    %2761 = vmatprep.subr.mxu0 0.0
    %2762 = vmatpush1.msra.mxu0 0.0
    %2763 = vmatprep.subr.mxu0 0.0
    %2764 = vmatpush1.msra.mxu0 0.0
    %2765 = vmatprep.subr.mxu0 0.0
    %2766 = vmatpush1.msra.mxu0 0.0
    %2767 = vmatprep.subr.mxu0 0.0
    %2768 = vmatpush1.msra.mxu0 0.0
    %2769 = vmatprep.subr.mxu0 0.0
    %2770 = vmatpush1.msra.mxu0 0.0
    %2771 = vmatprep.subr.mxu0 0.0
    %2772 = vmatpush1.msra.mxu0 0.0
    %2773 = vmatprep.subr.mxu0 0.0
    %2774 = vmatpush1.msra.mxu0 0.0
    %2775 = vmatprep.subr.mxu0 0.0
    %2776 = vmatpush1.msra.mxu0 0.0
    %2777 = vmatprep.subr.mxu0 0.0
    %2778 = vmatpush1.msra.mxu0 0.0
    %2779 = vmatprep.subr.mxu0 0.0
    %2780 = vmatpush1.msra.mxu0 0.0
    %2781 = vmatprep.subr.mxu0 0.0
    %2782 = vmatpush1.msra.mxu0 0.0
    %2783 = vmatprep.subr.mxu0 0.0
    %2784 = vmatpush1.msra.mxu0 0.0
    %2785 = vmatprep.subr.mxu0 0.0
    %2786 = vmatpush1.msra.mxu0 0.0
    %2787 = vmatprep.subr.mxu0 0.0
    %2788 = vmatpush1.msra.mxu0 0.0
    %2789 = vmatprep.subr.mxu0 0.0
    %2790 = vmatpush1.msra.mxu0 0.0
    %2791 = vmatprep.subr.mxu0 0.0
    %2792 = vmatpush1.msra.mxu0 0.0
    %2793 = vmatprep.subr.mxu0 0.0
    %2794 = vmatpush1.msra.mxu0 0.0
    %2795 = vmatprep.subr.mxu0 0.0
    %2796 = vmatpush1.msra.mxu0 0.0
    %2797 = vmatprep.subr.mxu0 0.0
    %2798 = vmatpush1.msra.mxu0 0.0
    %2799 = vmatprep.subr.mxu0 0.0
    %2800 = vmatpush1.msra.mxu0 0.0
    %2801 = vmatprep.subr.mxu0 0.0
    %2802 = vmatpush1.msra.mxu0 0.0
    %2803 = vmatprep.subr.mxu0 0.0
    %2804 = vmatpush1.msra.mxu0 0.0
    %2805 = vmatprep.subr.mxu0 0.0
    %2806 = vmatpush1.msra.mxu0 0.0
    %2807 = vmatprep.subr.mxu0 0.0
    %2808 = vmatpush1.msra.mxu0 0.0
    %2809 = vmatprep.subr.mxu0 0.0
    %2810 = vmatpush1.msra.mxu0 0.0
    %2811 = vmatprep.mubr.f32.mxu0 0.0
    %2812 = vmatmul.mubr.f32.gmra.mrb[0].mxu0 %v2745
    %v2813 = vpop.f32.mrb[0].mxu0
    %v2814 = vadd.f32 %v2742, %v2813
    %v2815 = vpop.f32.mrb[0].mxu0
    %2816 = vdwg.mxu0
    %v2817 = vld [vmem:[#allocation16] sm:$0x3]
    %v2818 = vmul.f32 %v2814, 0.5
    %v2819 = vmul.f32 %v2818, 1.442695
    %v2820 = vpow.pop %v2819
    %2822 = vrot.lane.b32.xlu0 %v2820, 112
    %v2823 = vpop.permute.xlu0 %2822
    %v2825 = vmul.f32 %v2817, %v2823
    %v2826 = vadd.f32 %v2825, %v2814
    %v2827 = vld [vmem:[#allocation17] sm:$0xff]
    %v2828 = vld [vmem:[#allocation17 + $0x8] sm:$0xff]
    %v2829 = vld [vmem:[%s18] sm:$0x1]
    %v2830 = vlaneseq
    %v2831 = vshrl.u32 %v2830, 7
    %v2832 = vsub.s32 0, %v2831
    %v2833 = vrot.slane %v2829, %v2832
    %v2835 = vsel %vm2543, %v2826, 0
    %2837 = vmatprep.subr.mxu0 0.0
    %2838 = vmatpush1.msra.mxu0 %v2827
    %2839 = vmatprep.subr.mxu0 0.0
    %2840 = vmatpush1.msra.mxu0 %v2828
    %2841 = vmatprep.subr.mxu0 0.0
    %2842 = vmatpush1.msra.mxu0 0.0
    %2843 = vmatprep.subr.mxu0 0.0
    %2844 = vmatpush1.msra.mxu0 0.0
    %2845 = vmatprep.subr.mxu0 0.0
    %2846 = vmatpush1.msra.mxu0 0.0
    %2847 = vmatprep.subr.mxu0 0.0
    %2848 = vmatpush1.msra.mxu0 0.0
    %2849 = vmatprep.subr.mxu0 0.0
    %2850 = vmatpush1.msra.mxu0 0.0
    %2851 = vmatprep.subr.mxu0 0.0
    %2852 = vmatpush1.msra.mxu0 0.0
    %2853 = vmatprep.subr.mxu0 0.0
    %2854 = vmatpush1.msra.mxu0 0.0
    %2855 = vmatprep.subr.mxu0 0.0
    %2856 = vmatpush1.msra.mxu0 0.0
    %2857 = vmatprep.subr.mxu0 0.0
    %2858 = vmatpush1.msra.mxu0 0.0
    %2859 = vmatprep.subr.mxu0 0.0
    %2860 = vmatpush1.msra.mxu0 0.0
    %2861 = vmatprep.subr.mxu0 0.0
    %2862 = vmatpush1.msra.mxu0 0.0
    %2863 = vmatprep.subr.mxu0 0.0
    %2864 = vmatpush1.msra.mxu0 0.0
    %2865 = vmatprep.subr.mxu0 0.0
    %2866 = vmatpush1.msra.mxu0 0.0
    %2867 = vmatprep.subr.mxu0 0.0
    %2868 = vmatpush1.msra.mxu0 0.0
    %2869 = vmatprep.subr.mxu0 0.0
    %2870 = vmatpush1.msra.mxu0 0.0
    %2871 = vmatprep.subr.mxu0 0.0
    %2872 = vmatpush1.msra.mxu0 0.0
    %2873 = vmatprep.subr.mxu0 0.0
    %2874 = vmatpush1.msra.mxu0 0.0
    %2875 = vmatprep.subr.mxu0 0.0
    %2876 = vmatpush1.msra.mxu0 0.0
    %2877 = vmatprep.subr.mxu0 0.0
    %2878 = vmatpush1.msra.mxu0 0.0
    %2879 = vmatprep.subr.mxu0 0.0
    %2880 = vmatpush1.msra.mxu0 0.0
    %2881 = vmatprep.subr.mxu0 0.0
    %2882 = vmatpush1.msra.mxu0 0.0
    %2883 = vmatprep.subr.mxu0 0.0
    %2884 = vmatpush1.msra.mxu0 0.0
    %2885 = vmatprep.subr.mxu0 0.0
    %2886 = vmatpush1.msra.mxu0 0.0
    %2887 = vmatprep.subr.mxu0 0.0
    %2888 = vmatpush1.msra.mxu0 0.0
    %2889 = vmatprep.subr.mxu0 0.0
    %2890 = vmatpush1.msra.mxu0 0.0
    %2891 = vmatprep.subr.mxu0 0.0
    %2892 = vmatpush1.msra.mxu0 0.0
    %2893 = vmatprep.subr.mxu0 0.0
    %2894 = vmatpush1.msra.mxu0 0.0
    %2895 = vmatprep.subr.mxu0 0.0
    %2896 = vmatpush1.msra.mxu0 0.0
    %2897 = vmatprep.subr.mxu0 0.0
    %2898 = vmatpush1.msra.mxu0 0.0
    %2899 = vmatprep.subr.mxu0 0.0
    %2900 = vmatpush1.msra.mxu0 0.0
    %2901 = vmatprep.mubr.f32.mxu0 0.0
    %2902 = vmatmul.mubr.f32.gmra.mrb[0].mxu0 %v2835
    %v2903 = vpop.f32.mrb[0].mxu0
    %v2904 = vadd.f32 %v2833, %v2903
    %v2905 = vpop.f32.mrb[0].mxu0
    %2906 = vdwg.mxu0
    %v2907 = vmax.f32 %v2904, 0.0
    %v2908 = vld [vmem:[%s16] sm:$0xff]
    %v2909 = vld [vmem:[%s16 + $0x8] sm:$0xff]
    %v2910 = vld [vmem:[%s16 + $0x10] sm:$0xff]
    %v2911 = vld [vmem:[%s16 + $0x18] sm:$0xff]
    %v2912 = vld [vmem:[%s18 + $0x1] sm:$0x1]
    %v2913 = vlaneseq
    %v2914 = vshrl.u32 %v2913, 7
    %v2915 = vsub.s32 0, %v2914
    %v2916 = vrot.slane %v2912, %v2915
    %v2918 = vsel %vm256, %v2907, 0
    %2920 = vmatprep.subr.mxu0 0.0
    %2921 = vmatpush1.msra.mxu0 %v2908
    %2922 = vmatprep.subr.mxu0 0.0
    %2923 = vmatpush1.msra.mxu0 %v2909
    %2924 = vmatprep.subr.mxu0 0.0
    %2925 = vmatpush1.msra.mxu0 %v2910
    %2926 = vmatprep.subr.mxu0 0.0
    %2927 = vmatpush1.msra.mxu0 %v2911
    %2928 = vmatprep.subr.mxu0 0.0
    %2929 = vmatpush1.msra.mxu0 0.0
    %2930 = vmatprep.subr.mxu0 0.0
    %2931 = vmatpush1.msra.mxu0 0.0
    %2932 = vmatprep.subr.mxu0 0.0
    %2933 = vmatpush1.msra.mxu0 0.0
    %2934 = vmatprep.subr.mxu0 0.0
    %2935 = vmatpush1.msra.mxu0 0.0
    %2936 = vmatprep.subr.mxu0 0.0
    %2937 = vmatpush1.msra.mxu0 0.0
    %2938 = vmatprep.subr.mxu0 0.0
    %2939 = vmatpush1.msra.mxu0 0.0
    %2940 = vmatprep.subr.mxu0 0.0
    %2941 = vmatpush1.msra.mxu0 0.0
    %2942 = vmatprep.subr.mxu0 0.0
    %2943 = vmatpush1.msra.mxu0 0.0
    %2944 = vmatprep.subr.mxu0 0.0
    %2945 = vmatpush1.msra.mxu0 0.0
    %2946 = vmatprep.subr.mxu0 0.0
    %2947 = vmatpush1.msra.mxu0 0.0
    %2948 = vmatprep.subr.mxu0 0.0
    %2949 = vmatpush1.msra.mxu0 0.0
    %2950 = vmatprep.subr.mxu0 0.0
    %2951 = vmatpush1.msra.mxu0 0.0
    %2952 = vmatprep.subr.mxu0 0.0
    %2953 = vmatpush1.msra.mxu0 0.0
    %2954 = vmatprep.subr.mxu0 0.0
    %2955 = vmatpush1.msra.mxu0 0.0
    %2956 = vmatprep.subr.mxu0 0.0
    %2957 = vmatpush1.msra.mxu0 0.0
    %2958 = vmatprep.subr.mxu0 0.0
    %2959 = vmatpush1.msra.mxu0 0.0
    %2960 = vmatprep.subr.mxu0 0.0
    %2961 = vmatpush1.msra.mxu0 0.0
    %2962 = vmatprep.subr.mxu0 0.0
    %2963 = vmatpush1.msra.mxu0 0.0
    %2964 = vmatprep.subr.mxu0 0.0
    %2965 = vmatpush1.msra.mxu0 0.0
    %2966 = vmatprep.subr.mxu0 0.0
    %2967 = vmatpush1.msra.mxu0 0.0
    %2968 = vmatprep.subr.mxu0 0.0
    %2969 = vmatpush1.msra.mxu0 0.0
    %2970 = vmatprep.subr.mxu0 0.0
    %2971 = vmatpush1.msra.mxu0 0.0
    %2972 = vmatprep.subr.mxu0 0.0
    %2973 = vmatpush1.msra.mxu0 0.0
    %2974 = vmatprep.subr.mxu0 0.0
    %2975 = vmatpush1.msra.mxu0 0.0
    %2976 = vmatprep.subr.mxu0 0.0
    %2977 = vmatpush1.msra.mxu0 0.0
    %2978 = vmatprep.subr.mxu0 0.0
    %2979 = vmatpush1.msra.mxu0 0.0
    %2980 = vmatprep.subr.mxu0 0.0
    %2981 = vmatpush1.msra.mxu0 0.0
    %2982 = vmatprep.subr.mxu0 0.0
    %2983 = vmatpush1.msra.mxu0 0.0
    %2984 = vmatprep.mubr.f32.mxu0 0.0
    %2985 = vmatmul.mubr.f32.gmra.mrb[0].mxu0 %v2918
    %v2986 = vpop.f32.mrb[0].mxu0
    %v2987 = vadd.f32 %v2916, %v2986
    %v2988 = vpop.f32.mrb[0].mxu0
    %2989 = vdwg.mxu0
    %v2990 = vmax.f32 %v2987, 0.0
    %v2991 = vld [vmem:[#allocation19] sm:$0xff]
    %v2992 = vld [vmem:[#allocation19 + $0x8] sm:$0xff]
    %v2993 = vld [vmem:[#allocation19 + $0x10] sm:$0xff]
    %v2994 = vld [vmem:[#allocation19 + $0x18] sm:$0xff]
    %v2995 = vld [vmem:[%s19] sm:$0x1]
    %v2997 = vlaneseq
    %v2998 = vshrl.u32 %v2997, 7
    %v2999 = vsub.s32 0, %v2998
    %v3000 = vrot.slane %v2995, %v2999
    %v3003 = vsel %vm256, %v2990, 0
    %3005 = vmatprep.subr.mxu0 0.0
    %3006 = vmatpush1.msra.mxu0 %v2991
    %3007 = vmatprep.subr.mxu0 0.0
    %3008 = vmatpush1.msra.mxu0 %v2992
    %3009 = vmatprep.subr.mxu0 0.0
    %3010 = vmatpush1.msra.mxu0 %v2993
    %3011 = vmatprep.subr.mxu0 0.0
    %3012 = vmatpush1.msra.mxu0 %v2994
    %3013 = vmatprep.subr.mxu0 0.0
    %3014 = vmatpush1.msra.mxu0 0.0
    %3015 = vmatprep.subr.mxu0 0.0
    %3016 = vmatpush1.msra.mxu0 0.0
    %3017 = vmatprep.subr.mxu0 0.0
    %3018 = vmatpush1.msra.mxu0 0.0
    %3019 = vmatprep.subr.mxu0 0.0
    %3020 = vmatpush1.msra.mxu0 0.0
    %3021 = vmatprep.subr.mxu0 0.0
    %3022 = vmatpush1.msra.mxu0 0.0
    %3023 = vmatprep.subr.mxu0 0.0
    %3024 = vmatpush1.msra.mxu0 0.0
    %3025 = vmatprep.subr.mxu0 0.0
    %3026 = vmatpush1.msra.mxu0 0.0
    %3027 = vmatprep.subr.mxu0 0.0
    %3028 = vmatpush1.msra.mxu0 0.0
    %3029 = vmatprep.subr.mxu0 0.0
    %3030 = vmatpush1.msra.mxu0 0.0
    %3031 = vmatprep.subr.mxu0 0.0
    %3032 = vmatpush1.msra.mxu0 0.0
    %3033 = vmatprep.subr.mxu0 0.0
    %3034 = vmatpush1.msra.mxu0 0.0
    %3035 = vmatprep.subr.mxu0 0.0
    %3036 = vmatpush1.msra.mxu0 0.0
    %3037 = vmatprep.subr.mxu0 0.0
    %3038 = vmatpush1.msra.mxu0 0.0
    %3039 = vmatprep.subr.mxu0 0.0
    %3040 = vmatpush1.msra.mxu0 0.0
    %3041 = vmatprep.subr.mxu0 0.0
    %3042 = vmatpush1.msra.mxu0 0.0
    %3043 = vmatprep.subr.mxu0 0.0
    %3044 = vmatpush1.msra.mxu0 0.0
    %3045 = vmatprep.subr.mxu0 0.0
    %3046 = vmatpush1.msra.mxu0 0.0
    %3047 = vmatprep.subr.mxu0 0.0
    %3048 = vmatpush1.msra.mxu0 0.0
    %3049 = vmatprep.subr.mxu0 0.0
    %3050 = vmatpush1.msra.mxu0 0.0
    %3051 = vmatprep.subr.mxu0 0.0
    %3052 = vmatpush1.msra.mxu0 0.0
    %3053 = vmatprep.subr.mxu0 0.0
    %3054 = vmatpush1.msra.mxu0 0.0
    %3055 = vmatprep.subr.mxu0 0.0
    %3056 = vmatpush1.msra.mxu0 0.0
    %3057 = vmatprep.subr.mxu0 0.0
    %3058 = vmatpush1.msra.mxu0 0.0
    %3059 = vmatprep.subr.mxu0 0.0
    %3060 = vmatpush1.msra.mxu0 0.0
    %3061 = vmatprep.subr.mxu0 0.0
    %3062 = vmatpush1.msra.mxu0 0.0
    %3063 = vmatprep.subr.mxu0 0.0
    %3064 = vmatpush1.msra.mxu0 0.0
    %3065 = vmatprep.subr.mxu0 0.0
    %3066 = vmatpush1.msra.mxu0 0.0
    %3067 = vmatprep.subr.mxu0 0.0
    %3068 = vmatpush1.msra.mxu0 0.0
    %3069 = vmatprep.mubr.f32.mxu0 0.0
    %3070 = vmatmul.mubr.f32.gmra.mrb[0].mxu0 %v3003
    %v3071 = vpop.f32.mrb[0].mxu0
    %v3072 = vadd.f32 %v3000, %v3071
    %v3073 = vpop.f32.mrb[0].mxu0
    %3074 = vdwg.mxu0
    %v3075 = vld [vmem:[#allocation20] sm:$0x3]
    %v3076 = vadd.f32 %v3072, %v3075
    %3078 = vrot.lane.b32.xlu0 %v3076, 100
    %v3079 = vpop.permute.xlu0 %3078
    %vm3081 = vcmp.ge.f32.partialorder %v3076, %v3079
    %v3082 = vsel %vm3081, 1, 0
    %v3083 = vcvt.s32.f32 %v3082
    %v3084 = vpack.c.bf16 %v3083, %v3083
    %v3085 = vld [vmem:[%s21] sm:$0xf]
    %v3086 = vld [vmem:[%s21 + $0x4] sm:$0xf]
    %v3087 = vld [vmem:[%s21 + $0x8] sm:$0xf]
    %v3088 = vld [vmem:[%s21 + $0xc] sm:$0x3]
    %v3093 = vunpack.c.l.b16 %v3085
    %v3094 = vunpack.c.l.b16 %v3086
    %v3095 = vunpack.c.l.b16 %v3087
    %v3096 = vunpack.c.l.b16 %v3088
    %v3097 = vpack.c.b16 %v3094, %v3093
    %v3098 = vpack.c.b16 %v3096, %v3095
    %vm3100 = vcmask 228352
    %v3102 = vsel %vm3100, %v3084, 0
    %vm3104 = vcmask 1045504
    %v3106 = vsel %vm3104, %v3098, 0
    %3108 = vmatprep.subr.bf16.mxu0 0
    %3109 = vmatpush1.bf16.msra.mxu0 %v3097
    %3110 = vmatprep.subr.bf16.mxu0 0
    %3111 = vmatpush1.bf16.msra.mxu0 %v3106
    %3112 = vmatprep.subr.bf16.mxu0 0
    %3113 = vmatpush1.bf16.msra.mxu0 0
    %3114 = vmatprep.subr.bf16.mxu0 0
    %3115 = vmatpush1.bf16.msra.mxu0 0
    %3116 = vmatprep.subr.bf16.mxu0 0
    %3117 = vmatpush1.bf16.msra.mxu0 0
    %3118 = vmatprep.subr.bf16.mxu0 0
    %3119 = vmatpush1.bf16.msra.mxu0 0
    %3120 = vmatprep.subr.bf16.mxu0 0
    %3121 = vmatpush1.bf16.msra.mxu0 0
    %3122 = vmatprep.subr.bf16.mxu0 0
    %3123 = vmatpush1.bf16.msra.mxu0 0
    %3124 = vmatprep.subr.bf16.mxu0 0
    %3125 = vmatpush1.bf16.msra.mxu0 0
    %3126 = vmatprep.subr.bf16.mxu0 0
    %3127 = vmatpush1.bf16.msra.mxu0 0
    %3128 = vmatprep.subr.bf16.mxu0 0
    %3129 = vmatpush1.bf16.msra.mxu0 0
    %3130 = vmatprep.subr.bf16.mxu0 0
    %3131 = vmatpush1.bf16.msra.mxu0 0
    %3132 = vmatprep.subr.bf16.mxu0 0
    %3133 = vmatpush1.bf16.msra.mxu0 0
    %3134 = vmatprep.subr.bf16.mxu0 0
    %3135 = vmatpush1.bf16.msra.mxu0 0
    %3136 = vmatprep.subr.bf16.mxu0 0
    %3137 = vmatpush1.bf16.msra.mxu0 0
    %3138 = vmatprep.subr.bf16.mxu0 0
    %3139 = vmatpush1.bf16.msra.mxu0 0
    %3140 = vmatprep.mubr.bf16.mxu0 0
    %3141 = vmatmul.mubr.bf16.gmra.mrb[0].mxu0 %v3102
    %v3142 = vpop.f32.mrb[0].mxu0
    %v3143 = vadd.f32 0.0, %v3142
    %v3144 = vpop.f32.mrb[0].mxu0
    %v3145 = vpop.f32.mrb[0].mxu0
    %v3146 = vpop.f32.mrb[0].mxu0
    %3147 = vdwg.mxu0
    %3148 = vst [vmem:[#allocation22] sm:$0x3] %v3143
    // Predicated region
    $region138: #{tpu_custom_call.1} parent=1 // pred_check
      _
    $region139: #{tpu_custom_call.1} parent=1 // pred_check_branch
      %3150 = sbr.rel (0) target = $region141
    $region140: #{tpu_custom_call.1} parent=1 // pred_region
      %s3152 = ssub.s32 32, 32
      %3153 = vsyncadd [#allocation4], %s3152
      %s3155 = sshll.u32 [#allocation22], 4
      %s3156 = int_to_ptr.vmem [resolvable:$true] %s3155
      %3158 = dma.vmem_to_hbm [thread:$0]  %s3156, 32, %s22, [#allocation4]
    $region141: #{tpu_custom_call.1} parent=1 // pred_fallthru
      _
    // Predicated region
    $region142: #{tpu_custom_call.1} parent=1 // pred_check
      _
    $region143: #{tpu_custom_call.1} parent=1 // pred_check_branch
      %3160 = sbr.rel (0) target = $region145
    $region144: #{tpu_custom_call.1} parent=1 // pred_region
      %3161 = dma.done [#allocation4], 32
    $region145: #{tpu_custom_call.1} parent=1 // pred_fallthru
      _
    %3162 = vsyncpa [#allocation3], 1
    %3163 = vsyncpa [#allocation6], 1
    %3164 = vsyncpa [#allocation9], 1
    %3165 = vsyncpa [#allocation12], 1
    %3166 = vsyncpa [#allocation15], 1
    %3167 = vsyncpa [#allocation18], 1
    %3168 = vsyncpa [#allocation21], 1
    %3169 = vsyncpa [#allocation4], 1

</llo_original>
